<compile_context>
chip_gen: v7x
topology: tpu7x:2x2x1
jax: 0.10.0
libtpu: 0.0.40
codegen_flags: <defaults>
</compile_context>

<pallas_src>
import jax
import jax.numpy as jnp
from jax.experimental import pallas as pl
from jax.experimental.pallas import tpu as pltpu


# ----------------------------------------------------------------------------
# Fused kernel: 4 x (nearest-2x upsample -> conv3x3 -> bias -> ReLU)
# Activations are (rows, W*C) slabs; scratch u_k holds the H-upsampled,
# H-zero-padded input of layer k:  [0, a0, a0, a1, a1, ..., 0]  (f32).
# ----------------------------------------------------------------------------
def _decoder_fused_kernel(x_ref,
                          d1_ref, m1_ref, b1_ref,
                          d2_ref, m2_ref, b2_ref,
                          d3_ref, m3_ref, b3_ref,
                          d4_ref, m4_ref, b4_ref,
                          o_ref,
                          u1_ref, u2_ref, u3_ref, u4_ref):
    f32 = jnp.float32
    bf16 = jnp.bfloat16

    def upsample_h(rows, d_ref, u_ref):
        """rows: (h, W) f32 -> u_ref (2h+2, W) f32 = [0, r0, r0, r1, ..., 0].

        Row duplication is an exact 0/1 matmul against a precomputed bf16
        matrix; bf16 values pass through unchanged so this step is exact."""
        two_h = d_ref.shape[0]
        w = u_ref.shape[1]
        up = jnp.dot(d_ref[...], rows.astype(bf16), preferred_element_type=f32)
        u_ref[0:1, :] = jnp.zeros((1, w), f32)
        u_ref[1:two_h + 1, :] = up
        u_ref[two_h + 1:two_h + 2, :] = jnp.zeros((1, w), f32)

    def conv_bias_relu(u_ref, m_ref, b_ref):
        """W-upsample + 3x3 'same' conv + bias + ReLU via 3 banded bf16 matmuls
        (f32 accumulation)."""
        h_out = u_ref.shape[0] - 2
        acc = jnp.dot(u_ref[0:h_out, :].astype(bf16), m_ref[0],
                      preferred_element_type=f32)
        acc = acc + jnp.dot(u_ref[1:h_out + 1, :].astype(bf16), m_ref[1],
                            preferred_element_type=f32)
        acc = acc + jnp.dot(u_ref[2:h_out + 2, :].astype(bf16), m_ref[2],
                            preferred_element_type=f32)
        return jnp.maximum(acc + b_ref[...], 0.0)            # f32

    upsample_h(x_ref[0], d1_ref, u1_ref)                     # layer1 input
    a1 = conv_bias_relu(u1_ref, m1_ref, b1_ref)              # (2H,   2W*C1)
    upsample_h(a1, d2_ref, u2_ref)
    a2 = conv_bias_relu(u2_ref, m2_ref, b2_ref)              # (4H,   4W*C2)
    upsample_h(a2, d3_ref, u3_ref)
    a3 = conv_bias_relu(u3_ref, m3_ref, b3_ref)              # (8H,   8W*C3)
    upsample_h(a3, d4_ref, u4_ref)
    a4 = conv_bias_relu(u4_ref, m4_ref, b4_ref)              # (16H, 16W*C4)
    o_ref[0, :, :] = a4


# ----------------------------------------------------------------------------
# One-time (init-time) weight preparation: fold W-upsample + W-padding +
# channel mixing into bf16 block-banded matrices, tile biases, build 0/1
# H-duplication matrices.  NOT re-run inside the forward path.
# ----------------------------------------------------------------------------
def _build_layer_mats(wgt, bias, w_in):
    """wgt: (3,3,Cin,Cout) HWIO, bias: (Cout,).  Returns:
       m:     (3, w_in*Cin, 2*w_in*Cout)  bf16 band matrices per kh
       b_row: (1, 2*w_in*Cout)            f32 bias tiled over output pixels."""
    cin, cout = wgt.shape[2], wgt.shape[3]
    w_out = 2 * w_in
    q = jnp.arange(w_out)[:, None]                  # output pixel
    kw = jnp.arange(3)[None, :]                     # tap
    s = q + kw                                      # padded upsampled column
    valid = ((s >= 1) & (s <= w_out)).astype(jnp.float32)     # W zero-padding
    xsrc = jnp.clip((s - 1) // 2, 0, w_in - 1)                # nearest-2x source
    sel = jax.nn.one_hot(xsrc, w_in, dtype=jnp.float32) * valid[..., None]
    # m[kh, x*cin+ci, q*cout+co] = sum_kw sel[q,kw,x] * wgt[kh,kw,ci,co]
    m = jnp.einsum('qkx,hkio->hxiqo', sel, wgt.astype(jnp.float32))
    m = m.reshape(3, w_in * cin, w_out * cout).astype(jnp.bfloat16)
    b_row = jnp.tile(bias, w_out).reshape(1, w_out * cout).astype(jnp.float32)
    return m, b_row


def _build_dup(h_in):
    """(2h, h) exact 0/1 row-duplication matrix (bf16)."""
    r = jnp.arange(2 * h_in)[:, None] // 2
    c = jnp.arange(h_in)[None, :]
    return (r == c).astype(jnp.bfloat16)


def prepare_decoder_kernel_params(params, h0, w0):
    """Build kernel-ready arrays once, outside the jitted forward."""
    kparams = []
    h_in, w_in = h0, w0
    for (wgt, bias) in params:
        m, b_row = _build_layer_mats(wgt, bias, w_in)
        kparams.append((_build_dup(h_in), m, b_row))
        h_in, w_in = 2 * h_in, 2 * w_in
    return kparams


# ----------------------------------------------------------------------------
# Forward wrapper.
# ----------------------------------------------------------------------------
@jax.jit
def decoder_forward(x_nchw, kparams):
    """Decoder.forward: x -> layer1 -> layer2 -> layer3 -> layer4.
    NCHW in / NCHW out to match the PyTorch module.  If the consumer accepts
    channels-last, return `out_nhwc` directly and skip the final transpose
    (saves a full-output HBM round trip)."""
    assert len(kparams) == 4
    n, c0, h0, w0 = x_nchw.shape
    x = jnp.transpose(x_nchw, (0, 2, 3, 1)).reshape(n, h0, w0 * c0)

    # Static per-layer dims (trace-time Python ints).
    chans = [c0]
    w_in = w0
    for (_, _, b_row) in kparams:
        chans.append(b_row.shape[-1] // (2 * w_in))
        w_in *= 2
    h_out, w_out, c_out = 16 * h0, 16 * w0, chans[-1]

    flat_args = []
    in_specs = [pl.BlockSpec((1, h0, w0 * c0), lambda i: (i, 0, 0))]
    for (dup, m, b_row) in kparams:
        flat_args += [dup, m, b_row]
        # Grid-invariant weights: constant index maps (no re-DMA across steps).
        in_specs.append(pl.BlockSpec(dup.shape, lambda i: (0, 0)))
        in_specs.append(pl.BlockSpec(m.shape, lambda i: (0, 0, 0)))
        in_specs.append(pl.BlockSpec(b_row.shape, lambda i: (0, 0)))

    scratch_shapes = []
    hh, ww = h0, w0
    for k in range(4):
        scratch_shapes.append(
            pltpu.VMEM((2 * hh + 2, ww * chans[k]), jnp.float32))
        hh, ww = 2 * hh, 2 * ww

    out_flat = pl.pallas_call(
        _decoder_fused_kernel,
        out_shape=jax.ShapeDtypeStruct((n, h_out, w_out * c_out), jnp.float32),
        grid=(n,),
        in_specs=in_specs,
        out_specs=pl.BlockSpec((1, h_out, w_out * c_out), lambda i: (i, 0, 0)),
        scratch_shapes=scratch_shapes,
        compiler_params=pltpu.CompilerParams(
            dimension_semantics=("parallel",)),
    )(x, *flat_args)

    out_nhwc = out_flat.reshape(n, h_out, w_out, c_out)
    return jnp.transpose(out_nhwc, (0, 3, 1, 2))


# ----------------------------------------------------------------------------
# Parameters and pure-JAX reference.
# ----------------------------------------------------------------------------
def init_decoder_params(key, channels):
    """channels = [Cin, C1, C2, C3, C4]; returns list of (w, b) per layer."""
    params = []
    for i in range(4):
        cin, cout = channels[i], channels[i + 1]
        key, kw = jax.random.split(key)
        fan_in = 3 * 3 * cin
        w = jax.random.normal(kw, (3, 3, cin, cout), jnp.float32) / jnp.sqrt(fan_in)
        b = jnp.full((cout,), 0.01, jnp.float32)
        params.append((w, b))
    return params


def _upsample2x_nhwc(x):
    return jnp.repeat(jnp.repeat(x, 2, axis=1), 2, axis=2)


def _reference_forward(x_nchw, params):
    """Pure-JAX f32 reference (lax conv) for correctness check."""
    x = jnp.transpose(x_nchw, (0, 2, 3, 1))
    for (w, b) in params:
        x = _upsample2x_nhwc(x)
        x = jax.lax.conv_general_dilated(
            x, w, window_strides=(1, 1), padding="SAME",
            dimension_numbers=("NHWC", "HWIO", "NHWC"))
        x = jnp.maximum(x + b, 0.0)
    return jnp.transpose(x, (0, 3, 1, 2))


if __name__ == "__main__":
    key = jax.random.PRNGKey(0)
    k_x, k_p = jax.random.split(key)

    # Small decoder config: 2 x 16ch x 8x8 input, channels 16->8->8->4->4,
    # spatial 8 -> 16 -> 32 -> 64 -> 128.  In-kernel lane widths 128..512.
    N, C_IN, H, W = 2, 16, 8, 8
    channels = [C_IN, 8, 8, 4, 4]

    x = jax.random.normal(k_x, (N, C_IN, H, W), jnp.float32)
    params = init_decoder_params(k_p, channels)

    # Kernel-ready (bf16) weights built once, outside the forward path.
    kparams = prepare_decoder_kernel_params(params, H, W)

    out = jax.block_until_ready(decoder_forward(x, kparams))
    assert out.shape == (N, channels[-1], H * 16, W * 16), out.shape

    ref = jax.block_until_ready(_reference_forward(x, params))
    max_err = float(jnp.max(jnp.abs(out - ref)))
    # bf16 weights/activations with f32 accumulation vs an f32 reference over
    # 4 stacked layers: widened tolerance (the f32 path matched to ~1e-5).
    assert jnp.allclose(out, ref, rtol=5e-2, atol=5e-2), max_err

    print("KERNEL_OK")
</pallas_src>

<mosaic_0001>
module attributes {stable_mosaic.version = 11 : i64} {
  func.func @_decoder_fused_kernel(%arg0: i32, %arg1: memref<1x8x128xf32, #tpu.memory_space<vmem>>, %arg2: memref<16x8xbf16, #tpu.memory_space<vmem>>, %arg3: memref<3x128x128xbf16, #tpu.memory_space<vmem>>, %arg4: memref<1x128xf32, #tpu.memory_space<vmem>>, %arg5: memref<32x16xbf16, #tpu.memory_space<vmem>>, %arg6: memref<3x128x256xbf16, #tpu.memory_space<vmem>>, %arg7: memref<1x256xf32, #tpu.memory_space<vmem>>, %arg8: memref<64x32xbf16, #tpu.memory_space<vmem>>, %arg9: memref<3x256x256xbf16, #tpu.memory_space<vmem>>, %arg10: memref<1x256xf32, #tpu.memory_space<vmem>>, %arg11: memref<128x64xbf16, #tpu.memory_space<vmem>>, %arg12: memref<3x256x512xbf16, #tpu.memory_space<vmem>>, %arg13: memref<1x512xf32, #tpu.memory_space<vmem>>, %arg14: memref<1x128x512xf32, #tpu.memory_space<vmem>>, %arg15: memref<18x128xf32, #tpu.memory_space<vmem>>, %arg16: memref<34x128xf32, #tpu.memory_space<vmem>>, %arg17: memref<66x256xf32, #tpu.memory_space<vmem>>, %arg18: memref<130x256xf32, #tpu.memory_space<vmem>>) attributes {dimension_semantics = [#tpu.dimension_semantics<parallel>], iteration_bounds = array<i64: 2>, scalar_prefetch = 0 : i64, scratch_operands = 4 : i64, tpu.core_type = #tpu.core_type<tc>, window_params = [{transform_indices = @transform_0, window_bounds = array<i64: 1, 8, 128>}, {pipeline_mode = #tpu.pipeline_mode<synchronous>, transform_indices = @transform_1, window_bounds = array<i64: 16, 8>}, {pipeline_mode = #tpu.pipeline_mode<synchronous>, transform_indices = @transform_2, window_bounds = array<i64: 3, 128, 128>}, {pipeline_mode = #tpu.pipeline_mode<synchronous>, transform_indices = @transform_3, window_bounds = array<i64: 1, 128>}, {pipeline_mode = #tpu.pipeline_mode<synchronous>, transform_indices = @transform_4, window_bounds = array<i64: 32, 16>}, {pipeline_mode = #tpu.pipeline_mode<synchronous>, transform_indices = @transform_5, window_bounds = array<i64: 3, 128, 256>}, {pipeline_mode = #tpu.pipeline_mode<synchronous>, transform_indices = @transform_6, window_bounds = array<i64: 1, 256>}, {pipeline_mode = #tpu.pipeline_mode<synchronous>, transform_indices = @transform_7, window_bounds = array<i64: 64, 32>}, {pipeline_mode = #tpu.pipeline_mode<synchronous>, transform_indices = @transform_8, window_bounds = array<i64: 3, 256, 256>}, {pipeline_mode = #tpu.pipeline_mode<synchronous>, transform_indices = @transform_9, window_bounds = array<i64: 1, 256>}, {pipeline_mode = #tpu.pipeline_mode<synchronous>, transform_indices = @transform_10, window_bounds = array<i64: 128, 64>}, {pipeline_mode = #tpu.pipeline_mode<synchronous>, transform_indices = @transform_11, window_bounds = array<i64: 3, 256, 512>}, {pipeline_mode = #tpu.pipeline_mode<synchronous>, transform_indices = @transform_12, window_bounds = array<i64: 1, 512>}, {transform_indices = @transform_13, window_bounds = array<i64: 1, 128, 512>}]} {
    %c0 = arith.constant 0 : index
    %c0_0 = arith.constant 0 : index
    %c0_1 = arith.constant 0 : index
    %0 = vector.load %arg1[%c0, %c0_0, %c0_1] : memref<1x8x128xf32, #tpu.memory_space<vmem>>, vector<1x8x128xf32>
    %1 = vector.shape_cast %0 : vector<1x8x128xf32> to vector<8x128xf32>
    %c0_2 = arith.constant 0 : index
    %c0_3 = arith.constant 0 : index
    %2 = vector.load %arg2[%c0_2, %c0_3] : memref<16x8xbf16, #tpu.memory_space<vmem>>, vector<16x8xbf16>
    %3 = arith.truncf %1 : vector<8x128xf32> to vector<8x128xbf16>
    %cst = arith.constant dense<0.000000e+00> : vector<16x128xf32>
    %4 = tpu.matmul %2, %3, %cst {dimension_numbers = #tpu.dot_dimension_numbers<[1], [0], [0], [1], [0, 0, 1, 1], [], []>} : vector<16x8xbf16>, vector<8x128xbf16>, vector<16x128xf32> -> vector<16x128xf32>
    %cst_4 = arith.constant 0.000000e+00 : f32
    %5 = vector.broadcast %cst_4 : f32 to vector<1x128xf32>
    %c0_5 = arith.constant 0 : index
    %c0_6 = arith.constant 0 : index
    %6 = vector.load %arg15[%c0_5, %c0_6] : memref<18x128xf32, #tpu.memory_space<vmem>>, vector<1x128xf32>
    tpu.vector_store %arg15[%c0_5, %c0_6], %5 {strides = array<i32>} : memref<18x128xf32, #tpu.memory_space<vmem>>, vector<1x128xf32>,
    %c1 = arith.constant 1 : index
    %c0_7 = arith.constant 0 : index
    %7 = vector.load %arg15[%c1, %c0_7] : memref<18x128xf32, #tpu.memory_space<vmem>>, vector<16x128xf32>
    tpu.vector_store %arg15[%c1, %c0_7], %4 {strides = array<i32>} : memref<18x128xf32, #tpu.memory_space<vmem>>, vector<16x128xf32>,
    %cst_8 = arith.constant 0.000000e+00 : f32
    %8 = vector.broadcast %cst_8 : f32 to vector<1x128xf32>
    %c17 = arith.constant 17 : index
    %c0_9 = arith.constant 0 : index
    %9 = vector.load %arg15[%c17, %c0_9] : memref<18x128xf32, #tpu.memory_space<vmem>>, vector<1x128xf32>
    tpu.vector_store %arg15[%c17, %c0_9], %8 {strides = array<i32>} : memref<18x128xf32, #tpu.memory_space<vmem>>, vector<1x128xf32>,
    %c0_10 = arith.constant 0 : index
    %c0_11 = arith.constant 0 : index
    %10 = vector.load %arg15[%c0_10, %c0_11] : memref<18x128xf32, #tpu.memory_space<vmem>>, vector<16x128xf32>
    %11 = arith.truncf %10 : vector<16x128xf32> to vector<16x128xbf16>
    %c0_12 = arith.constant 0 : index
    %c0_13 = arith.constant 0 : index
    %c0_14 = arith.constant 0 : index
    %12 = vector.load %arg3[%c0_12, %c0_13, %c0_14] : memref<3x128x128xbf16, #tpu.memory_space<vmem>>, vector<1x128x128xbf16>
    %13 = vector.shape_cast %12 : vector<1x128x128xbf16> to vector<128x128xbf16>
    %cst_15 = arith.constant dense<0.000000e+00> : vector<16x128xf32>
    %14 = tpu.matmul %11, %13, %cst_15 {dimension_numbers = #tpu.dot_dimension_numbers<[1], [0], [0], [1], [0, 0, 1, 1], [], []>} : vector<16x128xbf16>, vector<128x128xbf16>, vector<16x128xf32> -> vector<16x128xf32>
    %c1_16 = arith.constant 1 : index
    %c0_17 = arith.constant 0 : index
    %15 = vector.load %arg15[%c1_16, %c0_17] : memref<18x128xf32, #tpu.memory_space<vmem>>, vector<16x128xf32>
    %16 = arith.truncf %15 : vector<16x128xf32> to vector<16x128xbf16>
    %c1_18 = arith.constant 1 : index
    %c0_19 = arith.constant 0 : index
    %c0_20 = arith.constant 0 : index
    %17 = vector.load %arg3[%c1_18, %c0_19, %c0_20] : memref<3x128x128xbf16, #tpu.memory_space<vmem>>, vector<1x128x128xbf16>
    %18 = vector.shape_cast %17 : vector<1x128x128xbf16> to vector<128x128xbf16>
    %cst_21 = arith.constant dense<0.000000e+00> : vector<16x128xf32>
    %19 = tpu.matmul %16, %18, %cst_21 {dimension_numbers = #tpu.dot_dimension_numbers<[1], [0], [0], [1], [0, 0, 1, 1], [], []>} : vector<16x128xbf16>, vector<128x128xbf16>, vector<16x128xf32> -> vector<16x128xf32>
    %20 = arith.addf %14, %19 : vector<16x128xf32>
    %c2 = arith.constant 2 : index
    %c0_22 = arith.constant 0 : index
    %21 = vector.load %arg15[%c2, %c0_22] : memref<18x128xf32, #tpu.memory_space<vmem>>, vector<16x128xf32>
    %22 = arith.truncf %21 : vector<16x128xf32> to vector<16x128xbf16>
    %c2_23 = arith.constant 2 : index
    %c0_24 = arith.constant 0 : index
    %c0_25 = arith.constant 0 : index
    %23 = vector.load %arg3[%c2_23, %c0_24, %c0_25] : memref<3x128x128xbf16, #tpu.memory_space<vmem>>, vector<1x128x128xbf16>
    %24 = vector.shape_cast %23 : vector<1x128x128xbf16> to vector<128x128xbf16>
    %cst_26 = arith.constant dense<0.000000e+00> : vector<16x128xf32>
    %25 = tpu.matmul %22, %24, %cst_26 {dimension_numbers = #tpu.dot_dimension_numbers<[1], [0], [0], [1], [0, 0, 1, 1], [], []>} : vector<16x128xbf16>, vector<128x128xbf16>, vector<16x128xf32> -> vector<16x128xf32>
    %26 = arith.addf %20, %25 : vector<16x128xf32>
    %c0_27 = arith.constant 0 : index
    %c0_28 = arith.constant 0 : index
    %27 = vector.load %arg4[%c0_27, %c0_28] : memref<1x128xf32, #tpu.memory_space<vmem>>, vector<1x128xf32>
    %28 = vector.broadcast %27 : vector<1x128xf32> to vector<16x128xf32>
    %29 = arith.addf %26, %28 : vector<16x128xf32>
    %cst_29 = arith.constant 0.000000e+00 : f32
    %30 = vector.broadcast %cst_29 : f32 to vector<16x128xf32>
    %31 = arith.maximumf %29, %30 : vector<16x128xf32>
    %c0_30 = arith.constant 0 : index
    %c0_31 = arith.constant 0 : index
    %32 = vector.load %arg5[%c0_30, %c0_31] : memref<32x16xbf16, #tpu.memory_space<vmem>>, vector<32x16xbf16>
    %33 = arith.truncf %31 : vector<16x128xf32> to vector<16x128xbf16>
    %cst_32 = arith.constant dense<0.000000e+00> : vector<32x128xf32>
    %34 = tpu.matmul %32, %33, %cst_32 {dimension_numbers = #tpu.dot_dimension_numbers<[1], [0], [0], [1], [0, 0, 1, 1], [], []>} : vector<32x16xbf16>, vector<16x128xbf16>, vector<32x128xf32> -> vector<32x128xf32>
    %cst_33 = arith.constant 0.000000e+00 : f32
    %35 = vector.broadcast %cst_33 : f32 to vector<1x128xf32>
    %c0_34 = arith.constant 0 : index
    %c0_35 = arith.constant 0 : index
    %36 = vector.load %arg16[%c0_34, %c0_35] : memref<34x128xf32, #tpu.memory_space<vmem>>, vector<1x128xf32>
    tpu.vector_store %arg16[%c0_34, %c0_35], %35 {strides = array<i32>} : memref<34x128xf32, #tpu.memory_space<vmem>>, vector<1x128xf32>,
    %c1_36 = arith.constant 1 : index
    %c0_37 = arith.constant 0 : index
    %37 = vector.load %arg16[%c1_36, %c0_37] : memref<34x128xf32, #tpu.memory_space<vmem>>, vector<32x128xf32>
    tpu.vector_store %arg16[%c1_36, %c0_37], %34 {strides = array<i32>} : memref<34x128xf32, #tpu.memory_space<vmem>>, vector<32x128xf32>,
    %cst_38 = arith.constant 0.000000e+00 : f32
    %38 = vector.broadcast %cst_38 : f32 to vector<1x128xf32>
    %c33 = arith.constant 33 : index
    %c0_39 = arith.constant 0 : index
    %39 = vector.load %arg16[%c33, %c0_39] : memref<34x128xf32, #tpu.memory_space<vmem>>, vector<1x128xf32>
    tpu.vector_store %arg16[%c33, %c0_39], %38 {strides = array<i32>} : memref<34x128xf32, #tpu.memory_space<vmem>>, vector<1x128xf32>,
    %c0_40 = arith.constant 0 : index
    %c0_41 = arith.constant 0 : index
    %40 = vector.load %arg16[%c0_40, %c0_41] : memref<34x128xf32, #tpu.memory_space<vmem>>, vector<32x128xf32>
    %41 = arith.truncf %40 : vector<32x128xf32> to vector<32x128xbf16>
    %c0_42 = arith.constant 0 : index
    %c0_43 = arith.constant 0 : index
    %c0_44 = arith.constant 0 : index
    %42 = vector.load %arg6[%c0_42, %c0_43, %c0_44] : memref<3x128x256xbf16, #tpu.memory_space<vmem>>, vector<1x128x256xbf16>
    %43 = vector.shape_cast %42 : vector<1x128x256xbf16> to vector<128x256xbf16>
    %cst_45 = arith.constant dense<0.000000e+00> : vector<32x256xf32>
    %44 = tpu.matmul %41, %43, %cst_45 {dimension_numbers = #tpu.dot_dimension_numbers<[1], [0], [0], [1], [0, 0, 1, 1], [], []>} : vector<32x128xbf16>, vector<128x256xbf16>, vector<32x256xf32> -> vector<32x256xf32>
    %c1_46 = arith.constant 1 : index
    %c0_47 = arith.constant 0 : index
    %45 = vector.load %arg16[%c1_46, %c0_47] : memref<34x128xf32, #tpu.memory_space<vmem>>, vector<32x128xf32>
    %46 = arith.truncf %45 : vector<32x128xf32> to vector<32x128xbf16>
    %c1_48 = arith.constant 1 : index
    %c0_49 = arith.constant 0 : index
    %c0_50 = arith.constant 0 : index
    %47 = vector.load %arg6[%c1_48, %c0_49, %c0_50] : memref<3x128x256xbf16, #tpu.memory_space<vmem>>, vector<1x128x256xbf16>
    %48 = vector.shape_cast %47 : vector<1x128x256xbf16> to vector<128x256xbf16>
    %cst_51 = arith.constant dense<0.000000e+00> : vector<32x256xf32>
    %49 = tpu.matmul %46, %48, %cst_51 {dimension_numbers = #tpu.dot_dimension_numbers<[1], [0], [0], [1], [0, 0, 1, 1], [], []>} : vector<32x128xbf16>, vector<128x256xbf16>, vector<32x256xf32> -> vector<32x256xf32>
    %50 = arith.addf %44, %49 : vector<32x256xf32>
    %c2_52 = arith.constant 2 : index
    %c0_53 = arith.constant 0 : index
    %51 = vector.load %arg16[%c2_52, %c0_53] : memref<34x128xf32, #tpu.memory_space<vmem>>, vector<32x128xf32>
    %52 = arith.truncf %51 : vector<32x128xf32> to vector<32x128xbf16>
    %c2_54 = arith.constant 2 : index
    %c0_55 = arith.constant 0 : index
    %c0_56 = arith.constant 0 : index
    %53 = vector.load %arg6[%c2_54, %c0_55, %c0_56] : memref<3x128x256xbf16, #tpu.memory_space<vmem>>, vector<1x128x256xbf16>
    %54 = vector.shape_cast %53 : vector<1x128x256xbf16> to vector<128x256xbf16>
    %cst_57 = arith.constant dense<0.000000e+00> : vector<32x256xf32>
    %55 = tpu.matmul %52, %54, %cst_57 {dimension_numbers = #tpu.dot_dimension_numbers<[1], [0], [0], [1], [0, 0, 1, 1], [], []>} : vector<32x128xbf16>, vector<128x256xbf16>, vector<32x256xf32> -> vector<32x256xf32>
    %56 = arith.addf %50, %55 : vector<32x256xf32>
    %c0_58 = arith.constant 0 : index
    %c0_59 = arith.constant 0 : index
    %57 = vector.load %arg7[%c0_58, %c0_59] : memref<1x256xf32, #tpu.memory_space<vmem>>, vector<1x256xf32>
    %58 = vector.broadcast %57 : vector<1x256xf32> to vector<32x256xf32>
    %59 = arith.addf %56, %58 : vector<32x256xf32>
    %cst_60 = arith.constant 0.000000e+00 : f32
    %60 = vector.broadcast %cst_60 : f32 to vector<32x256xf32>
    %61 = arith.maximumf %59, %60 : vector<32x256xf32>
    %c0_61 = arith.constant 0 : index
    %c0_62 = arith.constant 0 : index
    %62 = vector.load %arg8[%c0_61, %c0_62] : memref<64x32xbf16, #tpu.memory_space<vmem>>, vector<64x32xbf16>
    %63 = arith.truncf %61 : vector<32x256xf32> to vector<32x256xbf16>
    %cst_63 = arith.constant dense<0.000000e+00> : vector<64x256xf32>
    %64 = tpu.matmul %62, %63, %cst_63 {dimension_numbers = #tpu.dot_dimension_numbers<[1], [0], [0], [1], [0, 0, 1, 1], [], []>} : vector<64x32xbf16>, vector<32x256xbf16>, vector<64x256xf32> -> vector<64x256xf32>
    %cst_64 = arith.constant 0.000000e+00 : f32
    %65 = vector.broadcast %cst_64 : f32 to vector<1x256xf32>
    %c0_65 = arith.constant 0 : index
    %c0_66 = arith.constant 0 : index
    %66 = vector.load %arg17[%c0_65, %c0_66] : memref<66x256xf32, #tpu.memory_space<vmem>>, vector<1x256xf32>
    tpu.vector_store %arg17[%c0_65, %c0_66], %65 {strides = array<i32>} : memref<66x256xf32, #tpu.memory_space<vmem>>, vector<1x256xf32>,
    %c1_67 = arith.constant 1 : index
    %c0_68 = arith.constant 0 : index
    %67 = vector.load %arg17[%c1_67, %c0_68] : memref<66x256xf32, #tpu.memory_space<vmem>>, vector<64x256xf32>
    tpu.vector_store %arg17[%c1_67, %c0_68], %64 {strides = array<i32>} : memref<66x256xf32, #tpu.memory_space<vmem>>, vector<64x256xf32>,
    %cst_69 = arith.constant 0.000000e+00 : f32
    %68 = vector.broadcast %cst_69 : f32 to vector<1x256xf32>
    %c65 = arith.constant 65 : index
    %c0_70 = arith.constant 0 : index
    %69 = vector.load %arg17[%c65, %c0_70] : memref<66x256xf32, #tpu.memory_space<vmem>>, vector<1x256xf32>
    tpu.vector_store %arg17[%c65, %c0_70], %68 {strides = array<i32>} : memref<66x256xf32, #tpu.memory_space<vmem>>, vector<1x256xf32>,
    %c0_71 = arith.constant 0 : index
    %c0_72 = arith.constant 0 : index
    %70 = vector.load %arg17[%c0_71, %c0_72] : memref<66x256xf32, #tpu.memory_space<vmem>>, vector<64x256xf32>
    %71 = arith.truncf %70 : vector<64x256xf32> to vector<64x256xbf16>
    %c0_73 = arith.constant 0 : index
    %c0_74 = arith.constant 0 : index
    %c0_75 = arith.constant 0 : index
    %72 = vector.load %arg9[%c0_73, %c0_74, %c0_75] : memref<3x256x256xbf16, #tpu.memory_space<vmem>>, vector<1x256x256xbf16>
    %73 = vector.shape_cast %72 : vector<1x256x256xbf16> to vector<256x256xbf16>
    %cst_76 = arith.constant dense<0.000000e+00> : vector<64x256xf32>
    %74 = tpu.matmul %71, %73, %cst_76 {dimension_numbers = #tpu.dot_dimension_numbers<[1], [0], [0], [1], [0, 0, 1, 1], [], []>} : vector<64x256xbf16>, vector<256x256xbf16>, vector<64x256xf32> -> vector<64x256xf32>
    %c1_77 = arith.constant 1 : index
    %c0_78 = arith.constant 0 : index
    %75 = vector.load %arg17[%c1_77, %c0_78] : memref<66x256xf32, #tpu.memory_space<vmem>>, vector<64x256xf32>
    %76 = arith.truncf %75 : vector<64x256xf32> to vector<64x256xbf16>
    %c1_79 = arith.constant 1 : index
    %c0_80 = arith.constant 0 : index
    %c0_81 = arith.constant 0 : index
    %77 = vector.load %arg9[%c1_79, %c0_80, %c0_81] : memref<3x256x256xbf16, #tpu.memory_space<vmem>>, vector<1x256x256xbf16>
    %78 = vector.shape_cast %77 : vector<1x256x256xbf16> to vector<256x256xbf16>
    %cst_82 = arith.constant dense<0.000000e+00> : vector<64x256xf32>
    %79 = tpu.matmul %76, %78, %cst_82 {dimension_numbers = #tpu.dot_dimension_numbers<[1], [0], [0], [1], [0, 0, 1, 1], [], []>} : vector<64x256xbf16>, vector<256x256xbf16>, vector<64x256xf32> -> vector<64x256xf32>
    %80 = arith.addf %74, %79 : vector<64x256xf32>
    %c2_83 = arith.constant 2 : index
    %c0_84 = arith.constant 0 : index
    %81 = vector.load %arg17[%c2_83, %c0_84] : memref<66x256xf32, #tpu.memory_space<vmem>>, vector<64x256xf32>
    %82 = arith.truncf %81 : vector<64x256xf32> to vector<64x256xbf16>
    %c2_85 = arith.constant 2 : index
    %c0_86 = arith.constant 0 : index
    %c0_87 = arith.constant 0 : index
    %83 = vector.load %arg9[%c2_85, %c0_86, %c0_87] : memref<3x256x256xbf16, #tpu.memory_space<vmem>>, vector<1x256x256xbf16>
    %84 = vector.shape_cast %83 : vector<1x256x256xbf16> to vector<256x256xbf16>
    %cst_88 = arith.constant dense<0.000000e+00> : vector<64x256xf32>
    %85 = tpu.matmul %82, %84, %cst_88 {dimension_numbers = #tpu.dot_dimension_numbers<[1], [0], [0], [1], [0, 0, 1, 1], [], []>} : vector<64x256xbf16>, vector<256x256xbf16>, vector<64x256xf32> -> vector<64x256xf32>
    %86 = arith.addf %80, %85 : vector<64x256xf32>
    %c0_89 = arith.constant 0 : index
    %c0_90 = arith.constant 0 : index
    %87 = vector.load %arg10[%c0_89, %c0_90] : memref<1x256xf32, #tpu.memory_space<vmem>>, vector<1x256xf32>
    %88 = vector.broadcast %87 : vector<1x256xf32> to vector<64x256xf32>
    %89 = arith.addf %86, %88 : vector<64x256xf32>
    %cst_91 = arith.constant 0.000000e+00 : f32
    %90 = vector.broadcast %cst_91 : f32 to vector<64x256xf32>
    %91 = arith.maximumf %89, %90 : vector<64x256xf32>
    %c0_92 = arith.constant 0 : index
    %c0_93 = arith.constant 0 : index
    %92 = vector.load %arg11[%c0_92, %c0_93] : memref<128x64xbf16, #tpu.memory_space<vmem>>, vector<128x64xbf16>
    %93 = arith.truncf %91 : vector<64x256xf32> to vector<64x256xbf16>
    %cst_94 = arith.constant dense<0.000000e+00> : vector<128x256xf32>
    %94 = tpu.matmul %92, %93, %cst_94 {dimension_numbers = #tpu.dot_dimension_numbers<[1], [0], [0], [1], [0, 0, 1, 1], [], []>} : vector<128x64xbf16>, vector<64x256xbf16>, vector<128x256xf32> -> vector<128x256xf32>
    %cst_95 = arith.constant 0.000000e+00 : f32
    %95 = vector.broadcast %cst_95 : f32 to vector<1x256xf32>
    %c0_96 = arith.constant 0 : index
    %c0_97 = arith.constant 0 : index
    %96 = vector.load %arg18[%c0_96, %c0_97] : memref<130x256xf32, #tpu.memory_space<vmem>>, vector<1x256xf32>
    tpu.vector_store %arg18[%c0_96, %c0_97], %95 {strides = array<i32>} : memref<130x256xf32, #tpu.memory_space<vmem>>, vector<1x256xf32>,
    %c1_98 = arith.constant 1 : index
    %c0_99 = arith.constant 0 : index
    %97 = vector.load %arg18[%c1_98, %c0_99] : memref<130x256xf32, #tpu.memory_space<vmem>>, vector<128x256xf32>
    tpu.vector_store %arg18[%c1_98, %c0_99], %94 {strides = array<i32>} : memref<130x256xf32, #tpu.memory_space<vmem>>, vector<128x256xf32>,
    %cst_100 = arith.constant 0.000000e+00 : f32
    %98 = vector.broadcast %cst_100 : f32 to vector<1x256xf32>
    %c129 = arith.constant 129 : index
    %c0_101 = arith.constant 0 : index
    %99 = vector.load %arg18[%c129, %c0_101] : memref<130x256xf32, #tpu.memory_space<vmem>>, vector<1x256xf32>
    tpu.vector_store %arg18[%c129, %c0_101], %98 {strides = array<i32>} : memref<130x256xf32, #tpu.memory_space<vmem>>, vector<1x256xf32>,
    %c0_102 = arith.constant 0 : index
    %c0_103 = arith.constant 0 : index
    %100 = vector.load %arg18[%c0_102, %c0_103] : memref<130x256xf32, #tpu.memory_space<vmem>>, vector<128x256xf32>
    %101 = arith.truncf %100 : vector<128x256xf32> to vector<128x256xbf16>
    %c0_104 = arith.constant 0 : index
    %c0_105 = arith.constant 0 : index
    %c0_106 = arith.constant 0 : index
    %102 = vector.load %arg12[%c0_104, %c0_105, %c0_106] : memref<3x256x512xbf16, #tpu.memory_space<vmem>>, vector<1x256x512xbf16>
    %103 = vector.shape_cast %102 : vector<1x256x512xbf16> to vector<256x512xbf16>
    %cst_107 = arith.constant dense<0.000000e+00> : vector<128x512xf32>
    %104 = tpu.matmul %101, %103, %cst_107 {dimension_numbers = #tpu.dot_dimension_numbers<[1], [0], [0], [1], [0, 0, 1, 1], [], []>} : vector<128x256xbf16>, vector<256x512xbf16>, vector<128x512xf32> -> vector<128x512xf32>
    %c1_108 = arith.constant 1 : index
    %c0_109 = arith.constant 0 : index
    %105 = vector.load %arg18[%c1_108, %c0_109] : memref<130x256xf32, #tpu.memory_space<vmem>>, vector<128x256xf32>
    %106 = arith.truncf %105 : vector<128x256xf32> to vector<128x256xbf16>
    %c1_110 = arith.constant 1 : index
    %c0_111 = arith.constant 0 : index
    %c0_112 = arith.constant 0 : index
    %107 = vector.load %arg12[%c1_110, %c0_111, %c0_112] : memref<3x256x512xbf16, #tpu.memory_space<vmem>>, vector<1x256x512xbf16>
    %108 = vector.shape_cast %107 : vector<1x256x512xbf16> to vector<256x512xbf16>
    %cst_113 = arith.constant dense<0.000000e+00> : vector<128x512xf32>
    %109 = tpu.matmul %106, %108, %cst_113 {dimension_numbers = #tpu.dot_dimension_numbers<[1], [0], [0], [1], [0, 0, 1, 1], [], []>} : vector<128x256xbf16>, vector<256x512xbf16>, vector<128x512xf32> -> vector<128x512xf32>
    %110 = arith.addf %104, %109 : vector<128x512xf32>
    %c2_114 = arith.constant 2 : index
    %c0_115 = arith.constant 0 : index
    %111 = vector.load %arg18[%c2_114, %c0_115] : memref<130x256xf32, #tpu.memory_space<vmem>>, vector<128x256xf32>
    %112 = arith.truncf %111 : vector<128x256xf32> to vector<128x256xbf16>
    %c2_116 = arith.constant 2 : index
    %c0_117 = arith.constant 0 : index
    %c0_118 = arith.constant 0 : index
    %113 = vector.load %arg12[%c2_116, %c0_117, %c0_118] : memref<3x256x512xbf16, #tpu.memory_space<vmem>>, vector<1x256x512xbf16>
    %114 = vector.shape_cast %113 : vector<1x256x512xbf16> to vector<256x512xbf16>
    %cst_119 = arith.constant dense<0.000000e+00> : vector<128x512xf32>
    %115 = tpu.matmul %112, %114, %cst_119 {dimension_numbers = #tpu.dot_dimension_numbers<[1], [0], [0], [1], [0, 0, 1, 1], [], []>} : vector<128x256xbf16>, vector<256x512xbf16>, vector<128x512xf32> -> vector<128x512xf32>
    %116 = arith.addf %110, %115 : vector<128x512xf32>
    %c0_120 = arith.constant 0 : index
    %c0_121 = arith.constant 0 : index
    %117 = vector.load %arg13[%c0_120, %c0_121] : memref<1x512xf32, #tpu.memory_space<vmem>>, vector<1x512xf32>
    %118 = vector.broadcast %117 : vector<1x512xf32> to vector<128x512xf32>
    %119 = arith.addf %116, %118 : vector<128x512xf32>
    %cst_122 = arith.constant 0.000000e+00 : f32
    %120 = vector.broadcast %cst_122 : f32 to vector<128x512xf32>
    %121 = arith.maximumf %119, %120 : vector<128x512xf32>
    %c0_123 = arith.constant 0 : index
    %c0_124 = arith.constant 0 : index
    %c0_125 = arith.constant 0 : index
    %122 = vector.load %arg14[%c0_123, %c0_124, %c0_125] : memref<1x128x512xf32, #tpu.memory_space<vmem>>, vector<1x128x512xf32>
    %123 = vector.shape_cast %122 : vector<1x128x512xf32> to vector<128x512xf32>
    %124 = vector.shape_cast %121 : vector<128x512xf32> to vector<1x128x512xf32>
    tpu.vector_store %arg14[%c0_123, %c0_124, %c0_125], %124 {strides = array<i32>} : memref<1x128x512xf32, #tpu.memory_space<vmem>>, vector<1x128x512xf32>,
    return
  }
  func.func @transform_0(%arg0: i32) -> (i32, i32, i32) {
    %c0_i32 = arith.constant 0 : i32
    %c0_i32_0 = arith.constant 0 : i32
    %c0_i32_1 = arith.constant 0 : i32
    return %arg0, %c0_i32, %c0_i32_0 : i32, i32, i32
  }
  func.func @transform_1(%arg0: i32) -> (i32, i32) {
    %c0_i32 = arith.constant 0 : i32
    %c0_i32_0 = arith.constant 0 : i32
    %c0_i32_1 = arith.constant 0 : i32
    return %c0_i32, %c0_i32_0 : i32, i32
  }
  func.func @transform_2(%arg0: i32) -> (i32, i32, i32) {
    %c0_i32 = arith.constant 0 : i32
    %c0_i32_0 = arith.constant 0 : i32
    %c0_i32_1 = arith.constant 0 : i32
    %c0_i32_2 = arith.constant 0 : i32
    return %c0_i32, %c0_i32_0, %c0_i32_1 : i32, i32, i32
  }
  func.func @transform_3(%arg0: i32) -> (i32, i32) {
    %c0_i32 = arith.constant 0 : i32
    %c0_i32_0 = arith.constant 0 : i32
    %c0_i32_1 = arith.constant 0 : i32
    return %c0_i32, %c0_i32_0 : i32, i32
  }
  func.func @transform_4(%arg0: i32) -> (i32, i32) {
    %c0_i32 = arith.constant 0 : i32
    %c0_i32_0 = arith.constant 0 : i32
    %c0_i32_1 = arith.constant 0 : i32
    return %c0_i32, %c0_i32_0 : i32, i32
  }
  func.func @transform_5(%arg0: i32) -> (i32, i32, i32) {
    %c0_i32 = arith.constant 0 : i32
    %c0_i32_0 = arith.constant 0 : i32
    %c0_i32_1 = arith.constant 0 : i32
    %c0_i32_2 = arith.constant 0 : i32
    return %c0_i32, %c0_i32_0, %c0_i32_1 : i32, i32, i32
  }
  func.func @transform_6(%arg0: i32) -> (i32, i32) {
    %c0_i32 = arith.constant 0 : i32
    %c0_i32_0 = arith.constant 0 : i32
    %c0_i32_1 = arith.constant 0 : i32
    return %c0_i32, %c0_i32_0 : i32, i32
  }
  func.func @transform_7(%arg0: i32) -> (i32, i32) {
    %c0_i32 = arith.constant 0 : i32
    %c0_i32_0 = arith.constant 0 : i32
    %c0_i32_1 = arith.constant 0 : i32
    return %c0_i32, %c0_i32_0 : i32, i32
  }
  func.func @transform_8(%arg0: i32) -> (i32, i32, i32) {
    %c0_i32 = arith.constant 0 : i32
    %c0_i32_0 = arith.constant 0 : i32
    %c0_i32_1 = arith.constant 0 : i32
    %c0_i32_2 = arith.constant 0 : i32
    return %c0_i32, %c0_i32_0, %c0_i32_1 : i32, i32, i32
  }
  func.func @transform_9(%arg0: i32) -> (i32, i32) {
    %c0_i32 = arith.constant 0 : i32
    %c0_i32_0 = arith.constant 0 : i32
    %c0_i32_1 = arith.constant 0 : i32
    return %c0_i32, %c0_i32_0 : i32, i32
  }
  func.func @transform_10(%arg0: i32) -> (i32, i32) {
    %c0_i32 = arith.constant 0 : i32
    %c0_i32_0 = arith.constant 0 : i32
    %c0_i32_1 = arith.constant 0 : i32
    return %c0_i32, %c0_i32_0 : i32, i32
  }
  func.func @transform_11(%arg0: i32) -> (i32, i32, i32) {
    %c0_i32 = arith.constant 0 : i32
    %c0_i32_0 = arith.constant 0 : i32
    %c0_i32_1 = arith.constant 0 : i32
    %c0_i32_2 = arith.constant 0 : i32
    return %c0_i32, %c0_i32_0, %c0_i32_1 : i32, i32, i32
  }
  func.func @transform_12(%arg0: i32) -> (i32, i32) {
    %c0_i32 = arith.constant 0 : i32
    %c0_i32_0 = arith.constant 0 : i32
    %c0_i32_1 = arith.constant 0 : i32
    return %c0_i32, %c0_i32_0 : i32, i32
  }
  func.func @transform_13(%arg0: i32) -> (i32, i32, i32) {
    %c0_i32 = arith.constant 0 : i32
    %c0_i32_0 = arith.constant 0 : i32
    %c0_i32_1 = arith.constant 0 : i32
    return %arg0, %c0_i32, %c0_i32_0 : i32, i32, i32
  }
}

</mosaic_0001>

<llo_original>
// kernel: decoder_forward.1
$region0: #{decoder_forward.1}
  #allocation0 [shape = 'u32[]', space=smem, size = 0x4, offset = 0x4, fixed_abs, tag = 'smem constant byte address 0x4 - core index']
  #allocation1 [shape = 'u32[144,128]{1,0:T(1,128)}', space=vmem, size = 0x12000, scoped, tag = 'internal scratch']
  #allocation2 [shape = 'f32[18,128]{1,0:T(8,128)}', space=vmem, size = 0x3000, scoped, tag = 'scratch operand']
  #allocation3 [shape = 'f32[34,128]{1,0:T(8,128)}', space=vmem, size = 0x5000, scoped, tag = 'scratch operand']
  #allocation4 [shape = 'f32[66,256]{1,0:T(8,128)}', space=vmem, size = 0x12000, scoped, tag = 'scratch operand']
  #allocation5 [shape = 'f32[130,256]{1,0:T(8,128)}', space=vmem, size = 0x22000, scoped, tag = 'scratch operand']
  %s0 = inlined_call_operand.vmem [shape: f32[2,8,128], index: 0, kind: input, shape index: {}]
  %s1 = inlined_call_operand.vmem [shape: bf16[16,8], index: 1, kind: input, shape index: {}]
  %s2 = inlined_call_operand.vmem [shape: bf16[3,128,128], index: 2, kind: input, shape index: {}]
  %s3 = inlined_call_operand.vmem [shape: f32[1,128], index: 3, kind: input, shape index: {}]
  %s4 = inlined_call_operand.vmem [shape: bf16[32,16], index: 4, kind: input, shape index: {}]
  %s5 = inlined_call_operand.hbm [shape: bf16[3,128,256], index: 5, kind: input, shape index: {}]
  %s6 = inlined_call_operand.vmem [shape: f32[1,256], index: 6, kind: input, shape index: {}]
  %s7 = inlined_call_operand.vmem [shape: bf16[64,32], index: 7, kind: input, shape index: {}]
  %s8 = inlined_call_operand.hbm [shape: bf16[3,256,256], index: 8, kind: input, shape index: {}]
  %s9 = inlined_call_operand.vmem [shape: f32[1,256], index: 9, kind: input, shape index: {}]
  %s10 = inlined_call_operand.vmem [shape: bf16[128,64], index: 10, kind: input, shape index: {}]
  %s11 = inlined_call_operand.hbm [shape: bf16[3,256,512], index: 11, kind: input, shape index: {}]
  %s12 = inlined_call_operand.vmem [shape: f32[1,512], index: 12, kind: input, shape index: {}]
  %s13 = inlined_call_operand.vmem [shape: f32[2,128,512], index: 13, kind: output, shape index: {}]
  %s14 = sld [smem:[#allocation0]]
  $region97: #{decoder_forward.1} parent=0
    _
  %s16 = ssub.s32 1, %s14
  %s17 = scalar_select 0, %s16, %s14
  $region1: #{decoder_forward.1} parent=0
    #allocation6 [shape = 'u8[196608]{0}', space=vmem, size = 0x30000, scoped, tag = 'input window, operand 5, single buffered']
    #allocation7 [shape = 's32[2]{0}', space=sflag, size = 0x8, scoped, tag = 'scoped memory for decoder_forward.1']
    #allocation8 [shape = 'u8[393216]{0}', space=vmem, size = 0x60000, scoped, tag = 'input window, operand 8, single buffered']
    #allocation9 [shape = 's32[1]{0}', space=sflag, size = 0x4, scoped, tag = 'scoped memory for decoder_forward.1']
    #allocation10 [shape = 'u8[786432]{0}', space=vmem, size = 0xc0000, scoped, tag = 'input window, operand 11, single buffered']
    %18 = vsyncpa [#allocation7], 0
    %19 = vsyncpa [#allocation9], 0
    loop: start=0, step=1, limit=4
    $region2: #{decoder_forward.1} parent=1 // loop_pre_header
      _
    $region3: #{decoder_forward.1} parent=1 // loop_header
      %s21 = sphi 0, %s25
      %p22 = scmp.ge.s32.totalorder %s21, 4
      %s31 = sphi 0, %s33
      %s34 = sphi 0, %s31
      %s35 = sphi 0, %s34
      %s51 = sphi 0, %s35
      %s55 = sphi 0, %s55
      %s57 = sphi 0, %s55
      %s58 = sphi 0, %s57
      %s72 = sphi 0, %s58
      %s76 = sphi 0, %s76
      %s78 = sphi 0, %s76
      %s79 = sphi 0, %s78
      %s93 = sphi 0, %s79
      %s97 = sphi 0, %s97
      %s99 = sphi 0, %s97
      %s100 = sphi 0, %s99
      %s114 = sphi 0, %s100
      %s118 = sphi 0, %s118
      %s120 = sphi 0, %s118
      %s121 = sphi 0, %s120
      %s135 = sphi 0, %s121
      %s139 = sphi 0, %s139
      %s141 = sphi 0, %s139
      %s142 = sphi 0, %s141
      %s156 = sphi 0, %s142
      %s160 = sphi 0, %s160
      %s162 = sphi 0, %s160
      %s163 = sphi 0, %s162
      %s177 = sphi 0, %s163
      %s181 = sphi 0, %s181
      %s183 = sphi 0, %s181
      %s184 = sphi 0, %s183
      %s198 = sphi 0, %s184
      %s202 = sphi 0, %s202
      %s204 = sphi 0, %s202
      %s205 = sphi 0, %s204
      %s219 = sphi 0, %s205
      %s223 = sphi 0, %s223
      %s225 = sphi 0, %s223
      %s226 = sphi 0, %s225
      %s240 = sphi 0, %s226
      %s244 = sphi 0, %s244
      %s246 = sphi 0, %s244
      %s247 = sphi 0, %s246
      %s261 = sphi 0, %s247
      %s265 = sphi 0, %s265
      %s267 = sphi 0, %s265
      %s268 = sphi 0, %s267
      %s282 = sphi 0, %s268
      %s286 = sphi 0, %s286
      %s288 = sphi 0, %s286
      %s289 = sphi 0, %s288
      %s303 = sphi 0, %s289
      %s309 = sphi 0, %s311
      %s312 = sphi 0, %s309
      %s313 = sphi 0, %s312
      %s329 = sphi 0, %s313
    $region4: #{decoder_forward.1} parent=1 // loop_header_branch
      %24 = sbr.rel (%p22) target = $region8
    $region5: #{decoder_forward.1} parent=1 // loop_body
      %s26 = ssub.s32 %s21, 1
      %s27 = ssub.s32 %s21, 2
      %s28 = sadd.s32 %s21, 1
      %s29 = ssub.s32 %s21, %s28
      %p30 = scmp.eq.s32.totalorder %s29, 0
      %s32 = sadd.s32 %s31, 1
      %s33 = scalar_select %p30, %s31, %s32
      %p36 = pneg %p30
      %p37 = scmp.eq.s32.totalorder %s21, 1
      %p38 = por %p36, %p37
      %p39 = scmp.ne.s32.totalorder %s31, %s34
      %p40 = scmp.eq.s32.totalorder %s21, 0
      %p41 = por %p39, %p40
      %p42 = scmp.ne.s32.totalorder %s31, %s34
      %p43 = scmp.eq.s32.totalorder %s26, 1
      %p44 = por %p42, %p43
      %p45 = scmp.ne.s32.totalorder %s34, %s35
      %p46 = scmp.eq.s32.totalorder %s26, 0
      %p47 = por %p45, %p46
      %p48 = scmp.ne.s32.totalorder %s34, %s35
      %p49 = scmp.eq.s32.totalorder %s27, 1
      %p50 = por %p48, %p49
      %p52 = scmp.ne.s32.totalorder %s35, %s51
      %p53 = scmp.eq.s32.totalorder %s27, 0
      %p54 = por %p52, %p53
      %s56 = sadd.s32 %s55, 1
      %p59 = scmp.eq.s32.totalorder %s21, 1
      %p60 = scmp.ne.s32.totalorder %s55, %s57
      %p61 = scmp.eq.s32.totalorder %s21, 0
      %p62 = por %p60, %p61
      %p63 = scmp.ne.s32.totalorder %s55, %s57
      %p64 = scmp.eq.s32.totalorder %s26, 1
      %p65 = por %p63, %p64
      %p66 = scmp.ne.s32.totalorder %s57, %s58
      %p67 = scmp.eq.s32.totalorder %s26, 0
      %p68 = por %p66, %p67
      %p69 = scmp.ne.s32.totalorder %s57, %s58
      %p70 = scmp.eq.s32.totalorder %s27, 1
      %p71 = por %p69, %p70
      %p73 = scmp.ne.s32.totalorder %s58, %s72
      %p74 = scmp.eq.s32.totalorder %s27, 0
      %p75 = por %p73, %p74
      %s77 = sadd.s32 %s76, 1
      %p80 = scmp.eq.s32.totalorder %s21, 1
      %p81 = scmp.ne.s32.totalorder %s76, %s78
      %p82 = scmp.eq.s32.totalorder %s21, 0
      %p83 = por %p81, %p82
      %p84 = scmp.ne.s32.totalorder %s76, %s78
      %p85 = scmp.eq.s32.totalorder %s26, 1
      %p86 = por %p84, %p85
      %p87 = scmp.ne.s32.totalorder %s78, %s79
      %p88 = scmp.eq.s32.totalorder %s26, 0
      %p89 = por %p87, %p88
      %p90 = scmp.ne.s32.totalorder %s78, %s79
      %p91 = scmp.eq.s32.totalorder %s27, 1
      %p92 = por %p90, %p91
      %p94 = scmp.ne.s32.totalorder %s79, %s93
      %p95 = scmp.eq.s32.totalorder %s27, 0
      %p96 = por %p94, %p95
      %s98 = sadd.s32 %s97, 1
      %p101 = scmp.eq.s32.totalorder %s21, 1
      %p102 = scmp.ne.s32.totalorder %s97, %s99
      %p103 = scmp.eq.s32.totalorder %s21, 0
      %p104 = por %p102, %p103
      %p105 = scmp.ne.s32.totalorder %s97, %s99
      %p106 = scmp.eq.s32.totalorder %s26, 1
      %p107 = por %p105, %p106
      %p108 = scmp.ne.s32.totalorder %s99, %s100
      %p109 = scmp.eq.s32.totalorder %s26, 0
      %p110 = por %p108, %p109
      %p111 = scmp.ne.s32.totalorder %s99, %s100
      %p112 = scmp.eq.s32.totalorder %s27, 1
      %p113 = por %p111, %p112
      %p115 = scmp.ne.s32.totalorder %s100, %s114
      %p116 = scmp.eq.s32.totalorder %s27, 0
      %p117 = por %p115, %p116
      %s119 = sadd.s32 %s118, 1
      %p122 = scmp.eq.s32.totalorder %s21, 1
      %p123 = scmp.ne.s32.totalorder %s118, %s120
      %p124 = scmp.eq.s32.totalorder %s21, 0
      %p125 = por %p123, %p124
      %p126 = scmp.ne.s32.totalorder %s118, %s120
      %p127 = scmp.eq.s32.totalorder %s26, 1
      %p128 = por %p126, %p127
      %p129 = scmp.ne.s32.totalorder %s120, %s121
      %p130 = scmp.eq.s32.totalorder %s26, 0
      %p131 = por %p129, %p130
      %p132 = scmp.ne.s32.totalorder %s120, %s121
      %p133 = scmp.eq.s32.totalorder %s27, 1
      %p134 = por %p132, %p133
      %p136 = scmp.ne.s32.totalorder %s121, %s135
      %p137 = scmp.eq.s32.totalorder %s27, 0
      %p138 = por %p136, %p137
      %s140 = sadd.s32 %s139, 1
      %p143 = scmp.eq.s32.totalorder %s21, 1
      %p144 = scmp.ne.s32.totalorder %s139, %s141
      %p145 = scmp.eq.s32.totalorder %s21, 0
      %p146 = por %p144, %p145
      %p147 = scmp.ne.s32.totalorder %s139, %s141
      %p148 = scmp.eq.s32.totalorder %s26, 1
      %p149 = por %p147, %p148
      %p150 = scmp.ne.s32.totalorder %s141, %s142
      %p151 = scmp.eq.s32.totalorder %s26, 0
      %p152 = por %p150, %p151
      %p153 = scmp.ne.s32.totalorder %s141, %s142
      %p154 = scmp.eq.s32.totalorder %s27, 1
      %p155 = por %p153, %p154
      %p157 = scmp.ne.s32.totalorder %s142, %s156
      %p158 = scmp.eq.s32.totalorder %s27, 0
      %p159 = por %p157, %p158
      %s161 = sadd.s32 %s160, 1
      %p164 = scmp.eq.s32.totalorder %s21, 1
      %p165 = scmp.ne.s32.totalorder %s160, %s162
      %p166 = scmp.eq.s32.totalorder %s21, 0
      %p167 = por %p165, %p166
      %p168 = scmp.ne.s32.totalorder %s160, %s162
      %p169 = scmp.eq.s32.totalorder %s26, 1
      %p170 = por %p168, %p169
      %p171 = scmp.ne.s32.totalorder %s162, %s163
      %p172 = scmp.eq.s32.totalorder %s26, 0
      %p173 = por %p171, %p172
      %p174 = scmp.ne.s32.totalorder %s162, %s163
      %p175 = scmp.eq.s32.totalorder %s27, 1
      %p176 = por %p174, %p175
      %p178 = scmp.ne.s32.totalorder %s163, %s177
      %p179 = scmp.eq.s32.totalorder %s27, 0
      %p180 = por %p178, %p179
      %s182 = sadd.s32 %s181, 1
      %p185 = scmp.eq.s32.totalorder %s21, 1
      %p186 = scmp.ne.s32.totalorder %s181, %s183
      %p187 = scmp.eq.s32.totalorder %s21, 0
      %p188 = por %p186, %p187
      %p189 = scmp.ne.s32.totalorder %s181, %s183
      %p190 = scmp.eq.s32.totalorder %s26, 1
      %p191 = por %p189, %p190
      %p192 = scmp.ne.s32.totalorder %s183, %s184
      %p193 = scmp.eq.s32.totalorder %s26, 0
      %p194 = por %p192, %p193
      %p195 = scmp.ne.s32.totalorder %s183, %s184
      %p196 = scmp.eq.s32.totalorder %s27, 1
      %p197 = por %p195, %p196
      %p199 = scmp.ne.s32.totalorder %s184, %s198
      %p200 = scmp.eq.s32.totalorder %s27, 0
      %p201 = por %p199, %p200
      %s203 = sadd.s32 %s202, 1
      %p206 = scmp.eq.s32.totalorder %s21, 1
      %p207 = scmp.ne.s32.totalorder %s202, %s204
      %p208 = scmp.eq.s32.totalorder %s21, 0
      %p209 = por %p207, %p208
      %p210 = scmp.ne.s32.totalorder %s202, %s204
      %p211 = scmp.eq.s32.totalorder %s26, 1
      %p212 = por %p210, %p211
      %p213 = scmp.ne.s32.totalorder %s204, %s205
      %p214 = scmp.eq.s32.totalorder %s26, 0
      %p215 = por %p213, %p214
      %p216 = scmp.ne.s32.totalorder %s204, %s205
      %p217 = scmp.eq.s32.totalorder %s27, 1
      %p218 = por %p216, %p217
      %p220 = scmp.ne.s32.totalorder %s205, %s219
      %p221 = scmp.eq.s32.totalorder %s27, 0
      %p222 = por %p220, %p221
      %s224 = sadd.s32 %s223, 1
      %p227 = scmp.eq.s32.totalorder %s21, 1
      %p228 = scmp.ne.s32.totalorder %s223, %s225
      %p229 = scmp.eq.s32.totalorder %s21, 0
      %p230 = por %p228, %p229
      %p231 = scmp.ne.s32.totalorder %s223, %s225
      %p232 = scmp.eq.s32.totalorder %s26, 1
      %p233 = por %p231, %p232
      %p234 = scmp.ne.s32.totalorder %s225, %s226
      %p235 = scmp.eq.s32.totalorder %s26, 0
      %p236 = por %p234, %p235
      %p237 = scmp.ne.s32.totalorder %s225, %s226
      %p238 = scmp.eq.s32.totalorder %s27, 1
      %p239 = por %p237, %p238
      %p241 = scmp.ne.s32.totalorder %s226, %s240
      %p242 = scmp.eq.s32.totalorder %s27, 0
      %p243 = por %p241, %p242
      %s245 = sadd.s32 %s244, 1
      %p248 = scmp.eq.s32.totalorder %s21, 1
      %p249 = scmp.ne.s32.totalorder %s244, %s246
      %p250 = scmp.eq.s32.totalorder %s21, 0
      %p251 = por %p249, %p250
      %p252 = scmp.ne.s32.totalorder %s244, %s246
      %p253 = scmp.eq.s32.totalorder %s26, 1
      %p254 = por %p252, %p253
      %p255 = scmp.ne.s32.totalorder %s246, %s247
      %p256 = scmp.eq.s32.totalorder %s26, 0
      %p257 = por %p255, %p256
      %p258 = scmp.ne.s32.totalorder %s246, %s247
      %p259 = scmp.eq.s32.totalorder %s27, 1
      %p260 = por %p258, %p259
      %p262 = scmp.ne.s32.totalorder %s247, %s261
      %p263 = scmp.eq.s32.totalorder %s27, 0
      %p264 = por %p262, %p263
      %s266 = sadd.s32 %s265, 1
      %p269 = scmp.eq.s32.totalorder %s21, 1
      %p270 = scmp.ne.s32.totalorder %s265, %s267
      %p271 = scmp.eq.s32.totalorder %s21, 0
      %p272 = por %p270, %p271
      %p273 = scmp.ne.s32.totalorder %s265, %s267
      %p274 = scmp.eq.s32.totalorder %s26, 1
      %p275 = por %p273, %p274
      %p276 = scmp.ne.s32.totalorder %s267, %s268
      %p277 = scmp.eq.s32.totalorder %s26, 0
      %p278 = por %p276, %p277
      %p279 = scmp.ne.s32.totalorder %s267, %s268
      %p280 = scmp.eq.s32.totalorder %s27, 1
      %p281 = por %p279, %p280
      %p283 = scmp.ne.s32.totalorder %s268, %s282
      %p284 = scmp.eq.s32.totalorder %s27, 0
      %p285 = por %p283, %p284
      %s287 = sadd.s32 %s286, 1
      %p290 = scmp.eq.s32.totalorder %s21, 1
      %p291 = scmp.ne.s32.totalorder %s286, %s288
      %p292 = scmp.eq.s32.totalorder %s21, 0
      %p293 = por %p291, %p292
      %p294 = scmp.ne.s32.totalorder %s286, %s288
      %p295 = scmp.eq.s32.totalorder %s26, 1
      %p296 = por %p294, %p295
      %p297 = scmp.ne.s32.totalorder %s288, %s289
      %p298 = scmp.eq.s32.totalorder %s26, 0
      %p299 = por %p297, %p298
      %p300 = scmp.ne.s32.totalorder %s288, %s289
      %p301 = scmp.eq.s32.totalorder %s27, 1
      %p302 = por %p300, %p301
      %p304 = scmp.ne.s32.totalorder %s289, %s303
      %p305 = scmp.eq.s32.totalorder %s27, 0
      %p306 = por %p304, %p305
      %s307 = ssub.s32 %s21, %s28
      %p308 = scmp.eq.s32.totalorder %s307, 0
      %s310 = sadd.s32 %s309, 1
      %s311 = scalar_select %p308, %s309, %s310
      %p314 = pneg %p308
      %p315 = scmp.eq.s32.totalorder %s21, 1
      %p316 = por %p314, %p315
      %p317 = scmp.ne.s32.totalorder %s309, %s312
      %p318 = scmp.eq.s32.totalorder %s21, 0
      %p319 = por %p317, %p318
      %p320 = scmp.ne.s32.totalorder %s309, %s312
      %p321 = scmp.eq.s32.totalorder %s26, 1
      %p322 = por %p320, %p321
      %p323 = scmp.ne.s32.totalorder %s312, %s313
      %p324 = scmp.eq.s32.totalorder %s26, 0
      %p325 = por %p323, %p324
      %p326 = scmp.ne.s32.totalorder %s312, %s313
      %p327 = scmp.eq.s32.totalorder %s27, 1
      %p328 = por %p326, %p327
      %p330 = scmp.ne.s32.totalorder %s313, %s329
      %p331 = scmp.eq.s32.totalorder %s27, 0
      %p332 = por %p330, %p331
      %p333 = scmp.le.s32.totalorder 1, %s21
      %p334 = scmp.lt.s32.totalorder %s21, 3
      %p335 = pnand %p333, %p334
      %p336 = pneg %p335
      // Predicated region
      $region9: #{decoder_forward.1} parent=5 // pred_check
        _
      $region10: #{decoder_forward.1} parent=5 // pred_check_branch
        %338 = sbr.rel (%p335) target = $region12
      $region11: #{decoder_forward.1} parent=5 // pred_region
        %s339 = ssub.s32 %s21, 1
        // Predicated region
        $region13: #{decoder_forward.1} parent=11 // pred_check
          %p340 = pneg %p68
        $region14: #{decoder_forward.1} parent=11 // pred_check_branch
          %342 = sbr.rel (%p340) target = $region16
        $region15: #{decoder_forward.1} parent=11 // pred_region
          _
        $region16: #{decoder_forward.1} parent=11 // pred_fallthru
          _
        // Predicated region
        $region17: #{decoder_forward.1} parent=11 // pred_check
          %p343 = pneg %p89
        $region18: #{decoder_forward.1} parent=11 // pred_check_branch
          %345 = sbr.rel (%p343) target = $region20
        $region19: #{decoder_forward.1} parent=11 // pred_region
          _
        $region20: #{decoder_forward.1} parent=11 // pred_fallthru
          _
        // Predicated region
        $region21: #{decoder_forward.1} parent=11 // pred_check
          %p346 = pneg %p110
        $region22: #{decoder_forward.1} parent=11 // pred_check_branch
          %348 = sbr.rel (%p346) target = $region24
        $region23: #{decoder_forward.1} parent=11 // pred_region
          _
        $region24: #{decoder_forward.1} parent=11 // pred_fallthru
          _
        // Predicated region
        $region25: #{decoder_forward.1} parent=11 // pred_check
          %p349 = pneg %p131
        $region26: #{decoder_forward.1} parent=11 // pred_check_branch
          %351 = sbr.rel (%p349) target = $region28
        $region27: #{decoder_forward.1} parent=11 // pred_region
          _
        $region28: #{decoder_forward.1} parent=11 // pred_fallthru
          _
        // Predicated region
        $region29: #{decoder_forward.1} parent=11 // pred_check
          %p352 = pneg %p152
        $region30: #{decoder_forward.1} parent=11 // pred_check_branch
          %354 = sbr.rel (%p352) target = $region32
        $region31: #{decoder_forward.1} parent=11 // pred_region
          %s356 = ssub.s32 6144, 6144
          %357 = vsyncadd [#allocation7], %s356
          %s358 = sshll.u32 [#allocation6], 4
          %s359 = int_to_ptr.vmem [resolvable:$true] %s358
          %364 = dma.hbm_to_vmem [thread:$0]  %s5, 6144, %s359, [#allocation7], 128, 128, 8
        $region32: #{decoder_forward.1} parent=11 // pred_fallthru
          _
        // Predicated region
        $region33: #{decoder_forward.1} parent=11 // pred_check
          %p365 = pneg %p173
        $region34: #{decoder_forward.1} parent=11 // pred_check_branch
          %367 = sbr.rel (%p365) target = $region36
        $region35: #{decoder_forward.1} parent=11 // pred_region
          _
        $region36: #{decoder_forward.1} parent=11 // pred_fallthru
          _
        // Predicated region
        $region37: #{decoder_forward.1} parent=11 // pred_check
          %p368 = pneg %p194
        $region38: #{decoder_forward.1} parent=11 // pred_check_branch
          %370 = sbr.rel (%p368) target = $region40
        $region39: #{decoder_forward.1} parent=11 // pred_region
          _
        $region40: #{decoder_forward.1} parent=11 // pred_fallthru
          _
        // Predicated region
        $region41: #{decoder_forward.1} parent=11 // pred_check
          %p371 = pneg %p215
        $region42: #{decoder_forward.1} parent=11 // pred_check_branch
          %373 = sbr.rel (%p371) target = $region44
        $region43: #{decoder_forward.1} parent=11 // pred_region
          %s375 = ssub.s32 12288, 12288
          %376 = vsyncadd [#allocation9], %s375
          %s377 = sshll.u32 [#allocation8], 4
          %s378 = int_to_ptr.vmem [resolvable:$true] %s377
          %383 = dma.hbm_to_vmem [thread:$0]  %s8, 12288, %s378, [#allocation9], 128, 128, 8
        $region44: #{decoder_forward.1} parent=11 // pred_fallthru
          _
        // Predicated region
        $region45: #{decoder_forward.1} parent=11 // pred_check
          %p384 = pneg %p236
        $region46: #{decoder_forward.1} parent=11 // pred_check_branch
          %386 = sbr.rel (%p384) target = $region48
        $region47: #{decoder_forward.1} parent=11 // pred_region
          _
        $region48: #{decoder_forward.1} parent=11 // pred_fallthru
          _
        // Predicated region
        $region49: #{decoder_forward.1} parent=11 // pred_check
          %p387 = pneg %p257
        $region50: #{decoder_forward.1} parent=11 // pred_check_branch
          %389 = sbr.rel (%p387) target = $region52
        $region51: #{decoder_forward.1} parent=11 // pred_region
          _
        $region52: #{decoder_forward.1} parent=11 // pred_fallthru
          _
        // Predicated region
        $region53: #{decoder_forward.1} parent=11 // pred_check
          %p390 = pneg %p278
        $region54: #{decoder_forward.1} parent=11 // pred_check_branch
          %392 = sbr.rel (%p390) target = $region56
        $region55: #{decoder_forward.1} parent=11 // pred_region
          %s394 = ssub.s32 24576, 24576
          %395 = vsyncadd [#allocation9], %s394
          %s396 = sshll.u32 [#allocation10], 4
          %s397 = int_to_ptr.vmem [resolvable:$true] %s396
          %402 = dma.hbm_to_vmem [thread:$0]  %s11, 24576, %s397, [#allocation9], 256, 256, 16
        $region56: #{decoder_forward.1} parent=11 // pred_fallthru
          _
        // Predicated region
        $region57: #{decoder_forward.1} parent=11 // pred_check
          %p403 = pneg %p299
        $region58: #{decoder_forward.1} parent=11 // pred_check_branch
          %405 = sbr.rel (%p403) target = $region60
        $region59: #{decoder_forward.1} parent=11 // pred_region
          _
        $region60: #{decoder_forward.1} parent=11 // pred_fallthru
          _
      $region12: #{decoder_forward.1} parent=5 // pred_fallthru
        _
      %p406 = scmp.lt.s32.totalorder %s21, 2
      // Predicated region
      $region61: #{decoder_forward.1} parent=5 // pred_check
        %p407 = pneg %p406
      $region62: #{decoder_forward.1} parent=5 // pred_check_branch
        %409 = sbr.rel (%p407) target = $region64
      $region63: #{decoder_forward.1} parent=5 // pred_region
        // Predicated region
        $region65: #{decoder_forward.1} parent=63 // pred_check
          %p410 = pneg %p41
        $region66: #{decoder_forward.1} parent=63 // pred_check_branch
          %412 = sbr.rel (%p410) target = $region68
        $region67: #{decoder_forward.1} parent=63 // pred_region
          %p413 = scmp.lt.s32.totalorder %s21, 1
          %s414 = scalar_select %p413, %s21, 1
          %s415 = smul.addr %s414, 8
          %s416 = scalar_lea.vmem %s0, %s415
        $region68: #{decoder_forward.1} parent=63 // pred_fallthru
          _
      $region64: #{decoder_forward.1} parent=5 // pred_fallthru
        _
      %p417 = scmp.le.s32.totalorder 1, %s21
      %p418 = scmp.lt.s32.totalorder %s21, 3
      %p419 = pnand %p417, %p418
      %p420 = pneg %p419
      // Predicated region
      $region69: #{decoder_forward.1} parent=5 // pred_check
        _
      $region70: #{decoder_forward.1} parent=5 // pred_check_branch
        %422 = sbr.rel (%p419) target = $region72
      $region71: #{decoder_forward.1} parent=5 // pred_region
        %s423 = ssub.s32 %s21, 1
        // Predicated region
        $region73: #{decoder_forward.1} parent=71 // pred_check
          %p424 = pneg %p152
        $region74: #{decoder_forward.1} parent=71 // pred_check_branch
          %426 = sbr.rel (%p424) target = $region76
        $region75: #{decoder_forward.1} parent=71 // pred_region
          %427 = dma.done [#allocation7], 6144
        $region76: #{decoder_forward.1} parent=71 // pred_fallthru
          _
        // Predicated region
        $region77: #{decoder_forward.1} parent=71 // pred_check
          %p428 = pneg %p215
        $region78: #{decoder_forward.1} parent=71 // pred_check_branch
          %430 = sbr.rel (%p428) target = $region80
        $region79: #{decoder_forward.1} parent=71 // pred_region
          %431 = dma.done [#allocation9], 12288
        $region80: #{decoder_forward.1} parent=71 // pred_fallthru
          _
        // Predicated region
        $region81: #{decoder_forward.1} parent=71 // pred_check
          %p432 = pneg %p278
        $region82: #{decoder_forward.1} parent=71 // pred_check_branch
          %434 = sbr.rel (%p432) target = $region84
        $region83: #{decoder_forward.1} parent=71 // pred_region
          %435 = dma.done [#allocation9], 24576
        $region84: #{decoder_forward.1} parent=71 // pred_fallthru
          _
        %p436 = scmp.lt.s32.totalorder %s26, 1
        %s437 = scalar_select %p436, %s26, 1
        %s438 = smul.addr %s437, 8
        %s439 = scalar_lea.vmem %s0, %s438
        %p440 = pneg %p47
        %p441 = pneg %p44
        %p442 = pneg %p68
        %p443 = pneg %p65
        %p444 = pneg %p89
        %p445 = pneg %p86
        %p446 = pneg %p110
        %p447 = pneg %p107
        %p448 = pneg %p131
        %p449 = pneg %p128
        %p450 = pneg %p152
        %p451 = pneg %p149
        %p452 = pneg %p173
        %p453 = pneg %p170
        %p454 = pneg %p194
        %p455 = pneg %p191
        %p456 = pneg %p215
        %p457 = pneg %p212
        %p458 = pneg %p236
        %p459 = pneg %p233
        %p460 = pneg %p257
        %p461 = pneg %p254
        %p462 = pneg %p278
        %p463 = pneg %p275
        %p464 = pneg %p299
        %p465 = pneg %p296
        %p466 = pneg %p325
        %p467 = pneg %p322
        %p468 = scmp.lt.s32.totalorder %s26, 1
        %s469 = scalar_select %p468, %s26, 1
        %s470 = smul.addr %s469, 64
        %s471 = smul.addr %s470, 8
        %s472 = scalar_lea.vmem %s13, %s471
        %p473 = scmp.lt.s32.totalorder %s26, 1
        %s474 = scalar_select %p473, %s26, 1
        %s475 = smul.addr %s474, 8
        %s476 = scalar_lea.vmem %s0, %s475
        %p477 = scmp.lt.s32.totalorder %s26, 1
        %s478 = scalar_select %p477, %s26, 1
        %s479 = smul.addr %s478, 64
        %s480 = smul.addr %s479, 8
        %s481 = scalar_lea.vmem %s13, %s480
        %v483 = vld [vmem:[%s476] sm:$0xff]
        %v484 = vld [vmem:[%s1] sm:$0xf]
        %v485 = vld [vmem:[%s1 + $0x4] sm:$0xf]
        %v486 = vpack.c.bf16 %v483, %v483
        %v489 = vunpack.c.l.b16 %v484
        %v490 = vunpack.c.l.b16 %v485
        %v491 = vpack.c.b16 %v490, %v489
        %vm492 = vcmask 64512
        %v494 = vsel %vm492, %v491, 0
        %vm496 = vcmask 1043456
        %v498 = vsel %vm496, %v486, 0
        %500 = vmatprep.subr.bf16.mxu0 0
        %501 = vmatpush1.bf16.msra.mxu0 %v498
        %502 = vmatprep.subr.bf16.mxu0 0
        %503 = vmatpush1.bf16.msra.mxu0 0
        %504 = vmatprep.subr.bf16.mxu0 0
        %505 = vmatpush1.bf16.msra.mxu0 0
        %506 = vmatprep.subr.bf16.mxu0 0
        %507 = vmatpush1.bf16.msra.mxu0 0
        %508 = vmatprep.subr.bf16.mxu0 0
        %509 = vmatpush1.bf16.msra.mxu0 0
        %510 = vmatprep.subr.bf16.mxu0 0
        %511 = vmatpush1.bf16.msra.mxu0 0
        %512 = vmatprep.subr.bf16.mxu0 0
        %513 = vmatpush1.bf16.msra.mxu0 0
        %514 = vmatprep.subr.bf16.mxu0 0
        %515 = vmatpush1.bf16.msra.mxu0 0
        %516 = vmatprep.subr.bf16.mxu0 0
        %517 = vmatpush1.bf16.msra.mxu0 0
        %518 = vmatprep.subr.bf16.mxu0 0
        %519 = vmatpush1.bf16.msra.mxu0 0
        %520 = vmatprep.subr.bf16.mxu0 0
        %521 = vmatpush1.bf16.msra.mxu0 0
        %522 = vmatprep.subr.bf16.mxu0 0
        %523 = vmatpush1.bf16.msra.mxu0 0
        %524 = vmatprep.subr.bf16.mxu0 0
        %525 = vmatpush1.bf16.msra.mxu0 0
        %526 = vmatprep.subr.bf16.mxu0 0
        %527 = vmatpush1.bf16.msra.mxu0 0
        %528 = vmatprep.subr.bf16.mxu0 0
        %529 = vmatpush1.bf16.msra.mxu0 0
        %530 = vmatprep.subr.bf16.mxu0 0
        %531 = vmatpush1.bf16.msra.mxu0 0
        %532 = vmatprep.mubr.bf16.mxu0 0
        %533 = vmatmul.mubr.bf16.gmra.mrb[0].mxu0 %v494
        %v534 = vpop.f32.mrb[0].mxu0
        %v535 = vadd.f32 0.0, %v534
        %v536 = vpop.f32.mrb[0].mxu0
        %v537 = vpop.f32.mrb[0].mxu0
        %v538 = vadd.f32 0.0, %v537
        %v539 = vpop.f32.mrb[0].mxu0
        %540 = vdwg.mxu0
        %541 = vst [vmem:[#allocation2] sm:$0x1] 0.0
        %542 = vst [vmem:[#allocation2 + $0x1] sm:$0xff] %v535
        %543 = vst [vmem:[#allocation2 + $0x9] sm:$0xff] %v538
        %544 = vst [vmem:[#allocation2 + $0x11] sm:$0x1] 0.0
        %v545 = vld [vmem:[#allocation2] sm:$0xff]
        %v546 = vld [vmem:[#allocation2 + $0x8] sm:$0xff]
        %v547 = vpack.c.bf16 %v546, %v545
        %v548 = vld [vmem:[%s2] sm:$0xf]
        %v549 = vld [vmem:[%s2 + $0x4] sm:$0xf]
        %v550 = vld [vmem:[%s2 + $0x8] sm:$0xf]
        %v551 = vld [vmem:[%s2 + $0xc] sm:$0xf]
        %v552 = vld [vmem:[%s2 + $0x10] sm:$0xf]
        %v553 = vld [vmem:[%s2 + $0x14] sm:$0xf]
        %v554 = vld [vmem:[%s2 + $0x18] sm:$0xf]
        %v555 = vld [vmem:[%s2 + $0x1c] sm:$0xf]
        %v556 = vld [vmem:[%s2 + $0x20] sm:$0xf]
        %v557 = vld [vmem:[%s2 + $0x24] sm:$0xf]
        %v558 = vld [vmem:[%s2 + $0x28] sm:$0xf]
        %v559 = vld [vmem:[%s2 + $0x2c] sm:$0xf]
        %v560 = vld [vmem:[%s2 + $0x30] sm:$0xf]
        %v561 = vld [vmem:[%s2 + $0x34] sm:$0xf]
        %v562 = vld [vmem:[%s2 + $0x38] sm:$0xf]
        %v563 = vld [vmem:[%s2 + $0x3c] sm:$0xf]
        %v564 = vld [vmem:[#allocation2 + $0x1] sm:$0xff]
        %v565 = vld [vmem:[#allocation2 + $0x9] sm:$0xff]
        %v566 = vpack.c.bf16 %v565, %v564
        %s567 = scalar_lea.vmem %s2, 64
        %v568 = vld [vmem:[%s567] sm:$0xf]
        %v569 = vld [vmem:[%s567 + $0x4] sm:$0xf]
        %v570 = vld [vmem:[%s567 + $0x8] sm:$0xf]
        %v571 = vld [vmem:[%s567 + $0xc] sm:$0xf]
        %v572 = vld [vmem:[%s567 + $0x10] sm:$0xf]
        %v573 = vld [vmem:[%s567 + $0x14] sm:$0xf]
        %v574 = vld [vmem:[%s567 + $0x18] sm:$0xf]
        %v575 = vld [vmem:[%s567 + $0x1c] sm:$0xf]
        %v576 = vld [vmem:[%s567 + $0x20] sm:$0xf]
        %v577 = vld [vmem:[%s567 + $0x24] sm:$0xf]
        %v578 = vld [vmem:[%s567 + $0x28] sm:$0xf]
        %v579 = vld [vmem:[%s567 + $0x2c] sm:$0xf]
        %v580 = vld [vmem:[%s567 + $0x30] sm:$0xf]
        %v581 = vld [vmem:[%s567 + $0x34] sm:$0xf]
        %v582 = vld [vmem:[%s567 + $0x38] sm:$0xf]
        %v583 = vld [vmem:[%s567 + $0x3c] sm:$0xf]
        %v600 = vunpack.c.l.b16 %v568
        %v601 = vunpack.c.l.b16 %v569
        %v602 = vunpack.c.l.b16 %v570
        %v603 = vunpack.c.l.b16 %v571
        %v604 = vunpack.c.l.b16 %v572
        %v605 = vunpack.c.l.b16 %v573
        %v606 = vunpack.c.l.b16 %v574
        %v607 = vunpack.c.l.b16 %v575
        %v608 = vunpack.c.l.b16 %v576
        %v609 = vunpack.c.l.b16 %v577
        %v610 = vunpack.c.l.b16 %v578
        %v611 = vunpack.c.l.b16 %v579
        %v612 = vunpack.c.l.b16 %v580
        %v613 = vunpack.c.l.b16 %v581
        %v614 = vunpack.c.l.b16 %v582
        %v615 = vunpack.c.l.b16 %v583
        %v616 = vpack.c.b16 %v601, %v600
        %v617 = vpack.c.b16 %v603, %v602
        %v618 = vpack.c.b16 %v605, %v604
        %v619 = vpack.c.b16 %v607, %v606
        %v620 = vpack.c.b16 %v609, %v608
        %v621 = vpack.c.b16 %v611, %v610
        %v622 = vpack.c.b16 %v613, %v612
        %v623 = vpack.c.b16 %v615, %v614
        %632 = vmatprep.subr.bf16.mxu0 0
        %633 = vmatpush1.bf16.msra.mxu0 %v616
        %634 = vmatprep.subr.bf16.mxu0 0
        %635 = vmatpush1.bf16.msra.mxu0 %v617
        %636 = vmatprep.subr.bf16.mxu0 0
        %637 = vmatpush1.bf16.msra.mxu0 %v618
        %638 = vmatprep.subr.bf16.mxu0 0
        %639 = vmatpush1.bf16.msra.mxu0 %v619
        %640 = vmatprep.subr.bf16.mxu0 0
        %641 = vmatpush1.bf16.msra.mxu0 %v620
        %642 = vmatprep.subr.bf16.mxu0 0
        %643 = vmatpush1.bf16.msra.mxu0 %v621
        %644 = vmatprep.subr.bf16.mxu0 0
        %645 = vmatpush1.bf16.msra.mxu0 %v622
        %646 = vmatprep.subr.bf16.mxu0 0
        %647 = vmatpush1.bf16.msra.mxu0 %v623
        %648 = vmatprep.subr.bf16.mxu0 0
        %649 = vmatpush1.bf16.msra.mxu0 0
        %650 = vmatprep.subr.bf16.mxu0 0
        %651 = vmatpush1.bf16.msra.mxu0 0
        %652 = vmatprep.subr.bf16.mxu0 0
        %653 = vmatpush1.bf16.msra.mxu0 0
        %654 = vmatprep.subr.bf16.mxu0 0
        %655 = vmatpush1.bf16.msra.mxu0 0
        %656 = vmatprep.subr.bf16.mxu0 0
        %657 = vmatpush1.bf16.msra.mxu0 0
        %658 = vmatprep.subr.bf16.mxu0 0
        %659 = vmatpush1.bf16.msra.mxu0 0
        %660 = vmatprep.subr.bf16.mxu0 0
        %661 = vmatpush1.bf16.msra.mxu0 0
        %662 = vmatprep.subr.bf16.mxu0 0
        %663 = vmatpush1.bf16.msra.mxu0 0
        %664 = vmatprep.mubr.bf16.mxu0 0
        %665 = vmatmul.mubr.bf16.gmra.mrb[0].mxu0 %v566
        %v666 = vpop.f32.mrb[0].mxu0
        %v667 = vadd.f32 0.0, %v666
        %v668 = vpop.f32.mrb[0].mxu0
        %v669 = vpop.f32.mrb[0].mxu0
        %v670 = vadd.f32 0.0, %v669
        %v671 = vpop.f32.mrb[0].mxu0
        %672 = vdwg.mxu0
        %v689 = vunpack.c.l.b16 %v548
        %v690 = vunpack.c.l.b16 %v549
        %v691 = vunpack.c.l.b16 %v550
        %v692 = vunpack.c.l.b16 %v551
        %v693 = vunpack.c.l.b16 %v552
        %v694 = vunpack.c.l.b16 %v553
        %v695 = vunpack.c.l.b16 %v554
        %v696 = vunpack.c.l.b16 %v555
        %v697 = vunpack.c.l.b16 %v556
        %v698 = vunpack.c.l.b16 %v557
        %v699 = vunpack.c.l.b16 %v558
        %v700 = vunpack.c.l.b16 %v559
        %v701 = vunpack.c.l.b16 %v560
        %v702 = vunpack.c.l.b16 %v561
        %v703 = vunpack.c.l.b16 %v562
        %v704 = vunpack.c.l.b16 %v563
        %v705 = vpack.c.b16 %v690, %v689
        %v706 = vpack.c.b16 %v692, %v691
        %v707 = vpack.c.b16 %v694, %v693
        %v708 = vpack.c.b16 %v696, %v695
        %v709 = vpack.c.b16 %v698, %v697
        %v710 = vpack.c.b16 %v700, %v699
        %v711 = vpack.c.b16 %v702, %v701
        %v712 = vpack.c.b16 %v704, %v703
        %721 = vmatprep.subr.bf16.mxu0 0
        %722 = vmatpush1.bf16.msra.mxu0 %v705
        %723 = vmatprep.subr.bf16.mxu0 0
        %724 = vmatpush1.bf16.msra.mxu0 %v706
        %725 = vmatprep.subr.bf16.mxu0 0
        %726 = vmatpush1.bf16.msra.mxu0 %v707
        %727 = vmatprep.subr.bf16.mxu0 0
        %728 = vmatpush1.bf16.msra.mxu0 %v708
        %729 = vmatprep.subr.bf16.mxu0 0
        %730 = vmatpush1.bf16.msra.mxu0 %v709
        %731 = vmatprep.subr.bf16.mxu0 0
        %732 = vmatpush1.bf16.msra.mxu0 %v710
        %733 = vmatprep.subr.bf16.mxu0 0
        %734 = vmatpush1.bf16.msra.mxu0 %v711
        %735 = vmatprep.subr.bf16.mxu0 0
        %736 = vmatpush1.bf16.msra.mxu0 %v712
        %737 = vmatprep.subr.bf16.mxu0 0
        %738 = vmatpush1.bf16.msra.mxu0 0
        %739 = vmatprep.subr.bf16.mxu0 0
        %740 = vmatpush1.bf16.msra.mxu0 0
        %741 = vmatprep.subr.bf16.mxu0 0
        %742 = vmatpush1.bf16.msra.mxu0 0
        %743 = vmatprep.subr.bf16.mxu0 0
        %744 = vmatpush1.bf16.msra.mxu0 0
        %745 = vmatprep.subr.bf16.mxu0 0
        %746 = vmatpush1.bf16.msra.mxu0 0
        %747 = vmatprep.subr.bf16.mxu0 0
        %748 = vmatpush1.bf16.msra.mxu0 0
        %749 = vmatprep.subr.bf16.mxu0 0
        %750 = vmatpush1.bf16.msra.mxu0 0
        %751 = vmatprep.subr.bf16.mxu0 0
        %752 = vmatpush1.bf16.msra.mxu0 0
        %753 = vmatprep.mubr.bf16.mxu0 0
        %754 = vmatmul.mubr.bf16.gmra.mrb[0].mxu0 %v547
        %v755 = vpop.f32.mrb[0].mxu0
        %v756 = vadd.f32 %v667, %v755
        %v757 = vpop.f32.mrb[0].mxu0
        %v758 = vpop.f32.mrb[0].mxu0
        %v759 = vadd.f32 %v670, %v758
        %v760 = vpop.f32.mrb[0].mxu0
        %761 = vdwg.mxu0
        %v762 = vld [vmem:[#allocation2 + $0x2] sm:$0xff]
        %v763 = vld [vmem:[#allocation2 + $0xa] sm:$0xff]
        %v764 = vpack.c.bf16 %v763, %v762
        %s765 = scalar_lea.vmem %s2, 128
        %v766 = vld [vmem:[%s765] sm:$0xf]
        %v767 = vld [vmem:[%s765 + $0x4] sm:$0xf]
        %v768 = vld [vmem:[%s765 + $0x8] sm:$0xf]
        %v769 = vld [vmem:[%s765 + $0xc] sm:$0xf]
        %v770 = vld [vmem:[%s765 + $0x10] sm:$0xf]
        %v771 = vld [vmem:[%s765 + $0x14] sm:$0xf]
        %v772 = vld [vmem:[%s765 + $0x18] sm:$0xf]
        %v773 = vld [vmem:[%s765 + $0x1c] sm:$0xf]
        %v774 = vld [vmem:[%s765 + $0x20] sm:$0xf]
        %v775 = vld [vmem:[%s765 + $0x24] sm:$0xf]
        %v776 = vld [vmem:[%s765 + $0x28] sm:$0xf]
        %v777 = vld [vmem:[%s765 + $0x2c] sm:$0xf]
        %v778 = vld [vmem:[%s765 + $0x30] sm:$0xf]
        %v779 = vld [vmem:[%s765 + $0x34] sm:$0xf]
        %v780 = vld [vmem:[%s765 + $0x38] sm:$0xf]
        %v781 = vld [vmem:[%s765 + $0x3c] sm:$0xf]
        %v798 = vunpack.c.l.b16 %v766
        %v799 = vunpack.c.l.b16 %v767
        %v800 = vunpack.c.l.b16 %v768
        %v801 = vunpack.c.l.b16 %v769
        %v802 = vunpack.c.l.b16 %v770
        %v803 = vunpack.c.l.b16 %v771
        %v804 = vunpack.c.l.b16 %v772
        %v805 = vunpack.c.l.b16 %v773
        %v806 = vunpack.c.l.b16 %v774
        %v807 = vunpack.c.l.b16 %v775
        %v808 = vunpack.c.l.b16 %v776
        %v809 = vunpack.c.l.b16 %v777
        %v810 = vunpack.c.l.b16 %v778
        %v811 = vunpack.c.l.b16 %v779
        %v812 = vunpack.c.l.b16 %v780
        %v813 = vunpack.c.l.b16 %v781
        %v814 = vpack.c.b16 %v799, %v798
        %v815 = vpack.c.b16 %v801, %v800
        %v816 = vpack.c.b16 %v803, %v802
        %v817 = vpack.c.b16 %v805, %v804
        %v818 = vpack.c.b16 %v807, %v806
        %v819 = vpack.c.b16 %v809, %v808
        %v820 = vpack.c.b16 %v811, %v810
        %v821 = vpack.c.b16 %v813, %v812
        %830 = vmatprep.subr.bf16.mxu0 0
        %831 = vmatpush1.bf16.msra.mxu0 %v814
        %832 = vmatprep.subr.bf16.mxu0 0
        %833 = vmatpush1.bf16.msra.mxu0 %v815
        %834 = vmatprep.subr.bf16.mxu0 0
        %835 = vmatpush1.bf16.msra.mxu0 %v816
        %836 = vmatprep.subr.bf16.mxu0 0
        %837 = vmatpush1.bf16.msra.mxu0 %v817
        %838 = vmatprep.subr.bf16.mxu0 0
        %839 = vmatpush1.bf16.msra.mxu0 %v818
        %840 = vmatprep.subr.bf16.mxu0 0
        %841 = vmatpush1.bf16.msra.mxu0 %v819
        %842 = vmatprep.subr.bf16.mxu0 0
        %843 = vmatpush1.bf16.msra.mxu0 %v820
        %844 = vmatprep.subr.bf16.mxu0 0
        %845 = vmatpush1.bf16.msra.mxu0 %v821
        %846 = vmatprep.subr.bf16.mxu0 0
        %847 = vmatpush1.bf16.msra.mxu0 0
        %848 = vmatprep.subr.bf16.mxu0 0
        %849 = vmatpush1.bf16.msra.mxu0 0
        %850 = vmatprep.subr.bf16.mxu0 0
        %851 = vmatpush1.bf16.msra.mxu0 0
        %852 = vmatprep.subr.bf16.mxu0 0
        %853 = vmatpush1.bf16.msra.mxu0 0
        %854 = vmatprep.subr.bf16.mxu0 0
        %855 = vmatpush1.bf16.msra.mxu0 0
        %856 = vmatprep.subr.bf16.mxu0 0
        %857 = vmatpush1.bf16.msra.mxu0 0
        %858 = vmatprep.subr.bf16.mxu0 0
        %859 = vmatpush1.bf16.msra.mxu0 0
        %860 = vmatprep.subr.bf16.mxu0 0
        %861 = vmatpush1.bf16.msra.mxu0 0
        %862 = vmatprep.mubr.bf16.mxu0 0
        %863 = vmatmul.mubr.bf16.gmra.mrb[0].mxu0 %v764
        %v864 = vpop.f32.mrb[0].mxu0
        %v865 = vadd.f32 0.0, %v864
        %v866 = vpop.f32.mrb[0].mxu0
        %v867 = vpop.f32.mrb[0].mxu0
        %v868 = vadd.f32 0.0, %v867
        %v869 = vpop.f32.mrb[0].mxu0
        %870 = vdwg.mxu0
        %v871 = vadd.f32 %v756, %v865
        %v872 = vadd.f32 %v759, %v868
        %v873 = vld [vmem:[%s3] sm:$0x1]
        %v875 = vlaneseq
        %v876 = vshrl.u32 %v875, 7
        %v877 = vsub.s32 0, %v876
        %v878 = vrot.slane %v873, %v877
        %v880 = vadd.f32 %v871, %v878
        %v881 = vadd.f32 %v872, %v878
        %v882 = vmax.f32 %v880, 0.0
        %v883 = vmax.f32 %v881, 0.0
        %v884 = vld [vmem:[%s4] sm:$0xf]
        %v885 = vld [vmem:[%s4 + $0x4] sm:$0xf]
        %v886 = vld [vmem:[%s4 + $0x8] sm:$0xf]
        %v887 = vld [vmem:[%s4 + $0xc] sm:$0xf]
        %v888 = vpack.c.bf16 %v883, %v882
        %v893 = vunpack.c.l.b16 %v884
        %v894 = vunpack.c.l.b16 %v885
        %v895 = vunpack.c.l.b16 %v886
        %v896 = vunpack.c.l.b16 %v887
        %v897 = vpack.c.b16 %v894, %v893
        %v898 = vpack.c.b16 %v896, %v895
        %vm899 = vcmask 130048
        %v901 = vsel %vm899, %v897, 0
        %v904 = vsel %vm899, %v898, 0
        %906 = vmatprep.subr.bf16.mxu0 0
        %907 = vmatpush1.bf16.msra.mxu0 %v888
        %908 = vmatprep.subr.bf16.mxu0 0
        %909 = vmatpush1.bf16.msra.mxu0 0
        %910 = vmatprep.subr.bf16.mxu0 0
        %911 = vmatpush1.bf16.msra.mxu0 0
        %912 = vmatprep.subr.bf16.mxu0 0
        %913 = vmatpush1.bf16.msra.mxu0 0
        %914 = vmatprep.subr.bf16.mxu0 0
        %915 = vmatpush1.bf16.msra.mxu0 0
        %916 = vmatprep.subr.bf16.mxu0 0
        %917 = vmatpush1.bf16.msra.mxu0 0
        %918 = vmatprep.subr.bf16.mxu0 0
        %919 = vmatpush1.bf16.msra.mxu0 0
        %920 = vmatprep.subr.bf16.mxu0 0
        %921 = vmatpush1.bf16.msra.mxu0 0
        %922 = vmatprep.subr.bf16.mxu0 0
        %923 = vmatpush1.bf16.msra.mxu0 0
        %924 = vmatprep.subr.bf16.mxu0 0
        %925 = vmatpush1.bf16.msra.mxu0 0
        %926 = vmatprep.subr.bf16.mxu0 0
        %927 = vmatpush1.bf16.msra.mxu0 0
        %928 = vmatprep.subr.bf16.mxu0 0
        %929 = vmatpush1.bf16.msra.mxu0 0
        %930 = vmatprep.subr.bf16.mxu0 0
        %931 = vmatpush1.bf16.msra.mxu0 0
        %932 = vmatprep.subr.bf16.mxu0 0
        %933 = vmatpush1.bf16.msra.mxu0 0
        %934 = vmatprep.subr.bf16.mxu0 0
        %935 = vmatpush1.bf16.msra.mxu0 0
        %936 = vmatprep.subr.bf16.mxu0 0
        %937 = vmatpush1.bf16.msra.mxu0 0
        %938 = vmatprep.mubr.bf16.mxu0 0
        %939 = vmatmul.mubr.bf16.gmra.mrb[0].mxu0 %v901
        %v940 = vpop.f32.mrb[0].mxu0
        %v941 = vadd.f32 0.0, %v940
        %v942 = vpop.f32.mrb[0].mxu0
        %v943 = vpop.f32.mrb[0].mxu0
        %v944 = vadd.f32 0.0, %v943
        %v945 = vpop.f32.mrb[0].mxu0
        %946 = vmatprep.mubr.bf16.mxu0 0
        %947 = vmatmul.mubr.bf16.gmra.mrb[0].mxu0 %v904
        %v948 = vpop.f32.mrb[0].mxu0
        %v949 = vadd.f32 0.0, %v948
        %v950 = vpop.f32.mrb[0].mxu0
        %v951 = vpop.f32.mrb[0].mxu0
        %v952 = vadd.f32 0.0, %v951
        %v953 = vpop.f32.mrb[0].mxu0
        %954 = vdwg.mxu0
        %955 = vst [vmem:[#allocation3] sm:$0x1] 0.0
        %956 = vst [vmem:[#allocation3 + $0x1] sm:$0xff] %v941
        %957 = vst [vmem:[#allocation3 + $0x9] sm:$0xff] %v944
        %958 = vst [vmem:[#allocation3 + $0x11] sm:$0xff] %v949
        %959 = vst [vmem:[#allocation3 + $0x19] sm:$0xff] %v952
        %960 = vst [vmem:[#allocation3 + $0x21] sm:$0x1] 0.0
        %v961 = vld [vmem:[#allocation3] sm:$0xff]
        %v962 = vld [vmem:[#allocation3 + $0x8] sm:$0xff]
        %v963 = vld [vmem:[#allocation3 + $0x10] sm:$0xff]
        %v964 = vld [vmem:[#allocation3 + $0x18] sm:$0xff]
        %v965 = vpack.c.bf16 %v962, %v961
        %v966 = vpack.c.bf16 %v964, %v963
        %v967 = vld [vmem:[#allocation6] sm:$0xff]
        %v968 = vld [vmem:[#allocation6 + $0x8] sm:$0xff]
        %v969 = vld [vmem:[#allocation6 + $0x10] sm:$0xff]
        %v970 = vld [vmem:[#allocation6 + $0x18] sm:$0xff]
        %v971 = vld [vmem:[#allocation6 + $0x20] sm:$0xff]
        %v972 = vld [vmem:[#allocation6 + $0x28] sm:$0xff]
        %v973 = vld [vmem:[#allocation6 + $0x30] sm:$0xff]
        %v974 = vld [vmem:[#allocation6 + $0x38] sm:$0xff]
        %v975 = vld [vmem:[#allocation6 + $0x40] sm:$0xff]
        %v976 = vld [vmem:[#allocation6 + $0x48] sm:$0xff]
        %v977 = vld [vmem:[#allocation6 + $0x50] sm:$0xff]
        %v978 = vld [vmem:[#allocation6 + $0x58] sm:$0xff]
        %v979 = vld [vmem:[#allocation6 + $0x60] sm:$0xff]
        %v980 = vld [vmem:[#allocation6 + $0x68] sm:$0xff]
        %v981 = vld [vmem:[#allocation6 + $0x70] sm:$0xff]
        %v982 = vld [vmem:[#allocation6 + $0x78] sm:$0xff]
        %v983 = vld [vmem:[#allocation3 + $0x1] sm:$0xff]
        %v984 = vld [vmem:[#allocation3 + $0x9] sm:$0xff]
        %v985 = vld [vmem:[#allocation3 + $0x11] sm:$0xff]
        %v986 = vld [vmem:[#allocation3 + $0x19] sm:$0xff]
        %v987 = vpack.c.bf16 %v984, %v983
        %v988 = vpack.c.bf16 %v986, %v985
        %s989 = scalar_lea.vmem [#allocation6], 128
        %v990 = vld [vmem:[%s989] sm:$0xff]
        %v991 = vld [vmem:[%s989 + $0x8] sm:$0xff]
        %v992 = vld [vmem:[%s989 + $0x10] sm:$0xff]
        %v993 = vld [vmem:[%s989 + $0x18] sm:$0xff]
        %v994 = vld [vmem:[%s989 + $0x20] sm:$0xff]
        %v995 = vld [vmem:[%s989 + $0x28] sm:$0xff]
        %v996 = vld [vmem:[%s989 + $0x30] sm:$0xff]
        %v997 = vld [vmem:[%s989 + $0x38] sm:$0xff]
        %v998 = vld [vmem:[%s989 + $0x40] sm:$0xff]
        %v999 = vld [vmem:[%s989 + $0x48] sm:$0xff]
        %v1000 = vld [vmem:[%s989 + $0x50] sm:$0xff]
        %v1001 = vld [vmem:[%s989 + $0x58] sm:$0xff]
        %v1002 = vld [vmem:[%s989 + $0x60] sm:$0xff]
        %v1003 = vld [vmem:[%s989 + $0x68] sm:$0xff]
        %v1004 = vld [vmem:[%s989 + $0x70] sm:$0xff]
        %v1005 = vld [vmem:[%s989 + $0x78] sm:$0xff]
        %v1022 = vunpack.c.l.b16 %v990
        %v1023 = vunpack.c.h.b16 %v990
        %v1024 = vunpack.c.l.b16 %v991
        %v1025 = vunpack.c.h.b16 %v991
        %v1026 = vunpack.c.l.b16 %v992
        %v1027 = vunpack.c.h.b16 %v992
        %v1028 = vunpack.c.l.b16 %v993
        %v1029 = vunpack.c.h.b16 %v993
        %v1030 = vunpack.c.l.b16 %v994
        %v1031 = vunpack.c.h.b16 %v994
        %v1032 = vunpack.c.l.b16 %v995
        %v1033 = vunpack.c.h.b16 %v995
        %v1034 = vunpack.c.l.b16 %v996
        %v1035 = vunpack.c.h.b16 %v996
        %v1036 = vunpack.c.l.b16 %v997
        %v1037 = vunpack.c.h.b16 %v997
        %v1038 = vunpack.c.l.b16 %v998
        %v1039 = vunpack.c.h.b16 %v998
        %v1040 = vunpack.c.l.b16 %v999
        %v1041 = vunpack.c.h.b16 %v999
        %v1042 = vunpack.c.l.b16 %v1000
        %v1043 = vunpack.c.h.b16 %v1000
        %v1044 = vunpack.c.l.b16 %v1001
        %v1045 = vunpack.c.h.b16 %v1001
        %v1046 = vunpack.c.l.b16 %v1002
        %v1047 = vunpack.c.h.b16 %v1002
        %v1048 = vunpack.c.l.b16 %v1003
        %v1049 = vunpack.c.h.b16 %v1003
        %v1050 = vunpack.c.l.b16 %v1004
        %v1051 = vunpack.c.h.b16 %v1004
        %v1052 = vunpack.c.l.b16 %v1005
        %v1053 = vunpack.c.h.b16 %v1005
        %v1054 = vpack.c.b16 %v1024, %v1022
        %v1055 = vpack.c.b16 %v1025, %v1023
        %v1056 = vpack.c.b16 %v1028, %v1026
        %v1057 = vpack.c.b16 %v1029, %v1027
        %v1058 = vpack.c.b16 %v1032, %v1030
        %v1059 = vpack.c.b16 %v1033, %v1031
        %v1060 = vpack.c.b16 %v1036, %v1034
        %v1061 = vpack.c.b16 %v1037, %v1035
        %v1062 = vpack.c.b16 %v1040, %v1038
        %v1063 = vpack.c.b16 %v1041, %v1039
        %v1064 = vpack.c.b16 %v1044, %v1042
        %v1065 = vpack.c.b16 %v1045, %v1043
        %v1066 = vpack.c.b16 %v1048, %v1046
        %v1067 = vpack.c.b16 %v1049, %v1047
        %v1068 = vpack.c.b16 %v1052, %v1050
        %v1069 = vpack.c.b16 %v1053, %v1051
        %1086 = vmatprep.subr.bf16.mxu0 %v1055
        %1087 = vmatpush1.bf16.msra.mxu0 %v1054
        %1088 = vmatprep.subr.bf16.mxu0 %v1057
        %1089 = vmatpush1.bf16.msra.mxu0 %v1056
        %1090 = vmatprep.subr.bf16.mxu0 %v1059
        %1091 = vmatpush1.bf16.msra.mxu0 %v1058
        %1092 = vmatprep.subr.bf16.mxu0 %v1061
        %1093 = vmatpush1.bf16.msra.mxu0 %v1060
        %1094 = vmatprep.subr.bf16.mxu0 %v1063
        %1095 = vmatpush1.bf16.msra.mxu0 %v1062
        %1096 = vmatprep.subr.bf16.mxu0 %v1065
        %1097 = vmatpush1.bf16.msra.mxu0 %v1064
        %1098 = vmatprep.subr.bf16.mxu0 %v1067
        %1099 = vmatpush1.bf16.msra.mxu0 %v1066
        %1100 = vmatprep.subr.bf16.mxu0 %v1069
        %1101 = vmatpush1.bf16.msra.mxu0 %v1068
        %1102 = vmatprep.subr.bf16.mxu0 0
        %1103 = vmatpush1.bf16.msra.mxu0 0
        %1104 = vmatprep.subr.bf16.mxu0 0
        %1105 = vmatpush1.bf16.msra.mxu0 0
        %1106 = vmatprep.subr.bf16.mxu0 0
        %1107 = vmatpush1.bf16.msra.mxu0 0
        %1108 = vmatprep.subr.bf16.mxu0 0
        %1109 = vmatpush1.bf16.msra.mxu0 0
        %1110 = vmatprep.subr.bf16.mxu0 0
        %1111 = vmatpush1.bf16.msra.mxu0 0
        %1112 = vmatprep.subr.bf16.mxu0 0
        %1113 = vmatpush1.bf16.msra.mxu0 0
        %1114 = vmatprep.subr.bf16.mxu0 0
        %1115 = vmatpush1.bf16.msra.mxu0 0
        %1116 = vmatprep.subr.bf16.mxu0 0
        %1117 = vmatpush1.bf16.msra.mxu0 0
        %1118 = vmatprep.mubr.bf16.mxu0 0
        %1119 = vmatmul.mubr.bf16.gmra.mrb[0].mxu0 %v987
        %v1120 = vpop.f32.mrb[0].mxu0
        %v1121 = vadd.f32 0.0, %v1120
        %v1122 = vpop.f32.mrb[0].mxu0
        %v1123 = vadd.f32 0.0, %v1122
        %v1124 = vpop.f32.mrb[0].mxu0
        %v1125 = vadd.f32 0.0, %v1124
        %v1126 = vpop.f32.mrb[0].mxu0
        %v1127 = vadd.f32 0.0, %v1126
        %1128 = vmatprep.mubr.bf16.mxu0 0
        %1129 = vmatmul.mubr.bf16.gmra.mrb[0].mxu0 %v988
        %v1130 = vpop.f32.mrb[0].mxu0
        %v1131 = vadd.f32 0.0, %v1130
        %v1132 = vpop.f32.mrb[0].mxu0
        %v1133 = vadd.f32 0.0, %v1132
        %v1134 = vpop.f32.mrb[0].mxu0
        %v1135 = vadd.f32 0.0, %v1134
        %v1136 = vpop.f32.mrb[0].mxu0
        %v1137 = vadd.f32 0.0, %v1136
        %1138 = vdwg.mxu0
        %v1155 = vunpack.c.l.b16 %v967
        %v1156 = vunpack.c.h.b16 %v967
        %v1157 = vunpack.c.l.b16 %v968
        %v1158 = vunpack.c.h.b16 %v968
        %v1159 = vunpack.c.l.b16 %v969
        %v1160 = vunpack.c.h.b16 %v969
        %v1161 = vunpack.c.l.b16 %v970
        %v1162 = vunpack.c.h.b16 %v970
        %v1163 = vunpack.c.l.b16 %v971
        %v1164 = vunpack.c.h.b16 %v971
        %v1165 = vunpack.c.l.b16 %v972
        %v1166 = vunpack.c.h.b16 %v972
        %v1167 = vunpack.c.l.b16 %v973
        %v1168 = vunpack.c.h.b16 %v973
        %v1169 = vunpack.c.l.b16 %v974
        %v1170 = vunpack.c.h.b16 %v974
        %v1171 = vunpack.c.l.b16 %v975
        %v1172 = vunpack.c.h.b16 %v975
        %v1173 = vunpack.c.l.b16 %v976
        %v1174 = vunpack.c.h.b16 %v976
        %v1175 = vunpack.c.l.b16 %v977
        %v1176 = vunpack.c.h.b16 %v977
        %v1177 = vunpack.c.l.b16 %v978
        %v1178 = vunpack.c.h.b16 %v978
        %v1179 = vunpack.c.l.b16 %v979
        %v1180 = vunpack.c.h.b16 %v979
        %v1181 = vunpack.c.l.b16 %v980
        %v1182 = vunpack.c.h.b16 %v980
        %v1183 = vunpack.c.l.b16 %v981
        %v1184 = vunpack.c.h.b16 %v981
        %v1185 = vunpack.c.l.b16 %v982
        %v1186 = vunpack.c.h.b16 %v982
        %v1187 = vpack.c.b16 %v1157, %v1155
        %v1188 = vpack.c.b16 %v1158, %v1156
        %v1189 = vpack.c.b16 %v1161, %v1159
        %v1190 = vpack.c.b16 %v1162, %v1160
        %v1191 = vpack.c.b16 %v1165, %v1163
        %v1192 = vpack.c.b16 %v1166, %v1164
        %v1193 = vpack.c.b16 %v1169, %v1167
        %v1194 = vpack.c.b16 %v1170, %v1168
        %v1195 = vpack.c.b16 %v1173, %v1171
        %v1196 = vpack.c.b16 %v1174, %v1172
        %v1197 = vpack.c.b16 %v1177, %v1175
        %v1198 = vpack.c.b16 %v1178, %v1176
        %v1199 = vpack.c.b16 %v1181, %v1179
        %v1200 = vpack.c.b16 %v1182, %v1180
        %v1201 = vpack.c.b16 %v1185, %v1183
        %v1202 = vpack.c.b16 %v1186, %v1184
        %1219 = vmatprep.subr.bf16.mxu0 %v1188
        %1220 = vmatpush1.bf16.msra.mxu0 %v1187
        %1221 = vmatprep.subr.bf16.mxu0 %v1190
        %1222 = vmatpush1.bf16.msra.mxu0 %v1189
        %1223 = vmatprep.subr.bf16.mxu0 %v1192
        %1224 = vmatpush1.bf16.msra.mxu0 %v1191
        %1225 = vmatprep.subr.bf16.mxu0 %v1194
        %1226 = vmatpush1.bf16.msra.mxu0 %v1193
        %1227 = vmatprep.subr.bf16.mxu0 %v1196
        %1228 = vmatpush1.bf16.msra.mxu0 %v1195
        %1229 = vmatprep.subr.bf16.mxu0 %v1198
        %1230 = vmatpush1.bf16.msra.mxu0 %v1197
        %1231 = vmatprep.subr.bf16.mxu0 %v1200
        %1232 = vmatpush1.bf16.msra.mxu0 %v1199
        %1233 = vmatprep.subr.bf16.mxu0 %v1202
        %1234 = vmatpush1.bf16.msra.mxu0 %v1201
        %1235 = vmatprep.subr.bf16.mxu0 0
        %1236 = vmatpush1.bf16.msra.mxu0 0
        %1237 = vmatprep.subr.bf16.mxu0 0
        %1238 = vmatpush1.bf16.msra.mxu0 0
        %1239 = vmatprep.subr.bf16.mxu0 0
        %1240 = vmatpush1.bf16.msra.mxu0 0
        %1241 = vmatprep.subr.bf16.mxu0 0
        %1242 = vmatpush1.bf16.msra.mxu0 0
        %1243 = vmatprep.subr.bf16.mxu0 0
        %1244 = vmatpush1.bf16.msra.mxu0 0
        %1245 = vmatprep.subr.bf16.mxu0 0
        %1246 = vmatpush1.bf16.msra.mxu0 0
        %1247 = vmatprep.subr.bf16.mxu0 0
        %1248 = vmatpush1.bf16.msra.mxu0 0
        %1249 = vmatprep.subr.bf16.mxu0 0
        %1250 = vmatpush1.bf16.msra.mxu0 0
        %1251 = vmatprep.mubr.bf16.mxu0 0
        %1252 = vmatmul.mubr.bf16.gmra.mrb[0].mxu0 %v965
        %v1253 = vpop.f32.mrb[0].mxu0
        %v1254 = vadd.f32 %v1121, %v1253
        %v1255 = vpop.f32.mrb[0].mxu0
        %v1256 = vadd.f32 %v1123, %v1255
        %v1257 = vpop.f32.mrb[0].mxu0
        %v1258 = vadd.f32 %v1125, %v1257
        %v1259 = vpop.f32.mrb[0].mxu0
        %v1260 = vadd.f32 %v1127, %v1259
        %1261 = vmatprep.mubr.bf16.mxu0 0
        %1262 = vmatmul.mubr.bf16.gmra.mrb[0].mxu0 %v966
        %v1263 = vpop.f32.mrb[0].mxu0
        %v1264 = vadd.f32 %v1131, %v1263
        %v1265 = vpop.f32.mrb[0].mxu0
        %v1266 = vadd.f32 %v1133, %v1265
        %v1267 = vpop.f32.mrb[0].mxu0
        %v1268 = vadd.f32 %v1135, %v1267
        %v1269 = vpop.f32.mrb[0].mxu0
        %v1270 = vadd.f32 %v1137, %v1269
        %1271 = vdwg.mxu0
        %v1272 = vld [vmem:[#allocation3 + $0x2] sm:$0xff]
        %v1273 = vld [vmem:[#allocation3 + $0xa] sm:$0xff]
        %v1274 = vld [vmem:[#allocation3 + $0x12] sm:$0xff]
        %v1275 = vld [vmem:[#allocation3 + $0x1a] sm:$0xff]
        %v1276 = vpack.c.bf16 %v1273, %v1272
        %v1277 = vpack.c.bf16 %v1275, %v1274
        %s1278 = scalar_lea.vmem [#allocation6], 256
        %v1279 = vld [vmem:[%s1278] sm:$0xff]
        %v1280 = vld [vmem:[%s1278 + $0x8] sm:$0xff]
        %v1281 = vld [vmem:[%s1278 + $0x10] sm:$0xff]
        %v1282 = vld [vmem:[%s1278 + $0x18] sm:$0xff]
        %v1283 = vld [vmem:[%s1278 + $0x20] sm:$0xff]
        %v1284 = vld [vmem:[%s1278 + $0x28] sm:$0xff]
        %v1285 = vld [vmem:[%s1278 + $0x30] sm:$0xff]
        %v1286 = vld [vmem:[%s1278 + $0x38] sm:$0xff]
        %v1287 = vld [vmem:[%s1278 + $0x40] sm:$0xff]
        %v1288 = vld [vmem:[%s1278 + $0x48] sm:$0xff]
        %v1289 = vld [vmem:[%s1278 + $0x50] sm:$0xff]
        %v1290 = vld [vmem:[%s1278 + $0x58] sm:$0xff]
        %v1291 = vld [vmem:[%s1278 + $0x60] sm:$0xff]
        %v1292 = vld [vmem:[%s1278 + $0x68] sm:$0xff]
        %v1293 = vld [vmem:[%s1278 + $0x70] sm:$0xff]
        %v1294 = vld [vmem:[%s1278 + $0x78] sm:$0xff]
        %v1311 = vunpack.c.l.b16 %v1279
        %v1312 = vunpack.c.h.b16 %v1279
        %v1313 = vunpack.c.l.b16 %v1280
        %v1314 = vunpack.c.h.b16 %v1280
        %v1315 = vunpack.c.l.b16 %v1281
        %v1316 = vunpack.c.h.b16 %v1281
        %v1317 = vunpack.c.l.b16 %v1282
        %v1318 = vunpack.c.h.b16 %v1282
        %v1319 = vunpack.c.l.b16 %v1283
        %v1320 = vunpack.c.h.b16 %v1283
        %v1321 = vunpack.c.l.b16 %v1284
        %v1322 = vunpack.c.h.b16 %v1284
        %v1323 = vunpack.c.l.b16 %v1285
        %v1324 = vunpack.c.h.b16 %v1285
        %v1325 = vunpack.c.l.b16 %v1286
        %v1326 = vunpack.c.h.b16 %v1286
        %v1327 = vunpack.c.l.b16 %v1287
        %v1328 = vunpack.c.h.b16 %v1287
        %v1329 = vunpack.c.l.b16 %v1288
        %v1330 = vunpack.c.h.b16 %v1288
        %v1331 = vunpack.c.l.b16 %v1289
        %v1332 = vunpack.c.h.b16 %v1289
        %v1333 = vunpack.c.l.b16 %v1290
        %v1334 = vunpack.c.h.b16 %v1290
        %v1335 = vunpack.c.l.b16 %v1291
        %v1336 = vunpack.c.h.b16 %v1291
        %v1337 = vunpack.c.l.b16 %v1292
        %v1338 = vunpack.c.h.b16 %v1292
        %v1339 = vunpack.c.l.b16 %v1293
        %v1340 = vunpack.c.h.b16 %v1293
        %v1341 = vunpack.c.l.b16 %v1294
        %v1342 = vunpack.c.h.b16 %v1294
        %v1343 = vpack.c.b16 %v1313, %v1311
        %v1344 = vpack.c.b16 %v1314, %v1312
        %v1345 = vpack.c.b16 %v1317, %v1315
        %v1346 = vpack.c.b16 %v1318, %v1316
        %v1347 = vpack.c.b16 %v1321, %v1319
        %v1348 = vpack.c.b16 %v1322, %v1320
        %v1349 = vpack.c.b16 %v1325, %v1323
        %v1350 = vpack.c.b16 %v1326, %v1324
        %v1351 = vpack.c.b16 %v1329, %v1327
        %v1352 = vpack.c.b16 %v1330, %v1328
        %v1353 = vpack.c.b16 %v1333, %v1331
        %v1354 = vpack.c.b16 %v1334, %v1332
        %v1355 = vpack.c.b16 %v1337, %v1335
        %v1356 = vpack.c.b16 %v1338, %v1336
        %v1357 = vpack.c.b16 %v1341, %v1339
        %v1358 = vpack.c.b16 %v1342, %v1340
        %1375 = vmatprep.subr.bf16.mxu0 %v1344
        %1376 = vmatpush1.bf16.msra.mxu0 %v1343
        %1377 = vmatprep.subr.bf16.mxu0 %v1346
        %1378 = vmatpush1.bf16.msra.mxu0 %v1345
        %1379 = vmatprep.subr.bf16.mxu0 %v1348
        %1380 = vmatpush1.bf16.msra.mxu0 %v1347
        %1381 = vmatprep.subr.bf16.mxu0 %v1350
        %1382 = vmatpush1.bf16.msra.mxu0 %v1349
        %1383 = vmatprep.subr.bf16.mxu0 %v1352
        %1384 = vmatpush1.bf16.msra.mxu0 %v1351
        %1385 = vmatprep.subr.bf16.mxu0 %v1354
        %1386 = vmatpush1.bf16.msra.mxu0 %v1353
        %1387 = vmatprep.subr.bf16.mxu0 %v1356
        %1388 = vmatpush1.bf16.msra.mxu0 %v1355
        %1389 = vmatprep.subr.bf16.mxu0 %v1358
        %1390 = vmatpush1.bf16.msra.mxu0 %v1357
        %1391 = vmatprep.subr.bf16.mxu0 0
        %1392 = vmatpush1.bf16.msra.mxu0 0
        %1393 = vmatprep.subr.bf16.mxu0 0
        %1394 = vmatpush1.bf16.msra.mxu0 0
        %1395 = vmatprep.subr.bf16.mxu0 0
        %1396 = vmatpush1.bf16.msra.mxu0 0
        %1397 = vmatprep.subr.bf16.mxu0 0
        %1398 = vmatpush1.bf16.msra.mxu0 0
        %1399 = vmatprep.subr.bf16.mxu0 0
        %1400 = vmatpush1.bf16.msra.mxu0 0
        %1401 = vmatprep.subr.bf16.mxu0 0
        %1402 = vmatpush1.bf16.msra.mxu0 0
        %1403 = vmatprep.subr.bf16.mxu0 0
        %1404 = vmatpush1.bf16.msra.mxu0 0
        %1405 = vmatprep.subr.bf16.mxu0 0
        %1406 = vmatpush1.bf16.msra.mxu0 0
        %1407 = vmatprep.mubr.bf16.mxu0 0
        %1408 = vmatmul.mubr.bf16.gmra.mrb[0].mxu0 %v1276
        %v1409 = vpop.f32.mrb[0].mxu0
        %v1410 = vadd.f32 0.0, %v1409
        %v1411 = vpop.f32.mrb[0].mxu0
        %v1412 = vadd.f32 0.0, %v1411
        %v1413 = vpop.f32.mrb[0].mxu0
        %v1414 = vadd.f32 0.0, %v1413
        %v1415 = vpop.f32.mrb[0].mxu0
        %v1416 = vadd.f32 0.0, %v1415
        %1417 = vmatprep.mubr.bf16.mxu0 0
        %1418 = vmatmul.mubr.bf16.gmra.mrb[0].mxu0 %v1277
        %v1419 = vpop.f32.mrb[0].mxu0
        %v1420 = vadd.f32 0.0, %v1419
        %v1421 = vpop.f32.mrb[0].mxu0
        %v1422 = vadd.f32 0.0, %v1421
        %v1423 = vpop.f32.mrb[0].mxu0
        %v1424 = vadd.f32 0.0, %v1423
        %v1425 = vpop.f32.mrb[0].mxu0
        %v1426 = vadd.f32 0.0, %v1425
        %1427 = vdwg.mxu0
        %v1428 = vadd.f32 %v1254, %v1410
        %v1429 = vadd.f32 %v1256, %v1412
        %v1430 = vadd.f32 %v1258, %v1414
        %v1431 = vadd.f32 %v1260, %v1416
        %v1432 = vadd.f32 %v1264, %v1420
        %v1433 = vadd.f32 %v1266, %v1422
        %v1434 = vadd.f32 %v1268, %v1424
        %v1435 = vadd.f32 %v1270, %v1426
        %v1436 = vld [vmem:[%s6] sm:$0x3]
        %v1438 = vlaneseq
        %v1439 = vshrl.u32 %v1438, 7
        %v1440 = vsub.s32 0, %v1439
        %v1441 = vrot.slane %v1436, %v1440
        %v1442 = vlaneseq
        %v1443 = vshrl.u32 %v1442, 7
        %v1444 = vsub.s32 1, %v1443
        %v1445 = vrot.slane %v1436, %v1444
        %v1448 = vadd.f32 %v1428, %v1441
        %v1449 = vadd.f32 %v1429, %v1445
        %v1450 = vadd.f32 %v1430, %v1441
        %v1451 = vadd.f32 %v1431, %v1445
        %v1452 = vadd.f32 %v1432, %v1441
        %v1453 = vadd.f32 %v1433, %v1445
        %v1454 = vadd.f32 %v1434, %v1441
        %v1455 = vadd.f32 %v1435, %v1445
        %v1456 = vmax.f32 %v1448, 0.0
        %v1457 = vmax.f32 %v1449, 0.0
        %v1458 = vmax.f32 %v1450, 0.0
        %v1459 = vmax.f32 %v1451, 0.0
        %v1460 = vmax.f32 %v1452, 0.0
        %v1461 = vmax.f32 %v1453, 0.0
        %v1462 = vmax.f32 %v1454, 0.0
        %v1463 = vmax.f32 %v1455, 0.0
        %v1464 = vld [vmem:[%s7] sm:$0xf]
        %v1465 = vld [vmem:[%s7 + $0x4] sm:$0xf]
        %v1466 = vld [vmem:[%s7 + $0x8] sm:$0xf]
        %v1467 = vld [vmem:[%s7 + $0xc] sm:$0xf]
        %v1468 = vld [vmem:[%s7 + $0x10] sm:$0xf]
        %v1469 = vld [vmem:[%s7 + $0x14] sm:$0xf]
        %v1470 = vld [vmem:[%s7 + $0x18] sm:$0xf]
        %v1471 = vld [vmem:[%s7 + $0x1c] sm:$0xf]
        %v1472 = vpack.c.bf16 %v1458, %v1456
        %v1473 = vpack.c.bf16 %v1459, %v1457
        %v1474 = vpack.c.bf16 %v1462, %v1460
        %v1475 = vpack.c.bf16 %v1463, %v1461
        %v1484 = vunpack.c.l.b16 %v1464
        %v1485 = vunpack.c.l.b16 %v1465
        %v1486 = vunpack.c.l.b16 %v1466
        %v1487 = vunpack.c.l.b16 %v1467
        %v1488 = vunpack.c.l.b16 %v1468
        %v1489 = vunpack.c.l.b16 %v1469
        %v1490 = vunpack.c.l.b16 %v1470
        %v1491 = vunpack.c.l.b16 %v1471
        %v1492 = vpack.c.b16 %v1485, %v1484
        %v1493 = vpack.c.b16 %v1487, %v1486
        %v1494 = vpack.c.b16 %v1489, %v1488
        %v1495 = vpack.c.b16 %v1491, %v1490
        %vm1496 = vcmask 261120
        %v1498 = vsel %vm1496, %v1492, 0
        %v1501 = vsel %vm1496, %v1493, 0
        %v1504 = vsel %vm1496, %v1494, 0
        %v1507 = vsel %vm1496, %v1495, 0
        %1509 = vmatprep.subr.bf16.mxu0 %v1473
        %1510 = vmatpush1.bf16.msra.mxu0 %v1472
        %1511 = vmatprep.subr.bf16.mxu0 %v1475
        %1512 = vmatpush1.bf16.msra.mxu0 %v1474
        %1513 = vmatprep.subr.bf16.mxu0 0
        %1514 = vmatpush1.bf16.msra.mxu0 0
        %1515 = vmatprep.subr.bf16.mxu0 0
        %1516 = vmatpush1.bf16.msra.mxu0 0
        %1517 = vmatprep.subr.bf16.mxu0 0
        %1518 = vmatpush1.bf16.msra.mxu0 0
        %1519 = vmatprep.subr.bf16.mxu0 0
        %1520 = vmatpush1.bf16.msra.mxu0 0
        %1521 = vmatprep.subr.bf16.mxu0 0
        %1522 = vmatpush1.bf16.msra.mxu0 0
        %1523 = vmatprep.subr.bf16.mxu0 0
        %1524 = vmatpush1.bf16.msra.mxu0 0
        %1525 = vmatprep.subr.bf16.mxu0 0
        %1526 = vmatpush1.bf16.msra.mxu0 0
        %1527 = vmatprep.subr.bf16.mxu0 0
        %1528 = vmatpush1.bf16.msra.mxu0 0
        %1529 = vmatprep.subr.bf16.mxu0 0
        %1530 = vmatpush1.bf16.msra.mxu0 0
        %1531 = vmatprep.subr.bf16.mxu0 0
        %1532 = vmatpush1.bf16.msra.mxu0 0
        %1533 = vmatprep.subr.bf16.mxu0 0
        %1534 = vmatpush1.bf16.msra.mxu0 0
        %1535 = vmatprep.subr.bf16.mxu0 0
        %1536 = vmatpush1.bf16.msra.mxu0 0
        %1537 = vmatprep.subr.bf16.mxu0 0
        %1538 = vmatpush1.bf16.msra.mxu0 0
        %1539 = vmatprep.subr.bf16.mxu0 0
        %1540 = vmatpush1.bf16.msra.mxu0 0
        %1541 = vmatprep.mubr.bf16.mxu0 0
        %1542 = vmatmul.mubr.bf16.gmra.mrb[0].mxu0 %v1498
        %v1543 = vpop.f32.mrb[0].mxu0
        %v1544 = vadd.f32 0.0, %v1543
        %v1545 = vpop.f32.mrb[0].mxu0
        %v1546 = vadd.f32 0.0, %v1545
        %v1547 = vpop.f32.mrb[0].mxu0
        %v1548 = vadd.f32 0.0, %v1547
        %v1549 = vpop.f32.mrb[0].mxu0
        %v1550 = vadd.f32 0.0, %v1549
        %1551 = vmatprep.mubr.bf16.mxu0 0
        %1552 = vmatmul.mubr.bf16.gmra.mrb[0].mxu0 %v1501
        %v1553 = vpop.f32.mrb[0].mxu0
        %v1554 = vadd.f32 0.0, %v1553
        %v1555 = vpop.f32.mrb[0].mxu0
        %v1556 = vadd.f32 0.0, %v1555
        %v1557 = vpop.f32.mrb[0].mxu0
        %v1558 = vadd.f32 0.0, %v1557
        %v1559 = vpop.f32.mrb[0].mxu0
        %v1560 = vadd.f32 0.0, %v1559
        %1561 = vmatprep.mubr.bf16.mxu0 0
        %1562 = vmatmul.mubr.bf16.gmra.mrb[0].mxu0 %v1504
        %v1563 = vpop.f32.mrb[0].mxu0
        %v1564 = vadd.f32 0.0, %v1563
        %v1565 = vpop.f32.mrb[0].mxu0
        %v1566 = vadd.f32 0.0, %v1565
        %v1567 = vpop.f32.mrb[0].mxu0
        %v1568 = vadd.f32 0.0, %v1567
        %v1569 = vpop.f32.mrb[0].mxu0
        %v1570 = vadd.f32 0.0, %v1569
        %1571 = vmatprep.mubr.bf16.mxu0 0
        %1572 = vmatmul.mubr.bf16.gmra.mrb[0].mxu0 %v1507
        %v1573 = vpop.f32.mrb[0].mxu0
        %v1574 = vadd.f32 0.0, %v1573
        %v1575 = vpop.f32.mrb[0].mxu0
        %v1576 = vadd.f32 0.0, %v1575
        %v1577 = vpop.f32.mrb[0].mxu0
        %v1578 = vadd.f32 0.0, %v1577
        %v1579 = vpop.f32.mrb[0].mxu0
        %v1580 = vadd.f32 0.0, %v1579
        %1581 = vdwg.mxu0
        %v1582 = vlaneseq
        %vm1583 = vcmp.ge.s32.totalorder %v1582, 0
        %vm1584 = vcmp.lt.s32.totalorder %v1582, 256
        %vm1585 = vmand %vm1583, %vm1584
        %1586 = vst.msk [vmem:[#allocation4] ss:$8 sm:$0x3] %vm1585, 0.0
        %1587 = vst.msk [vmem:[#allocation4] ss:$8 sm:$0x0] %vm1585, 0.0
        %vm1604 = vcmask 1040384
        %v1605 = vrot.slane %v1544, 7
        %v1606 = vrot.slane %v1546, 7
        %v1607 = vrot.slane %v1548, 7
        %v1608 = vsel %vm1604, %v1605, %v1607
        %v1609 = vrot.slane %v1550, 7
        %v1610 = vsel %vm1604, %v1606, %v1609
        %v1611 = vrot.slane %v1554, 7
        %v1612 = vsel %vm1604, %v1607, %v1611
        %v1613 = vrot.slane %v1556, 7
        %v1614 = vsel %vm1604, %v1609, %v1613
        %v1615 = vrot.slane %v1558, 7
        %v1616 = vsel %vm1604, %v1611, %v1615
        %v1617 = vrot.slane %v1560, 7
        %v1618 = vsel %vm1604, %v1613, %v1617
        %v1619 = vrot.slane %v1564, 7
        %v1620 = vsel %vm1604, %v1615, %v1619
        %v1621 = vrot.slane %v1566, 7
        %v1622 = vsel %vm1604, %v1617, %v1621
        %v1623 = vrot.slane %v1568, 7
        %v1624 = vsel %vm1604, %v1619, %v1623
        %v1625 = vrot.slane %v1570, 7
        %v1626 = vsel %vm1604, %v1621, %v1625
        %v1627 = vrot.slane %v1574, 7
        %v1628 = vsel %vm1604, %v1623, %v1627
        %v1629 = vrot.slane %v1576, 7
        %v1630 = vsel %vm1604, %v1625, %v1629
        %v1631 = vrot.slane %v1578, 7
        %v1632 = vsel %vm1604, %v1627, %v1631
        %v1633 = vrot.slane %v1580, 7
        %v1634 = vsel %vm1604, %v1629, %v1633
        %1653 = vst [vmem:[#allocation4] sm:$0xfe] %v1605
        %1654 = vst [vmem:[#allocation4 + $0x8] sm:$0xfe] %v1606
        %1655 = vst [vmem:[#allocation4 + $0x10] sm:$0xff] %v1608
        %1656 = vst [vmem:[#allocation4 + $0x18] sm:$0xff] %v1610
        %1657 = vst [vmem:[#allocation4 + $0x20] sm:$0xff] %v1612
        %1658 = vst [vmem:[#allocation4 + $0x28] sm:$0xff] %v1614
        %1659 = vst [vmem:[#allocation4 + $0x30] sm:$0xff] %v1616
        %1660 = vst [vmem:[#allocation4 + $0x38] sm:$0xff] %v1618
        %1661 = vst [vmem:[#allocation4 + $0x40] sm:$0xff] %v1620
        %1662 = vst [vmem:[#allocation4 + $0x48] sm:$0xff] %v1622
        %1663 = vst [vmem:[#allocation4 + $0x50] sm:$0xff] %v1624
        %1664 = vst [vmem:[#allocation4 + $0x58] sm:$0xff] %v1626
        %1665 = vst [vmem:[#allocation4 + $0x60] sm:$0xff] %v1628
        %1666 = vst [vmem:[#allocation4 + $0x68] sm:$0xff] %v1630
        %1667 = vst [vmem:[#allocation4 + $0x70] sm:$0xff] %v1632
        %1668 = vst [vmem:[#allocation4 + $0x78] sm:$0xff] %v1634
        %1669 = vst [vmem:[#allocation4 + $0x80] sm:$0x1] %v1631
        %1670 = vst [vmem:[#allocation4 + $0x88] sm:$0x1] %v1633
        %s1671 = scalar_lea.vmem [#allocation4], 129
        %1672 = vst.msk [vmem:[%s1671] ss:$8 sm:$0x3] %vm1585, 0.0
        %1673 = vst.msk [vmem:[%s1671] ss:$8 sm:$0x0] %vm1585, 0.0
        %v1674 = vld [vmem:[#allocation4] sm:$0xff]
        %v1675 = vld [vmem:[#allocation4 + $0x8] sm:$0xff]
        %v1676 = vld [vmem:[#allocation4 + $0x10] sm:$0xff]
        %v1677 = vld [vmem:[#allocation4 + $0x18] sm:$0xff]
        %v1678 = vld [vmem:[#allocation4 + $0x20] sm:$0xff]
        %v1679 = vld [vmem:[#allocation4 + $0x28] sm:$0xff]
        %v1680 = vld [vmem:[#allocation4 + $0x30] sm:$0xff]
        %v1681 = vld [vmem:[#allocation4 + $0x38] sm:$0xff]
        %v1682 = vld [vmem:[#allocation4 + $0x40] sm:$0xff]
        %v1683 = vld [vmem:[#allocation4 + $0x48] sm:$0xff]
        %v1684 = vld [vmem:[#allocation4 + $0x50] sm:$0xff]
        %v1685 = vld [vmem:[#allocation4 + $0x58] sm:$0xff]
        %v1686 = vld [vmem:[#allocation4 + $0x60] sm:$0xff]
        %v1687 = vld [vmem:[#allocation4 + $0x68] sm:$0xff]
        %v1688 = vld [vmem:[#allocation4 + $0x70] sm:$0xff]
        %v1689 = vld [vmem:[#allocation4 + $0x78] sm:$0xff]
        %v1690 = vpack.c.bf16 %v1676, %v1674
        %v1691 = vpack.c.bf16 %v1677, %v1675
        %v1692 = vpack.c.bf16 %v1680, %v1678
        %v1693 = vpack.c.bf16 %v1681, %v1679
        %v1694 = vpack.c.bf16 %v1684, %v1682
        %v1695 = vpack.c.bf16 %v1685, %v1683
        %v1696 = vpack.c.bf16 %v1688, %v1686
        %v1697 = vpack.c.bf16 %v1689, %v1687
        %v1698 = vld [vmem:[#allocation8] sm:$0xff]
        %v1699 = vld [vmem:[#allocation8 + $0x8] sm:$0xff]
        %v1700 = vld [vmem:[#allocation8 + $0x10] sm:$0xff]
        %v1701 = vld [vmem:[#allocation8 + $0x18] sm:$0xff]
        %v1702 = vld [vmem:[#allocation8 + $0x20] sm:$0xff]
        %v1703 = vld [vmem:[#allocation8 + $0x28] sm:$0xff]
        %v1704 = vld [vmem:[#allocation8 + $0x30] sm:$0xff]
        %v1705 = vld [vmem:[#allocation8 + $0x38] sm:$0xff]
        %v1706 = vld [vmem:[#allocation8 + $0x40] sm:$0xff]
        %v1707 = vld [vmem:[#allocation8 + $0x48] sm:$0xff]
        %v1708 = vld [vmem:[#allocation8 + $0x50] sm:$0xff]
        %v1709 = vld [vmem:[#allocation8 + $0x58] sm:$0xff]
        %v1710 = vld [vmem:[#allocation8 + $0x60] sm:$0xff]
        %v1711 = vld [vmem:[#allocation8 + $0x68] sm:$0xff]
        %v1712 = vld [vmem:[#allocation8 + $0x70] sm:$0xff]
        %v1713 = vld [vmem:[#allocation8 + $0x78] sm:$0xff]
        %v1714 = vld [vmem:[#allocation8 + $0x80] sm:$0xff]
        %v1715 = vld [vmem:[#allocation8 + $0x88] sm:$0xff]
        %v1716 = vld [vmem:[#allocation8 + $0x90] sm:$0xff]
        %v1717 = vld [vmem:[#allocation8 + $0x98] sm:$0xff]
        %v1718 = vld [vmem:[#allocation8 + $0xa0] sm:$0xff]
        %v1719 = vld [vmem:[#allocation8 + $0xa8] sm:$0xff]
        %v1720 = vld [vmem:[#allocation8 + $0xb0] sm:$0xff]
        %v1721 = vld [vmem:[#allocation8 + $0xb8] sm:$0xff]
        %v1722 = vld [vmem:[#allocation8 + $0xc0] sm:$0xff]
        %v1723 = vld [vmem:[#allocation8 + $0xc8] sm:$0xff]
        %v1724 = vld [vmem:[#allocation8 + $0xd0] sm:$0xff]
        %v1725 = vld [vmem:[#allocation8 + $0xd8] sm:$0xff]
        %v1726 = vld [vmem:[#allocation8 + $0xe0] sm:$0xff]
        %v1727 = vld [vmem:[#allocation8 + $0xe8] sm:$0xff]
        %v1728 = vld [vmem:[#allocation8 + $0xf0] sm:$0xff]
        %v1729 = vld [vmem:[#allocation8 + $0xf8] sm:$0xff]
        %v1730 = vld [vmem:[#allocation4] sm:$0xfe]
        %v1731 = vld [vmem:[#allocation4 + $0x8] sm:$0xfe]
        %v1732 = vld [vmem:[#allocation4 + $0x80] sm:$0x1]
        %v1733 = vld [vmem:[#allocation4 + $0x88] sm:$0x1]
        %v1734 = vpack.c.bf16 %v1676, %v1730
        %v1735 = vpack.c.bf16 %v1677, %v1731
        %v1736 = vpack.c.bf16 %v1732, %v1732
        %v1737 = vpack.c.bf16 %v1733, %v1733
        %s1738 = scalar_lea.vmem [#allocation8], 256
        %v1739 = vld [vmem:[%s1738] sm:$0xff]
        %v1740 = vld [vmem:[%s1738 + $0x8] sm:$0xff]
        %v1741 = vld [vmem:[%s1738 + $0x10] sm:$0xff]
        %v1742 = vld [vmem:[%s1738 + $0x18] sm:$0xff]
        %v1743 = vld [vmem:[%s1738 + $0x20] sm:$0xff]
        %v1744 = vld [vmem:[%s1738 + $0x28] sm:$0xff]
        %v1745 = vld [vmem:[%s1738 + $0x30] sm:$0xff]
        %v1746 = vld [vmem:[%s1738 + $0x38] sm:$0xff]
        %v1747 = vld [vmem:[%s1738 + $0x40] sm:$0xff]
        %v1748 = vld [vmem:[%s1738 + $0x48] sm:$0xff]
        %v1749 = vld [vmem:[%s1738 + $0x50] sm:$0xff]
        %v1750 = vld [vmem:[%s1738 + $0x58] sm:$0xff]
        %v1751 = vld [vmem:[%s1738 + $0x60] sm:$0xff]
        %v1752 = vld [vmem:[%s1738 + $0x68] sm:$0xff]
        %v1753 = vld [vmem:[%s1738 + $0x70] sm:$0xff]
        %v1754 = vld [vmem:[%s1738 + $0x78] sm:$0xff]
        %v1755 = vld [vmem:[%s1738 + $0x80] sm:$0xff]
        %v1756 = vld [vmem:[%s1738 + $0x88] sm:$0xff]
        %v1757 = vld [vmem:[%s1738 + $0x90] sm:$0xff]
        %v1758 = vld [vmem:[%s1738 + $0x98] sm:$0xff]
        %v1759 = vld [vmem:[%s1738 + $0xa0] sm:$0xff]
        %v1760 = vld [vmem:[%s1738 + $0xa8] sm:$0xff]
        %v1761 = vld [vmem:[%s1738 + $0xb0] sm:$0xff]
        %v1762 = vld [vmem:[%s1738 + $0xb8] sm:$0xff]
        %v1763 = vld [vmem:[%s1738 + $0xc0] sm:$0xff]
        %v1764 = vld [vmem:[%s1738 + $0xc8] sm:$0xff]
        %v1765 = vld [vmem:[%s1738 + $0xd0] sm:$0xff]
        %v1766 = vld [vmem:[%s1738 + $0xd8] sm:$0xff]
        %v1767 = vld [vmem:[%s1738 + $0xe0] sm:$0xff]
        %v1768 = vld [vmem:[%s1738 + $0xe8] sm:$0xff]
        %v1769 = vld [vmem:[%s1738 + $0xf0] sm:$0xff]
        %v1770 = vld [vmem:[%s1738 + $0xf8] sm:$0xff]
        %vm1771 = vsmask.f32 7424
        %v1773 = vshrl.u32 %v1734, 16
        %v1775 = vshll.u32 %v1734, 16
        %v1777 = vrot.slane %v1775, 1
        %v1778 = vor.u32 %v1773, %v1777
        %v1780 = vshll.u32 %v1692, 16
        %v1782 = vrot.slane %v1780, 1
        %v1783 = vsel %vm1771, %v1778, %v1782
        %v1785 = vshrl.u32 %v1735, 16
        %v1787 = vshll.u32 %v1735, 16
        %v1789 = vrot.slane %v1787, 1
        %v1790 = vor.u32 %v1785, %v1789
        %v1792 = vshll.u32 %v1693, 16
        %v1794 = vrot.slane %v1792, 1
        %v1795 = vsel %vm1771, %v1790, %v1794
        %v1796 = vshrl.u32 %v1692, 16
        %v1798 = vor.u32 %v1796, %v1782
        %v1800 = vshll.u32 %v1694, 16
        %v1802 = vrot.slane %v1800, 1
        %v1803 = vsel %vm1771, %v1798, %v1802
        %v1804 = vshrl.u32 %v1693, 16
        %v1806 = vor.u32 %v1804, %v1794
        %v1808 = vshll.u32 %v1695, 16
        %v1810 = vrot.slane %v1808, 1
        %v1811 = vsel %vm1771, %v1806, %v1810
        %v1812 = vshrl.u32 %v1694, 16
        %v1814 = vor.u32 %v1812, %v1802
        %v1816 = vshll.u32 %v1696, 16
        %v1818 = vrot.slane %v1816, 1
        %v1819 = vsel %vm1771, %v1814, %v1818
        %v1820 = vshrl.u32 %v1695, 16
        %v1822 = vor.u32 %v1820, %v1810
        %v1824 = vshll.u32 %v1697, 16
        %v1826 = vrot.slane %v1824, 1
        %v1827 = vsel %vm1771, %v1822, %v1826
        %v1828 = vshrl.u32 %v1696, 16
        %v1830 = vor.u32 %v1828, %v1818
        %v1832 = vshll.u32 %v1736, 16
        %v1834 = vrot.slane %v1832, 1
        %v1835 = vsel %vm1771, %v1830, %v1834
        %v1836 = vshrl.u32 %v1697, 16
        %v1838 = vor.u32 %v1836, %v1826
        %v1840 = vshll.u32 %v1737, 16
        %v1842 = vrot.slane %v1840, 1
        %v1843 = vsel %vm1771, %v1838, %v1842
        %v1884 = vunpack.c.l.b16 %v1739
        %v1885 = vunpack.c.h.b16 %v1739
        %v1886 = vunpack.c.l.b16 %v1740
        %v1887 = vunpack.c.h.b16 %v1740
        %v1888 = vunpack.c.l.b16 %v1741
        %v1889 = vunpack.c.h.b16 %v1741
        %v1890 = vunpack.c.l.b16 %v1742
        %v1891 = vunpack.c.h.b16 %v1742
        %v1892 = vunpack.c.l.b16 %v1743
        %v1893 = vunpack.c.h.b16 %v1743
        %v1894 = vunpack.c.l.b16 %v1744
        %v1895 = vunpack.c.h.b16 %v1744
        %v1896 = vunpack.c.l.b16 %v1745
        %v1897 = vunpack.c.h.b16 %v1745
        %v1898 = vunpack.c.l.b16 %v1746
        %v1899 = vunpack.c.h.b16 %v1746
        %v1900 = vunpack.c.l.b16 %v1747
        %v1901 = vunpack.c.h.b16 %v1747
        %v1902 = vunpack.c.l.b16 %v1748
        %v1903 = vunpack.c.h.b16 %v1748
        %v1904 = vunpack.c.l.b16 %v1749
        %v1905 = vunpack.c.h.b16 %v1749
        %v1906 = vunpack.c.l.b16 %v1750
        %v1907 = vunpack.c.h.b16 %v1750
        %v1908 = vunpack.c.l.b16 %v1751
        %v1909 = vunpack.c.h.b16 %v1751
        %v1910 = vunpack.c.l.b16 %v1752
        %v1911 = vunpack.c.h.b16 %v1752
        %v1912 = vunpack.c.l.b16 %v1753
        %v1913 = vunpack.c.h.b16 %v1753
        %v1914 = vunpack.c.l.b16 %v1754
        %v1915 = vunpack.c.h.b16 %v1754
        %v1916 = vunpack.c.l.b16 %v1755
        %v1917 = vunpack.c.h.b16 %v1755
        %v1918 = vunpack.c.l.b16 %v1756
        %v1919 = vunpack.c.h.b16 %v1756
        %v1920 = vunpack.c.l.b16 %v1757
        %v1921 = vunpack.c.h.b16 %v1757
        %v1922 = vunpack.c.l.b16 %v1758
        %v1923 = vunpack.c.h.b16 %v1758
        %v1924 = vunpack.c.l.b16 %v1759
        %v1925 = vunpack.c.h.b16 %v1759
        %v1926 = vunpack.c.l.b16 %v1760
        %v1927 = vunpack.c.h.b16 %v1760
        %v1928 = vunpack.c.l.b16 %v1761
        %v1929 = vunpack.c.h.b16 %v1761
        %v1930 = vunpack.c.l.b16 %v1762
        %v1931 = vunpack.c.h.b16 %v1762
        %v1932 = vunpack.c.l.b16 %v1763
        %v1933 = vunpack.c.h.b16 %v1763
        %v1934 = vunpack.c.l.b16 %v1764
        %v1935 = vunpack.c.h.b16 %v1764
        %v1936 = vunpack.c.l.b16 %v1765
        %v1937 = vunpack.c.h.b16 %v1765
        %v1938 = vunpack.c.l.b16 %v1766
        %v1939 = vunpack.c.h.b16 %v1766
        %v1940 = vunpack.c.l.b16 %v1767
        %v1941 = vunpack.c.h.b16 %v1767
        %v1942 = vunpack.c.l.b16 %v1768
        %v1943 = vunpack.c.h.b16 %v1768
        %v1944 = vunpack.c.l.b16 %v1769
        %v1945 = vunpack.c.h.b16 %v1769
        %v1946 = vunpack.c.l.b16 %v1770
        %v1947 = vunpack.c.h.b16 %v1770
        %v1948 = vpack.c.b16 %v1886, %v1884
        %v1949 = vpack.c.b16 %v1887, %v1885
        %v1950 = vpack.c.b16 %v1890, %v1888
        %v1951 = vpack.c.b16 %v1891, %v1889
        %v1952 = vpack.c.b16 %v1894, %v1892
        %v1953 = vpack.c.b16 %v1895, %v1893
        %v1954 = vpack.c.b16 %v1898, %v1896
        %v1955 = vpack.c.b16 %v1899, %v1897
        %v1956 = vpack.c.b16 %v1902, %v1900
        %v1957 = vpack.c.b16 %v1903, %v1901
        %v1958 = vpack.c.b16 %v1906, %v1904
        %v1959 = vpack.c.b16 %v1907, %v1905
        %v1960 = vpack.c.b16 %v1910, %v1908
        %v1961 = vpack.c.b16 %v1911, %v1909
        %v1962 = vpack.c.b16 %v1914, %v1912
        %v1963 = vpack.c.b16 %v1915, %v1913
        %v1964 = vpack.c.b16 %v1918, %v1916
        %v1965 = vpack.c.b16 %v1919, %v1917
        %v1966 = vpack.c.b16 %v1922, %v1920
        %v1967 = vpack.c.b16 %v1923, %v1921
        %v1968 = vpack.c.b16 %v1926, %v1924
        %v1969 = vpack.c.b16 %v1927, %v1925
        %v1970 = vpack.c.b16 %v1930, %v1928
        %v1971 = vpack.c.b16 %v1931, %v1929
        %v1972 = vpack.c.b16 %v1934, %v1932
        %v1973 = vpack.c.b16 %v1935, %v1933
        %v1974 = vpack.c.b16 %v1938, %v1936
        %v1975 = vpack.c.b16 %v1939, %v1937
        %v1976 = vpack.c.b16 %v1942, %v1940
        %v1977 = vpack.c.b16 %v1943, %v1941
        %v1978 = vpack.c.b16 %v1946, %v1944
        %v1979 = vpack.c.b16 %v1947, %v1945
        %2012 = vmatprep.subr.bf16.mxu0 %v1949
        %2013 = vmatpush1.bf16.msra.mxu0 %v1948
        %2014 = vmatprep.subr.bf16.mxu0 %v1951
        %2015 = vmatpush1.bf16.msra.mxu0 %v1950
        %2016 = vmatprep.subr.bf16.mxu0 %v1953
        %2017 = vmatpush1.bf16.msra.mxu0 %v1952
        %2018 = vmatprep.subr.bf16.mxu0 %v1955
        %2019 = vmatpush1.bf16.msra.mxu0 %v1954
        %2020 = vmatprep.subr.bf16.mxu0 %v1957
        %2021 = vmatpush1.bf16.msra.mxu0 %v1956
        %2022 = vmatprep.subr.bf16.mxu0 %v1959
        %2023 = vmatpush1.bf16.msra.mxu0 %v1958
        %2024 = vmatprep.subr.bf16.mxu0 %v1961
        %2025 = vmatpush1.bf16.msra.mxu0 %v1960
        %2026 = vmatprep.subr.bf16.mxu0 %v1963
        %2027 = vmatpush1.bf16.msra.mxu0 %v1962
        %2028 = vmatprep.subr.bf16.mxu0 %v1965
        %2029 = vmatpush1.bf16.msra.mxu0 %v1964
        %2030 = vmatprep.subr.bf16.mxu0 %v1967
        %2031 = vmatpush1.bf16.msra.mxu0 %v1966
        %2032 = vmatprep.subr.bf16.mxu0 %v1969
        %2033 = vmatpush1.bf16.msra.mxu0 %v1968
        %2034 = vmatprep.subr.bf16.mxu0 %v1971
        %2035 = vmatpush1.bf16.msra.mxu0 %v1970
        %2036 = vmatprep.subr.bf16.mxu0 %v1973
        %2037 = vmatpush1.bf16.msra.mxu0 %v1972
        %2038 = vmatprep.subr.bf16.mxu0 %v1975
        %2039 = vmatpush1.bf16.msra.mxu0 %v1974
        %2040 = vmatprep.subr.bf16.mxu0 %v1977
        %2041 = vmatpush1.bf16.msra.mxu0 %v1976
        %2042 = vmatprep.subr.bf16.mxu0 %v1979
        %2043 = vmatpush1.bf16.msra.mxu0 %v1978
        %2044 = vmatprep.mubr.bf16.mxu0 %v1795
        %2045 = vmatmul.mubr.bf16.gmra.mrb[0].mxu0 %v1783
        %v2046 = vpop.f32.mrb[0].mxu0
        %v2047 = vadd.f32 0.0, %v2046
        %v2048 = vpop.f32.mrb[0].mxu0
        %v2049 = vadd.f32 0.0, %v2048
        %v2050 = vpop.f32.mrb[0].mxu0
        %v2051 = vadd.f32 0.0, %v2050
        %v2052 = vpop.f32.mrb[0].mxu0
        %v2053 = vadd.f32 0.0, %v2052
        %2054 = vmatprep.mubr.bf16.mxu0 %v1811
        %2055 = vmatmul.mubr.bf16.gmra.mrb[0].mxu0 %v1803
        %v2056 = vpop.f32.mrb[0].mxu0
        %v2057 = vadd.f32 0.0, %v2056
        %v2058 = vpop.f32.mrb[0].mxu0
        %v2059 = vadd.f32 0.0, %v2058
        %v2060 = vpop.f32.mrb[0].mxu0
        %v2061 = vadd.f32 0.0, %v2060
        %v2062 = vpop.f32.mrb[0].mxu0
        %v2063 = vadd.f32 0.0, %v2062
        %2064 = vmatprep.mubr.bf16.mxu0 %v1827
        %2065 = vmatmul.mubr.bf16.gmra.mrb[0].mxu0 %v1819
        %v2066 = vpop.f32.mrb[0].mxu0
        %v2067 = vadd.f32 0.0, %v2066
        %v2068 = vpop.f32.mrb[0].mxu0
        %v2069 = vadd.f32 0.0, %v2068
        %v2070 = vpop.f32.mrb[0].mxu0
        %v2071 = vadd.f32 0.0, %v2070
        %v2072 = vpop.f32.mrb[0].mxu0
        %v2073 = vadd.f32 0.0, %v2072
        %2074 = vmatprep.mubr.bf16.mxu0 %v1843
        %2075 = vmatmul.mubr.bf16.gmra.mrb[0].mxu0 %v1835
        %v2076 = vpop.f32.mrb[0].mxu0
        %v2077 = vadd.f32 0.0, %v2076
        %v2078 = vpop.f32.mrb[0].mxu0
        %v2079 = vadd.f32 0.0, %v2078
        %v2080 = vpop.f32.mrb[0].mxu0
        %v2081 = vadd.f32 0.0, %v2080
        %v2082 = vpop.f32.mrb[0].mxu0
        %v2083 = vadd.f32 0.0, %v2082
        %2084 = vdwg.mxu0
        %v2117 = vunpack.c.l.b16 %v1698
        %v2118 = vunpack.c.h.b16 %v1698
        %v2119 = vunpack.c.l.b16 %v1699
        %v2120 = vunpack.c.h.b16 %v1699
        %v2121 = vunpack.c.l.b16 %v1700
        %v2122 = vunpack.c.h.b16 %v1700
        %v2123 = vunpack.c.l.b16 %v1701
        %v2124 = vunpack.c.h.b16 %v1701
        %v2125 = vunpack.c.l.b16 %v1702
        %v2126 = vunpack.c.h.b16 %v1702
        %v2127 = vunpack.c.l.b16 %v1703
        %v2128 = vunpack.c.h.b16 %v1703
        %v2129 = vunpack.c.l.b16 %v1704
        %v2130 = vunpack.c.h.b16 %v1704
        %v2131 = vunpack.c.l.b16 %v1705
        %v2132 = vunpack.c.h.b16 %v1705
        %v2133 = vunpack.c.l.b16 %v1706
        %v2134 = vunpack.c.h.b16 %v1706
        %v2135 = vunpack.c.l.b16 %v1707
        %v2136 = vunpack.c.h.b16 %v1707
        %v2137 = vunpack.c.l.b16 %v1708
        %v2138 = vunpack.c.h.b16 %v1708
        %v2139 = vunpack.c.l.b16 %v1709
        %v2140 = vunpack.c.h.b16 %v1709
        %v2141 = vunpack.c.l.b16 %v1710
        %v2142 = vunpack.c.h.b16 %v1710
        %v2143 = vunpack.c.l.b16 %v1711
        %v2144 = vunpack.c.h.b16 %v1711
        %v2145 = vunpack.c.l.b16 %v1712
        %v2146 = vunpack.c.h.b16 %v1712
        %v2147 = vunpack.c.l.b16 %v1713
        %v2148 = vunpack.c.h.b16 %v1713
        %v2149 = vunpack.c.l.b16 %v1714
        %v2150 = vunpack.c.h.b16 %v1714
        %v2151 = vunpack.c.l.b16 %v1715
        %v2152 = vunpack.c.h.b16 %v1715
        %v2153 = vunpack.c.l.b16 %v1716
        %v2154 = vunpack.c.h.b16 %v1716
        %v2155 = vunpack.c.l.b16 %v1717
        %v2156 = vunpack.c.h.b16 %v1717
        %v2157 = vunpack.c.l.b16 %v1718
        %v2158 = vunpack.c.h.b16 %v1718
        %v2159 = vunpack.c.l.b16 %v1719
        %v2160 = vunpack.c.h.b16 %v1719
        %v2161 = vunpack.c.l.b16 %v1720
        %v2162 = vunpack.c.h.b16 %v1720
        %v2163 = vunpack.c.l.b16 %v1721
        %v2164 = vunpack.c.h.b16 %v1721
        %v2165 = vunpack.c.l.b16 %v1722
        %v2166 = vunpack.c.h.b16 %v1722
        %v2167 = vunpack.c.l.b16 %v1723
        %v2168 = vunpack.c.h.b16 %v1723
        %v2169 = vunpack.c.l.b16 %v1724
        %v2170 = vunpack.c.h.b16 %v1724
        %v2171 = vunpack.c.l.b16 %v1725
        %v2172 = vunpack.c.h.b16 %v1725
        %v2173 = vunpack.c.l.b16 %v1726
        %v2174 = vunpack.c.h.b16 %v1726
        %v2175 = vunpack.c.l.b16 %v1727
        %v2176 = vunpack.c.h.b16 %v1727
        %v2177 = vunpack.c.l.b16 %v1728
        %v2178 = vunpack.c.h.b16 %v1728
        %v2179 = vunpack.c.l.b16 %v1729
        %v2180 = vunpack.c.h.b16 %v1729
        %v2181 = vpack.c.b16 %v2119, %v2117
        %v2182 = vpack.c.b16 %v2120, %v2118
        %v2183 = vpack.c.b16 %v2123, %v2121
        %v2184 = vpack.c.b16 %v2124, %v2122
        %v2185 = vpack.c.b16 %v2127, %v2125
        %v2186 = vpack.c.b16 %v2128, %v2126
        %v2187 = vpack.c.b16 %v2131, %v2129
        %v2188 = vpack.c.b16 %v2132, %v2130
        %v2189 = vpack.c.b16 %v2135, %v2133
        %v2190 = vpack.c.b16 %v2136, %v2134
        %v2191 = vpack.c.b16 %v2139, %v2137
        %v2192 = vpack.c.b16 %v2140, %v2138
        %v2193 = vpack.c.b16 %v2143, %v2141
        %v2194 = vpack.c.b16 %v2144, %v2142
        %v2195 = vpack.c.b16 %v2147, %v2145
        %v2196 = vpack.c.b16 %v2148, %v2146
        %v2197 = vpack.c.b16 %v2151, %v2149
        %v2198 = vpack.c.b16 %v2152, %v2150
        %v2199 = vpack.c.b16 %v2155, %v2153
        %v2200 = vpack.c.b16 %v2156, %v2154
        %v2201 = vpack.c.b16 %v2159, %v2157
        %v2202 = vpack.c.b16 %v2160, %v2158
        %v2203 = vpack.c.b16 %v2163, %v2161
        %v2204 = vpack.c.b16 %v2164, %v2162
        %v2205 = vpack.c.b16 %v2167, %v2165
        %v2206 = vpack.c.b16 %v2168, %v2166
        %v2207 = vpack.c.b16 %v2171, %v2169
        %v2208 = vpack.c.b16 %v2172, %v2170
        %v2209 = vpack.c.b16 %v2175, %v2173
        %v2210 = vpack.c.b16 %v2176, %v2174
        %v2211 = vpack.c.b16 %v2179, %v2177
        %v2212 = vpack.c.b16 %v2180, %v2178
        %2245 = vmatprep.subr.bf16.mxu0 %v2182
        %2246 = vmatpush1.bf16.msra.mxu0 %v2181
        %2247 = vmatprep.subr.bf16.mxu0 %v2184
        %2248 = vmatpush1.bf16.msra.mxu0 %v2183
        %2249 = vmatprep.subr.bf16.mxu0 %v2186
        %2250 = vmatpush1.bf16.msra.mxu0 %v2185
        %2251 = vmatprep.subr.bf16.mxu0 %v2188
        %2252 = vmatpush1.bf16.msra.mxu0 %v2187
        %2253 = vmatprep.subr.bf16.mxu0 %v2190
        %2254 = vmatpush1.bf16.msra.mxu0 %v2189
        %2255 = vmatprep.subr.bf16.mxu0 %v2192
        %2256 = vmatpush1.bf16.msra.mxu0 %v2191
        %2257 = vmatprep.subr.bf16.mxu0 %v2194
        %2258 = vmatpush1.bf16.msra.mxu0 %v2193
        %2259 = vmatprep.subr.bf16.mxu0 %v2196
        %2260 = vmatpush1.bf16.msra.mxu0 %v2195
        %2261 = vmatprep.subr.bf16.mxu0 %v2198
        %2262 = vmatpush1.bf16.msra.mxu0 %v2197
        %2263 = vmatprep.subr.bf16.mxu0 %v2200
        %2264 = vmatpush1.bf16.msra.mxu0 %v2199
        %2265 = vmatprep.subr.bf16.mxu0 %v2202
        %2266 = vmatpush1.bf16.msra.mxu0 %v2201
        %2267 = vmatprep.subr.bf16.mxu0 %v2204
        %2268 = vmatpush1.bf16.msra.mxu0 %v2203
        %2269 = vmatprep.subr.bf16.mxu0 %v2206
        %2270 = vmatpush1.bf16.msra.mxu0 %v2205
        %2271 = vmatprep.subr.bf16.mxu0 %v2208
        %2272 = vmatpush1.bf16.msra.mxu0 %v2207
        %2273 = vmatprep.subr.bf16.mxu0 %v2210
        %2274 = vmatpush1.bf16.msra.mxu0 %v2209
        %2275 = vmatprep.subr.bf16.mxu0 %v2212
        %2276 = vmatpush1.bf16.msra.mxu0 %v2211
        %2277 = vmatprep.mubr.bf16.mxu0 %v1691
        %2278 = vmatmul.mubr.bf16.gmra.mrb[0].mxu0 %v1690
        %v2279 = vpop.f32.mrb[0].mxu0
        %v2280 = vadd.f32 %v2047, %v2279
        %v2281 = vpop.f32.mrb[0].mxu0
        %v2282 = vadd.f32 %v2049, %v2281
        %v2283 = vpop.f32.mrb[0].mxu0
        %v2284 = vadd.f32 %v2051, %v2283
        %v2285 = vpop.f32.mrb[0].mxu0
        %v2286 = vadd.f32 %v2053, %v2285
        %2287 = vmatprep.mubr.bf16.mxu0 %v1693
        %2288 = vmatmul.mubr.bf16.gmra.mrb[0].mxu0 %v1692
        %v2289 = vpop.f32.mrb[0].mxu0
        %v2290 = vadd.f32 %v2057, %v2289
        %v2291 = vpop.f32.mrb[0].mxu0
        %v2292 = vadd.f32 %v2059, %v2291
        %v2293 = vpop.f32.mrb[0].mxu0
        %v2294 = vadd.f32 %v2061, %v2293
        %v2295 = vpop.f32.mrb[0].mxu0
        %v2296 = vadd.f32 %v2063, %v2295
        %2297 = vmatprep.mubr.bf16.mxu0 %v1695
        %2298 = vmatmul.mubr.bf16.gmra.mrb[0].mxu0 %v1694
        %v2299 = vpop.f32.mrb[0].mxu0
        %v2300 = vadd.f32 %v2067, %v2299
        %v2301 = vpop.f32.mrb[0].mxu0
        %v2302 = vadd.f32 %v2069, %v2301
        %v2303 = vpop.f32.mrb[0].mxu0
        %v2304 = vadd.f32 %v2071, %v2303
        %v2305 = vpop.f32.mrb[0].mxu0
        %v2306 = vadd.f32 %v2073, %v2305
        %2307 = vmatprep.mubr.bf16.mxu0 %v1697
        %2308 = vmatmul.mubr.bf16.gmra.mrb[0].mxu0 %v1696
        %v2309 = vpop.f32.mrb[0].mxu0
        %v2310 = vadd.f32 %v2077, %v2309
        %v2311 = vpop.f32.mrb[0].mxu0
        %v2312 = vadd.f32 %v2079, %v2311
        %v2313 = vpop.f32.mrb[0].mxu0
        %v2314 = vadd.f32 %v2081, %v2313
        %v2315 = vpop.f32.mrb[0].mxu0
        %v2316 = vadd.f32 %v2083, %v2315
        %2317 = vdwg.mxu0
        %v2318 = vld [vmem:[#allocation4] sm:$0xfc]
        %v2319 = vld [vmem:[#allocation4 + $0x8] sm:$0xfc]
        %v2320 = vld [vmem:[#allocation4 + $0x80] sm:$0x3]
        %v2321 = vld [vmem:[#allocation4 + $0x88] sm:$0x3]
        %v2322 = vpack.c.bf16 %v1676, %v2318
        %v2323 = vpack.c.bf16 %v1677, %v2319
        %v2324 = vpack.c.bf16 %v2320, %v2320
        %v2325 = vpack.c.bf16 %v2321, %v2321
        %s2326 = scalar_lea.vmem [#allocation8], 512
        %v2327 = vld [vmem:[%s2326] sm:$0xff]
        %v2328 = vld [vmem:[%s2326 + $0x8] sm:$0xff]
        %v2329 = vld [vmem:[%s2326 + $0x10] sm:$0xff]
        %v2330 = vld [vmem:[%s2326 + $0x18] sm:$0xff]
        %v2331 = vld [vmem:[%s2326 + $0x20] sm:$0xff]
        %v2332 = vld [vmem:[%s2326 + $0x28] sm:$0xff]
        %v2333 = vld [vmem:[%s2326 + $0x30] sm:$0xff]
        %v2334 = vld [vmem:[%s2326 + $0x38] sm:$0xff]
        %v2335 = vld [vmem:[%s2326 + $0x40] sm:$0xff]
        %v2336 = vld [vmem:[%s2326 + $0x48] sm:$0xff]
        %v2337 = vld [vmem:[%s2326 + $0x50] sm:$0xff]
        %v2338 = vld [vmem:[%s2326 + $0x58] sm:$0xff]
        %v2339 = vld [vmem:[%s2326 + $0x60] sm:$0xff]
        %v2340 = vld [vmem:[%s2326 + $0x68] sm:$0xff]
        %v2341 = vld [vmem:[%s2326 + $0x70] sm:$0xff]
        %v2342 = vld [vmem:[%s2326 + $0x78] sm:$0xff]
        %v2343 = vld [vmem:[%s2326 + $0x80] sm:$0xff]
        %v2344 = vld [vmem:[%s2326 + $0x88] sm:$0xff]
        %v2345 = vld [vmem:[%s2326 + $0x90] sm:$0xff]
        %v2346 = vld [vmem:[%s2326 + $0x98] sm:$0xff]
        %v2347 = vld [vmem:[%s2326 + $0xa0] sm:$0xff]
        %v2348 = vld [vmem:[%s2326 + $0xa8] sm:$0xff]
        %v2349 = vld [vmem:[%s2326 + $0xb0] sm:$0xff]
        %v2350 = vld [vmem:[%s2326 + $0xb8] sm:$0xff]
        %v2351 = vld [vmem:[%s2326 + $0xc0] sm:$0xff]
        %v2352 = vld [vmem:[%s2326 + $0xc8] sm:$0xff]
        %v2353 = vld [vmem:[%s2326 + $0xd0] sm:$0xff]
        %v2354 = vld [vmem:[%s2326 + $0xd8] sm:$0xff]
        %v2355 = vld [vmem:[%s2326 + $0xe0] sm:$0xff]
        %v2356 = vld [vmem:[%s2326 + $0xe8] sm:$0xff]
        %v2357 = vld [vmem:[%s2326 + $0xf0] sm:$0xff]
        %v2358 = vld [vmem:[%s2326 + $0xf8] sm:$0xff]
        %vm2369 = vcmask 1046528
        %v2370 = vrot.slane %v2322, 1
        %v2371 = vrot.slane %v1692, 1
        %v2372 = vsel %vm2369, %v2370, %v2371
        %v2373 = vrot.slane %v2323, 1
        %v2374 = vrot.slane %v1693, 1
        %v2375 = vsel %vm2369, %v2373, %v2374
        %v2376 = vrot.slane %v1694, 1
        %v2377 = vsel %vm2369, %v2371, %v2376
        %v2378 = vrot.slane %v1695, 1
        %v2379 = vsel %vm2369, %v2374, %v2378
        %v2380 = vrot.slane %v1696, 1
        %v2381 = vsel %vm2369, %v2376, %v2380
        %v2382 = vrot.slane %v1697, 1
        %v2383 = vsel %vm2369, %v2378, %v2382
        %v2384 = vrot.slane %v2324, 1
        %v2385 = vsel %vm2369, %v2380, %v2384
        %v2386 = vrot.slane %v2325, 1
        %v2387 = vsel %vm2369, %v2382, %v2386
        %v2428 = vunpack.c.l.b16 %v2327
        %v2429 = vunpack.c.h.b16 %v2327
        %v2430 = vunpack.c.l.b16 %v2328
        %v2431 = vunpack.c.h.b16 %v2328
        %v2432 = vunpack.c.l.b16 %v2329
        %v2433 = vunpack.c.h.b16 %v2329
        %v2434 = vunpack.c.l.b16 %v2330
        %v2435 = vunpack.c.h.b16 %v2330
        %v2436 = vunpack.c.l.b16 %v2331
        %v2437 = vunpack.c.h.b16 %v2331
        %v2438 = vunpack.c.l.b16 %v2332
        %v2439 = vunpack.c.h.b16 %v2332
        %v2440 = vunpack.c.l.b16 %v2333
        %v2441 = vunpack.c.h.b16 %v2333
        %v2442 = vunpack.c.l.b16 %v2334
        %v2443 = vunpack.c.h.b16 %v2334
        %v2444 = vunpack.c.l.b16 %v2335
        %v2445 = vunpack.c.h.b16 %v2335
        %v2446 = vunpack.c.l.b16 %v2336
        %v2447 = vunpack.c.h.b16 %v2336
        %v2448 = vunpack.c.l.b16 %v2337
        %v2449 = vunpack.c.h.b16 %v2337
        %v2450 = vunpack.c.l.b16 %v2338
        %v2451 = vunpack.c.h.b16 %v2338
        %v2452 = vunpack.c.l.b16 %v2339
        %v2453 = vunpack.c.h.b16 %v2339
        %v2454 = vunpack.c.l.b16 %v2340
        %v2455 = vunpack.c.h.b16 %v2340
        %v2456 = vunpack.c.l.b16 %v2341
        %v2457 = vunpack.c.h.b16 %v2341
        %v2458 = vunpack.c.l.b16 %v2342
        %v2459 = vunpack.c.h.b16 %v2342
        %v2460 = vunpack.c.l.b16 %v2343
        %v2461 = vunpack.c.h.b16 %v2343
        %v2462 = vunpack.c.l.b16 %v2344
        %v2463 = vunpack.c.h.b16 %v2344
        %v2464 = vunpack.c.l.b16 %v2345
        %v2465 = vunpack.c.h.b16 %v2345
        %v2466 = vunpack.c.l.b16 %v2346
        %v2467 = vunpack.c.h.b16 %v2346
        %v2468 = vunpack.c.l.b16 %v2347
        %v2469 = vunpack.c.h.b16 %v2347
        %v2470 = vunpack.c.l.b16 %v2348
        %v2471 = vunpack.c.h.b16 %v2348
        %v2472 = vunpack.c.l.b16 %v2349
        %v2473 = vunpack.c.h.b16 %v2349
        %v2474 = vunpack.c.l.b16 %v2350
        %v2475 = vunpack.c.h.b16 %v2350
        %v2476 = vunpack.c.l.b16 %v2351
        %v2477 = vunpack.c.h.b16 %v2351
        %v2478 = vunpack.c.l.b16 %v2352
        %v2479 = vunpack.c.h.b16 %v2352
        %v2480 = vunpack.c.l.b16 %v2353
        %v2481 = vunpack.c.h.b16 %v2353
        %v2482 = vunpack.c.l.b16 %v2354
        %v2483 = vunpack.c.h.b16 %v2354
        %v2484 = vunpack.c.l.b16 %v2355
        %v2485 = vunpack.c.h.b16 %v2355
        %v2486 = vunpack.c.l.b16 %v2356
        %v2487 = vunpack.c.h.b16 %v2356
        %v2488 = vunpack.c.l.b16 %v2357
        %v2489 = vunpack.c.h.b16 %v2357
        %v2490 = vunpack.c.l.b16 %v2358
        %v2491 = vunpack.c.h.b16 %v2358
        %v2492 = vpack.c.b16 %v2430, %v2428
        %v2493 = vpack.c.b16 %v2431, %v2429
        %v2494 = vpack.c.b16 %v2434, %v2432
        %v2495 = vpack.c.b16 %v2435, %v2433
        %v2496 = vpack.c.b16 %v2438, %v2436
        %v2497 = vpack.c.b16 %v2439, %v2437
        %v2498 = vpack.c.b16 %v2442, %v2440
        %v2499 = vpack.c.b16 %v2443, %v2441
        %v2500 = vpack.c.b16 %v2446, %v2444
        %v2501 = vpack.c.b16 %v2447, %v2445
        %v2502 = vpack.c.b16 %v2450, %v2448
        %v2503 = vpack.c.b16 %v2451, %v2449
        %v2504 = vpack.c.b16 %v2454, %v2452
        %v2505 = vpack.c.b16 %v2455, %v2453
        %v2506 = vpack.c.b16 %v2458, %v2456
        %v2507 = vpack.c.b16 %v2459, %v2457
        %v2508 = vpack.c.b16 %v2462, %v2460
        %v2509 = vpack.c.b16 %v2463, %v2461
        %v2510 = vpack.c.b16 %v2466, %v2464
        %v2511 = vpack.c.b16 %v2467, %v2465
        %v2512 = vpack.c.b16 %v2470, %v2468
        %v2513 = vpack.c.b16 %v2471, %v2469
        %v2514 = vpack.c.b16 %v2474, %v2472
        %v2515 = vpack.c.b16 %v2475, %v2473
        %v2516 = vpack.c.b16 %v2478, %v2476
        %v2517 = vpack.c.b16 %v2479, %v2477
        %v2518 = vpack.c.b16 %v2482, %v2480
        %v2519 = vpack.c.b16 %v2483, %v2481
        %v2520 = vpack.c.b16 %v2486, %v2484
        %v2521 = vpack.c.b16 %v2487, %v2485
        %v2522 = vpack.c.b16 %v2490, %v2488
        %v2523 = vpack.c.b16 %v2491, %v2489
        %2556 = vmatprep.subr.bf16.mxu0 %v2493
        %2557 = vmatpush1.bf16.msra.mxu0 %v2492
        %2558 = vmatprep.subr.bf16.mxu0 %v2495
        %2559 = vmatpush1.bf16.msra.mxu0 %v2494
        %2560 = vmatprep.subr.bf16.mxu0 %v2497
        %2561 = vmatpush1.bf16.msra.mxu0 %v2496
        %2562 = vmatprep.subr.bf16.mxu0 %v2499
        %2563 = vmatpush1.bf16.msra.mxu0 %v2498
        %2564 = vmatprep.subr.bf16.mxu0 %v2501
        %2565 = vmatpush1.bf16.msra.mxu0 %v2500
        %2566 = vmatprep.subr.bf16.mxu0 %v2503
        %2567 = vmatpush1.bf16.msra.mxu0 %v2502
        %2568 = vmatprep.subr.bf16.mxu0 %v2505
        %2569 = vmatpush1.bf16.msra.mxu0 %v2504
        %2570 = vmatprep.subr.bf16.mxu0 %v2507
        %2571 = vmatpush1.bf16.msra.mxu0 %v2506
        %2572 = vmatprep.subr.bf16.mxu0 %v2509
        %2573 = vmatpush1.bf16.msra.mxu0 %v2508
        %2574 = vmatprep.subr.bf16.mxu0 %v2511
        %2575 = vmatpush1.bf16.msra.mxu0 %v2510
        %2576 = vmatprep.subr.bf16.mxu0 %v2513
        %2577 = vmatpush1.bf16.msra.mxu0 %v2512
        %2578 = vmatprep.subr.bf16.mxu0 %v2515
        %2579 = vmatpush1.bf16.msra.mxu0 %v2514
        %2580 = vmatprep.subr.bf16.mxu0 %v2517
        %2581 = vmatpush1.bf16.msra.mxu0 %v2516
        %2582 = vmatprep.subr.bf16.mxu0 %v2519
        %2583 = vmatpush1.bf16.msra.mxu0 %v2518
        %2584 = vmatprep.subr.bf16.mxu0 %v2521
        %2585 = vmatpush1.bf16.msra.mxu0 %v2520
        %2586 = vmatprep.subr.bf16.mxu0 %v2523
        %2587 = vmatpush1.bf16.msra.mxu0 %v2522
        %2588 = vmatprep.mubr.bf16.mxu0 %v2375
        %2589 = vmatmul.mubr.bf16.gmra.mrb[0].mxu0 %v2372
        %v2590 = vpop.f32.mrb[0].mxu0
        %v2591 = vadd.f32 0.0, %v2590
        %v2592 = vpop.f32.mrb[0].mxu0
        %v2593 = vadd.f32 0.0, %v2592
        %v2594 = vpop.f32.mrb[0].mxu0
        %v2595 = vadd.f32 0.0, %v2594
        %v2596 = vpop.f32.mrb[0].mxu0
        %v2597 = vadd.f32 0.0, %v2596
        %2598 = vmatprep.mubr.bf16.mxu0 %v2379
        %2599 = vmatmul.mubr.bf16.gmra.mrb[0].mxu0 %v2377
        %v2600 = vpop.f32.mrb[0].mxu0
        %v2601 = vadd.f32 0.0, %v2600
        %v2602 = vpop.f32.mrb[0].mxu0
        %v2603 = vadd.f32 0.0, %v2602
        %v2604 = vpop.f32.mrb[0].mxu0
        %v2605 = vadd.f32 0.0, %v2604
        %v2606 = vpop.f32.mrb[0].mxu0
        %v2607 = vadd.f32 0.0, %v2606
        %2608 = vmatprep.mubr.bf16.mxu0 %v2383
        %2609 = vmatmul.mubr.bf16.gmra.mrb[0].mxu0 %v2381
        %v2610 = vpop.f32.mrb[0].mxu0
        %v2611 = vadd.f32 0.0, %v2610
        %v2612 = vpop.f32.mrb[0].mxu0
        %v2613 = vadd.f32 0.0, %v2612
        %v2614 = vpop.f32.mrb[0].mxu0
        %v2615 = vadd.f32 0.0, %v2614
        %v2616 = vpop.f32.mrb[0].mxu0
        %v2617 = vadd.f32 0.0, %v2616
        %2618 = vmatprep.mubr.bf16.mxu0 %v2387
        %2619 = vmatmul.mubr.bf16.gmra.mrb[0].mxu0 %v2385
        %v2620 = vpop.f32.mrb[0].mxu0
        %v2621 = vadd.f32 0.0, %v2620
        %v2622 = vpop.f32.mrb[0].mxu0
        %v2623 = vadd.f32 0.0, %v2622
        %v2624 = vpop.f32.mrb[0].mxu0
        %v2625 = vadd.f32 0.0, %v2624
        %v2626 = vpop.f32.mrb[0].mxu0
        %v2627 = vadd.f32 0.0, %v2626
        %2628 = vdwg.mxu0
        %v2629 = vadd.f32 %v2280, %v2591
        %v2630 = vadd.f32 %v2282, %v2593
        %v2631 = vadd.f32 %v2284, %v2595
        %v2632 = vadd.f32 %v2286, %v2597
        %v2633 = vadd.f32 %v2290, %v2601
        %v2634 = vadd.f32 %v2292, %v2603
        %v2635 = vadd.f32 %v2294, %v2605
        %v2636 = vadd.f32 %v2296, %v2607
        %v2637 = vadd.f32 %v2300, %v2611
        %v2638 = vadd.f32 %v2302, %v2613
        %v2639 = vadd.f32 %v2304, %v2615
        %v2640 = vadd.f32 %v2306, %v2617
        %v2641 = vadd.f32 %v2310, %v2621
        %v2642 = vadd.f32 %v2312, %v2623
        %v2643 = vadd.f32 %v2314, %v2625
        %v2644 = vadd.f32 %v2316, %v2627
        %v2645 = vld [vmem:[%s9] sm:$0x3]
        %v2647 = vlaneseq
        %v2648 = vshrl.u32 %v2647, 7
        %v2649 = vsub.s32 0, %v2648
        %v2650 = vrot.slane %v2645, %v2649
        %v2651 = vlaneseq
        %v2652 = vshrl.u32 %v2651, 7
        %v2653 = vsub.s32 1, %v2652
        %v2654 = vrot.slane %v2645, %v2653
        %v2657 = vadd.f32 %v2629, %v2650
        %v2658 = vadd.f32 %v2630, %v2654
        %v2659 = vadd.f32 %v2631, %v2650
        %v2660 = vadd.f32 %v2632, %v2654
        %v2661 = vadd.f32 %v2633, %v2650
        %v2662 = vadd.f32 %v2634, %v2654
        %v2663 = vadd.f32 %v2635, %v2650
        %v2664 = vadd.f32 %v2636, %v2654
        %v2665 = vadd.f32 %v2637, %v2650
        %v2666 = vadd.f32 %v2638, %v2654
        %v2667 = vadd.f32 %v2639, %v2650
        %v2668 = vadd.f32 %v2640, %v2654
        %v2669 = vadd.f32 %v2641, %v2650
        %v2670 = vadd.f32 %v2642, %v2654
        %v2671 = vadd.f32 %v2643, %v2650
        %v2672 = vadd.f32 %v2644, %v2654
        %v2673 = vmax.f32 %v2657, 0.0
        %v2674 = vmax.f32 %v2658, 0.0
        %v2675 = vmax.f32 %v2659, 0.0
        %v2676 = vmax.f32 %v2660, 0.0
        %v2677 = vmax.f32 %v2661, 0.0
        %v2678 = vmax.f32 %v2662, 0.0
        %v2679 = vmax.f32 %v2663, 0.0
        %v2680 = vmax.f32 %v2664, 0.0
        %v2681 = vmax.f32 %v2665, 0.0
        %v2682 = vmax.f32 %v2666, 0.0
        %v2683 = vmax.f32 %v2667, 0.0
        %v2684 = vmax.f32 %v2668, 0.0
        %v2685 = vmax.f32 %v2669, 0.0
        %v2686 = vmax.f32 %v2670, 0.0
        %v2687 = vmax.f32 %v2671, 0.0
        %v2688 = vmax.f32 %v2672, 0.0
        %v2689 = vld [vmem:[%s10] sm:$0xf]
        %v2690 = vld [vmem:[%s10 + $0x4] sm:$0xf]
        %v2691 = vld [vmem:[%s10 + $0x8] sm:$0xf]
        %v2692 = vld [vmem:[%s10 + $0xc] sm:$0xf]
        %v2693 = vld [vmem:[%s10 + $0x10] sm:$0xf]
        %v2694 = vld [vmem:[%s10 + $0x14] sm:$0xf]
        %v2695 = vld [vmem:[%s10 + $0x18] sm:$0xf]
        %v2696 = vld [vmem:[%s10 + $0x1c] sm:$0xf]
        %v2697 = vld [vmem:[%s10 + $0x20] sm:$0xf]
        %v2698 = vld [vmem:[%s10 + $0x24] sm:$0xf]
        %v2699 = vld [vmem:[%s10 + $0x28] sm:$0xf]
        %v2700 = vld [vmem:[%s10 + $0x2c] sm:$0xf]
        %v2701 = vld [vmem:[%s10 + $0x30] sm:$0xf]
        %v2702 = vld [vmem:[%s10 + $0x34] sm:$0xf]
        %v2703 = vld [vmem:[%s10 + $0x38] sm:$0xf]
        %v2704 = vld [vmem:[%s10 + $0x3c] sm:$0xf]
        %v2705 = vpack.c.bf16 %v2675, %v2673
        %v2706 = vpack.c.bf16 %v2676, %v2674
        %v2707 = vpack.c.bf16 %v2679, %v2677
        %v2708 = vpack.c.bf16 %v2680, %v2678
        %v2709 = vpack.c.bf16 %v2683, %v2681
        %v2710 = vpack.c.bf16 %v2684, %v2682
        %v2711 = vpack.c.bf16 %v2687, %v2685
        %v2712 = vpack.c.bf16 %v2688, %v2686
        %v2729 = vunpack.c.l.b16 %v2689
        %v2730 = vunpack.c.l.b16 %v2690
        %v2731 = vunpack.c.l.b16 %v2691
        %v2732 = vunpack.c.l.b16 %v2692
        %v2733 = vunpack.c.l.b16 %v2693
        %v2734 = vunpack.c.l.b16 %v2694
        %v2735 = vunpack.c.l.b16 %v2695
        %v2736 = vunpack.c.l.b16 %v2696
        %v2737 = vunpack.c.l.b16 %v2697
        %v2738 = vunpack.c.l.b16 %v2698
        %v2739 = vunpack.c.l.b16 %v2699
        %v2740 = vunpack.c.l.b16 %v2700
        %v2741 = vunpack.c.l.b16 %v2701
        %v2742 = vunpack.c.l.b16 %v2702
        %v2743 = vunpack.c.l.b16 %v2703
        %v2744 = vunpack.c.l.b16 %v2704
        %v2745 = vpack.c.b16 %v2730, %v2729
        %v2746 = vpack.c.b16 %v2732, %v2731
        %v2747 = vpack.c.b16 %v2734, %v2733
        %v2748 = vpack.c.b16 %v2736, %v2735
        %v2749 = vpack.c.b16 %v2738, %v2737
        %v2750 = vpack.c.b16 %v2740, %v2739
        %v2751 = vpack.c.b16 %v2742, %v2741
        %v2752 = vpack.c.b16 %v2744, %v2743
        %vm2753 = vcmask 523264
        %v2755 = vsel %vm2753, %v2745, 0
        %v2758 = vsel %vm2753, %v2746, 0
        %v2761 = vsel %vm2753, %v2747, 0
        %v2764 = vsel %vm2753, %v2748, 0
        %v2767 = vsel %vm2753, %v2749, 0
        %v2770 = vsel %vm2753, %v2750, 0
        %v2773 = vsel %vm2753, %v2751, 0
        %v2776 = vsel %vm2753, %v2752, 0
        %2778 = vmatprep.subr.bf16.mxu0 %v2706
        %2779 = vmatpush1.bf16.msra.mxu0 %v2705
        %2780 = vmatprep.subr.bf16.mxu0 %v2708
        %2781 = vmatpush1.bf16.msra.mxu0 %v2707
        %2782 = vmatprep.subr.bf16.mxu0 %v2710
        %2783 = vmatpush1.bf16.msra.mxu0 %v2709
        %2784 = vmatprep.subr.bf16.mxu0 %v2712
        %2785 = vmatpush1.bf16.msra.mxu0 %v2711
        %2786 = vmatprep.subr.bf16.mxu0 0
        %2787 = vmatpush1.bf16.msra.mxu0 0
        %2788 = vmatprep.subr.bf16.mxu0 0
        %2789 = vmatpush1.bf16.msra.mxu0 0
        %2790 = vmatprep.subr.bf16.mxu0 0
        %2791 = vmatpush1.bf16.msra.mxu0 0
        %2792 = vmatprep.subr.bf16.mxu0 0
        %2793 = vmatpush1.bf16.msra.mxu0 0
        %2794 = vmatprep.subr.bf16.mxu0 0
        %2795 = vmatpush1.bf16.msra.mxu0 0
        %2796 = vmatprep.subr.bf16.mxu0 0
        %2797 = vmatpush1.bf16.msra.mxu0 0
        %2798 = vmatprep.subr.bf16.mxu0 0
        %2799 = vmatpush1.bf16.msra.mxu0 0
        %2800 = vmatprep.subr.bf16.mxu0 0
        %2801 = vmatpush1.bf16.msra.mxu0 0
        %2802 = vmatprep.subr.bf16.mxu0 0
        %2803 = vmatpush1.bf16.msra.mxu0 0
        %2804 = vmatprep.subr.bf16.mxu0 0
        %2805 = vmatpush1.bf16.msra.mxu0 0
        %2806 = vmatprep.subr.bf16.mxu0 0
        %2807 = vmatpush1.bf16.msra.mxu0 0
        %2808 = vmatprep.subr.bf16.mxu0 0
        %2809 = vmatpush1.bf16.msra.mxu0 0
        %2810 = vmatprep.mubr.bf16.mxu0 0
        %2811 = vmatmul.mubr.bf16.gmra.mrb[0].mxu0 %v2755
        %v2812 = vpop.f32.mrb[0].mxu0
        %v2813 = vadd.f32 0.0, %v2812
        %v2814 = vpop.f32.mrb[0].mxu0
        %v2815 = vadd.f32 0.0, %v2814
        %v2816 = vpop.f32.mrb[0].mxu0
        %v2817 = vadd.f32 0.0, %v2816
        %v2818 = vpop.f32.mrb[0].mxu0
        %v2819 = vadd.f32 0.0, %v2818
        %2820 = vmatprep.mubr.bf16.mxu0 0
        %2821 = vmatmul.mubr.bf16.gmra.mrb[0].mxu0 %v2758
        %v2822 = vpop.f32.mrb[0].mxu0
        %v2823 = vadd.f32 0.0, %v2822
        %v2824 = vpop.f32.mrb[0].mxu0
        %v2825 = vadd.f32 0.0, %v2824
        %v2826 = vpop.f32.mrb[0].mxu0
        %v2827 = vadd.f32 0.0, %v2826
        %v2828 = vpop.f32.mrb[0].mxu0
        %v2829 = vadd.f32 0.0, %v2828
        %2830 = vmatprep.mubr.bf16.mxu0 0
        %2831 = vmatmul.mubr.bf16.gmra.mrb[0].mxu0 %v2761
        %v2832 = vpop.f32.mrb[0].mxu0
        %v2833 = vadd.f32 0.0, %v2832
        %v2834 = vpop.f32.mrb[0].mxu0
        %v2835 = vadd.f32 0.0, %v2834
        %v2836 = vpop.f32.mrb[0].mxu0
        %v2837 = vadd.f32 0.0, %v2836
        %v2838 = vpop.f32.mrb[0].mxu0
        %v2839 = vadd.f32 0.0, %v2838
        %2840 = vmatprep.mubr.bf16.mxu0 0
        %2841 = vmatmul.mubr.bf16.gmra.mrb[0].mxu0 %v2764
        %v2842 = vpop.f32.mrb[0].mxu0
        %v2843 = vadd.f32 0.0, %v2842
        %v2844 = vpop.f32.mrb[0].mxu0
        %v2845 = vadd.f32 0.0, %v2844
        %v2846 = vpop.f32.mrb[0].mxu0
        %v2847 = vadd.f32 0.0, %v2846
        %v2848 = vpop.f32.mrb[0].mxu0
        %v2849 = vadd.f32 0.0, %v2848
        %2850 = vmatprep.mubr.bf16.mxu0 0
        %2851 = vmatmul.mubr.bf16.gmra.mrb[0].mxu0 %v2767
        %v2852 = vpop.f32.mrb[0].mxu0
        %v2853 = vadd.f32 0.0, %v2852
        %v2854 = vpop.f32.mrb[0].mxu0
        %v2855 = vadd.f32 0.0, %v2854
        %v2856 = vpop.f32.mrb[0].mxu0
        %v2857 = vadd.f32 0.0, %v2856
        %v2858 = vpop.f32.mrb[0].mxu0
        %v2859 = vadd.f32 0.0, %v2858
        %2860 = vmatprep.mubr.bf16.mxu0 0
        %2861 = vmatmul.mubr.bf16.gmra.mrb[0].mxu0 %v2770
        %v2862 = vpop.f32.mrb[0].mxu0
        %v2863 = vadd.f32 0.0, %v2862
        %v2864 = vpop.f32.mrb[0].mxu0
        %v2865 = vadd.f32 0.0, %v2864
        %v2866 = vpop.f32.mrb[0].mxu0
        %v2867 = vadd.f32 0.0, %v2866
        %v2868 = vpop.f32.mrb[0].mxu0
        %v2869 = vadd.f32 0.0, %v2868
        %2870 = vmatprep.mubr.bf16.mxu0 0
        %2871 = vmatmul.mubr.bf16.gmra.mrb[0].mxu0 %v2773
        %v2872 = vpop.f32.mrb[0].mxu0
        %v2873 = vadd.f32 0.0, %v2872
        %v2874 = vpop.f32.mrb[0].mxu0
        %v2875 = vadd.f32 0.0, %v2874
        %v2876 = vpop.f32.mrb[0].mxu0
        %v2877 = vadd.f32 0.0, %v2876
        %v2878 = vpop.f32.mrb[0].mxu0
        %v2879 = vadd.f32 0.0, %v2878
        %2880 = vmatprep.mubr.bf16.mxu0 0
        %2881 = vmatmul.mubr.bf16.gmra.mrb[0].mxu0 %v2776
        %v2882 = vpop.f32.mrb[0].mxu0
        %v2883 = vadd.f32 0.0, %v2882
        %v2884 = vpop.f32.mrb[0].mxu0
        %v2885 = vadd.f32 0.0, %v2884
        %v2886 = vpop.f32.mrb[0].mxu0
        %v2887 = vadd.f32 0.0, %v2886
        %v2888 = vpop.f32.mrb[0].mxu0
        %v2889 = vadd.f32 0.0, %v2888
        %2890 = vdwg.mxu0
        %2891 = vst.msk [vmem:[#allocation5] ss:$8 sm:$0x3] %vm1585, 0.0
        %2892 = vst.msk [vmem:[#allocation5] ss:$8 sm:$0x0] %vm1585, 0.0
        %v2925 = vrot.slane %v2813, 7
        %v2926 = vrot.slane %v2815, 7
        %v2927 = vrot.slane %v2817, 7
        %v2928 = vsel %vm1604, %v2925, %v2927
        %v2929 = vrot.slane %v2819, 7
        %v2930 = vsel %vm1604, %v2926, %v2929
        %v2931 = vrot.slane %v2823, 7
        %v2932 = vsel %vm1604, %v2927, %v2931
        %v2933 = vrot.slane %v2825, 7
        %v2934 = vsel %vm1604, %v2929, %v2933
        %v2935 = vrot.slane %v2827, 7
        %v2936 = vsel %vm1604, %v2931, %v2935
        %v2937 = vrot.slane %v2829, 7
        %v2938 = vsel %vm1604, %v2933, %v2937
        %v2939 = vrot.slane %v2833, 7
        %v2940 = vsel %vm1604, %v2935, %v2939
        %v2941 = vrot.slane %v2835, 7
        %v2942 = vsel %vm1604, %v2937, %v2941
        %v2943 = vrot.slane %v2837, 7
        %v2944 = vsel %vm1604, %v2939, %v2943
        %v2945 = vrot.slane %v2839, 7
        %v2946 = vsel %vm1604, %v2941, %v2945
        %v2947 = vrot.slane %v2843, 7
        %v2948 = vsel %vm1604, %v2943, %v2947
        %v2949 = vrot.slane %v2845, 7
        %v2950 = vsel %vm1604, %v2945, %v2949
        %v2951 = vrot.slane %v2847, 7
        %v2952 = vsel %vm1604, %v2947, %v2951
        %v2953 = vrot.slane %v2849, 7
        %v2954 = vsel %vm1604, %v2949, %v2953
        %v2955 = vrot.slane %v2853, 7
        %v2956 = vsel %vm1604, %v2951, %v2955
        %v2957 = vrot.slane %v2855, 7
        %v2958 = vsel %vm1604, %v2953, %v2957
        %v2959 = vrot.slane %v2857, 7
        %v2960 = vsel %vm1604, %v2955, %v2959
        %v2961 = vrot.slane %v2859, 7
        %v2962 = vsel %vm1604, %v2957, %v2961
        %v2963 = vrot.slane %v2863, 7
        %v2964 = vsel %vm1604, %v2959, %v2963
        %v2965 = vrot.slane %v2865, 7
        %v2966 = vsel %vm1604, %v2961, %v2965
        %v2967 = vrot.slane %v2867, 7
        %v2968 = vsel %vm1604, %v2963, %v2967
        %v2969 = vrot.slane %v2869, 7
        %v2970 = vsel %vm1604, %v2965, %v2969
        %v2971 = vrot.slane %v2873, 7
        %v2972 = vsel %vm1604, %v2967, %v2971
        %v2973 = vrot.slane %v2875, 7
        %v2974 = vsel %vm1604, %v2969, %v2973
        %v2975 = vrot.slane %v2877, 7
        %v2976 = vsel %vm1604, %v2971, %v2975
        %v2977 = vrot.slane %v2879, 7
        %v2978 = vsel %vm1604, %v2973, %v2977
        %v2979 = vrot.slane %v2883, 7
        %v2980 = vsel %vm1604, %v2975, %v2979
        %v2981 = vrot.slane %v2885, 7
        %v2982 = vsel %vm1604, %v2977, %v2981
        %v2983 = vrot.slane %v2887, 7
        %v2984 = vsel %vm1604, %v2979, %v2983
        %v2985 = vrot.slane %v2889, 7
        %v2986 = vsel %vm1604, %v2981, %v2985
        %3021 = vst [vmem:[#allocation5] sm:$0xfe] %v2925
        %3022 = vst [vmem:[#allocation5 + $0x8] sm:$0xfe] %v2926
        %3023 = vst [vmem:[#allocation5 + $0x10] sm:$0xff] %v2928
        %3024 = vst [vmem:[#allocation5 + $0x18] sm:$0xff] %v2930
        %3025 = vst [vmem:[#allocation5 + $0x20] sm:$0xff] %v2932
        %3026 = vst [vmem:[#allocation5 + $0x28] sm:$0xff] %v2934
        %3027 = vst [vmem:[#allocation5 + $0x30] sm:$0xff] %v2936
        %3028 = vst [vmem:[#allocation5 + $0x38] sm:$0xff] %v2938
        %3029 = vst [vmem:[#allocation5 + $0x40] sm:$0xff] %v2940
        %3030 = vst [vmem:[#allocation5 + $0x48] sm:$0xff] %v2942
        %3031 = vst [vmem:[#allocation5 + $0x50] sm:$0xff] %v2944
        %3032 = vst [vmem:[#allocation5 + $0x58] sm:$0xff] %v2946
        %3033 = vst [vmem:[#allocation5 + $0x60] sm:$0xff] %v2948
        %3034 = vst [vmem:[#allocation5 + $0x68] sm:$0xff] %v2950
        %3035 = vst [vmem:[#allocation5 + $0x70] sm:$0xff] %v2952
        %3036 = vst [vmem:[#allocation5 + $0x78] sm:$0xff] %v2954
        %3037 = vst [vmem:[#allocation5 + $0x80] sm:$0xff] %v2956
        %3038 = vst [vmem:[#allocation5 + $0x88] sm:$0xff] %v2958
        %3039 = vst [vmem:[#allocation5 + $0x90] sm:$0xff] %v2960
        %3040 = vst [vmem:[#allocation5 + $0x98] sm:$0xff] %v2962
        %3041 = vst [vmem:[#allocation5 + $0xa0] sm:$0xff] %v2964
        %3042 = vst [vmem:[#allocation5 + $0xa8] sm:$0xff] %v2966
        %3043 = vst [vmem:[#allocation5 + $0xb0] sm:$0xff] %v2968
        %3044 = vst [vmem:[#allocation5 + $0xb8] sm:$0xff] %v2970
        %3045 = vst [vmem:[#allocation5 + $0xc0] sm:$0xff] %v2972
        %3046 = vst [vmem:[#allocation5 + $0xc8] sm:$0xff] %v2974
        %3047 = vst [vmem:[#allocation5 + $0xd0] sm:$0xff] %v2976
        %3048 = vst [vmem:[#allocation5 + $0xd8] sm:$0xff] %v2978
        %3049 = vst [vmem:[#allocation5 + $0xe0] sm:$0xff] %v2980
        %3050 = vst [vmem:[#allocation5 + $0xe8] sm:$0xff] %v2982
        %3051 = vst [vmem:[#allocation5 + $0xf0] sm:$0xff] %v2984
        %3052 = vst [vmem:[#allocation5 + $0xf8] sm:$0xff] %v2986
        %3053 = vst [vmem:[#allocation5 + $0x100] sm:$0x1] %v2983
        %3054 = vst [vmem:[#allocation5 + $0x108] sm:$0x1] %v2985
        %s3055 = scalar_lea.vmem [#allocation5], 257
        %3056 = vst.msk [vmem:[%s3055] ss:$8 sm:$0x3] %vm1585, 0.0
        %3057 = vst.msk [vmem:[%s3055] ss:$8 sm:$0x0] %vm1585, 0.0
        %v3058 = vld [vmem:[#allocation5] sm:$0xff]
        %v3059 = vld [vmem:[#allocation5 + $0x8] sm:$0xff]
        %v3060 = vld [vmem:[#allocation5 + $0x10] sm:$0xff]
        %v3061 = vld [vmem:[#allocation5 + $0x18] sm:$0xff]
        %v3062 = vld [vmem:[#allocation5 + $0x20] sm:$0xff]
        %v3063 = vld [vmem:[#allocation5 + $0x28] sm:$0xff]
        %v3064 = vld [vmem:[#allocation5 + $0x30] sm:$0xff]
        %v3065 = vld [vmem:[#allocation5 + $0x38] sm:$0xff]
        %v3066 = vld [vmem:[#allocation5 + $0x40] sm:$0xff]
        %v3067 = vld [vmem:[#allocation5 + $0x48] sm:$0xff]
        %v3068 = vld [vmem:[#allocation5 + $0x50] sm:$0xff]
        %v3069 = vld [vmem:[#allocation5 + $0x58] sm:$0xff]
        %v3070 = vld [vmem:[#allocation5 + $0x60] sm:$0xff]
        %v3071 = vld [vmem:[#allocation5 + $0x68] sm:$0xff]
        %v3072 = vld [vmem:[#allocation5 + $0x70] sm:$0xff]
        %v3073 = vld [vmem:[#allocation5 + $0x78] sm:$0xff]
        %v3074 = vld [vmem:[#allocation5 + $0x80] sm:$0xff]
        %v3075 = vld [vmem:[#allocation5 + $0x88] sm:$0xff]
        %v3076 = vld [vmem:[#allocation5 + $0x90] sm:$0xff]
        %v3077 = vld [vmem:[#allocation5 + $0x98] sm:$0xff]
        %v3078 = vld [vmem:[#allocation5 + $0xa0] sm:$0xff]
        %v3079 = vld [vmem:[#allocation5 + $0xa8] sm:$0xff]
        %v3080 = vld [vmem:[#allocation5 + $0xb0] sm:$0xff]
        %v3081 = vld [vmem:[#allocation5 + $0xb8] sm:$0xff]
        %v3082 = vld [vmem:[#allocation5 + $0xc0] sm:$0xff]
        %v3083 = vld [vmem:[#allocation5 + $0xc8] sm:$0xff]
        %v3084 = vld [vmem:[#allocation5 + $0xd0] sm:$0xff]
        %v3085 = vld [vmem:[#allocation5 + $0xd8] sm:$0xff]
        %v3086 = vld [vmem:[#allocation5 + $0xe0] sm:$0xff]
        %v3087 = vld [vmem:[#allocation5 + $0xe8] sm:$0xff]
        %v3088 = vld [vmem:[#allocation5 + $0xf0] sm:$0xff]
        %v3089 = vld [vmem:[#allocation5 + $0xf8] sm:$0xff]
        %v3090 = vpack.c.bf16 %v3060, %v3058
        %v3091 = vpack.c.bf16 %v3061, %v3059
        %v3092 = vpack.c.bf16 %v3064, %v3062
        %v3093 = vpack.c.bf16 %v3065, %v3063
        %v3094 = vpack.c.bf16 %v3068, %v3066
        %v3095 = vpack.c.bf16 %v3069, %v3067
        %v3096 = vpack.c.bf16 %v3072, %v3070
        %v3097 = vpack.c.bf16 %v3073, %v3071
        %v3098 = vpack.c.bf16 %v3076, %v3074
        %v3099 = vpack.c.bf16 %v3077, %v3075
        %v3100 = vpack.c.bf16 %v3080, %v3078
        %v3101 = vpack.c.bf16 %v3081, %v3079
        %v3102 = vpack.c.bf16 %v3084, %v3082
        %v3103 = vpack.c.bf16 %v3085, %v3083
        %v3104 = vpack.c.bf16 %v3088, %v3086
        %v3105 = vpack.c.bf16 %v3089, %v3087
        %v3106 = vld [vmem:[#allocation10] sm:$0xff]
        %v3107 = vld [vmem:[#allocation10 + $0x8] sm:$0xff]
        %v3108 = vld [vmem:[#allocation10 + $0x10] sm:$0xff]
        %v3109 = vld [vmem:[#allocation10 + $0x18] sm:$0xff]
        %v3110 = vld [vmem:[#allocation10 + $0x20] sm:$0xff]
        %v3111 = vld [vmem:[#allocation10 + $0x28] sm:$0xff]
        %v3112 = vld [vmem:[#allocation10 + $0x30] sm:$0xff]
        %v3113 = vld [vmem:[#allocation10 + $0x38] sm:$0xff]
        %v3114 = vld [vmem:[#allocation10 + $0x40] sm:$0xff]
        %v3115 = vld [vmem:[#allocation10 + $0x48] sm:$0xff]
        %v3116 = vld [vmem:[#allocation10 + $0x50] sm:$0xff]
        %v3117 = vld [vmem:[#allocation10 + $0x58] sm:$0xff]
        %v3118 = vld [vmem:[#allocation10 + $0x60] sm:$0xff]
        %v3119 = vld [vmem:[#allocation10 + $0x68] sm:$0xff]
        %v3120 = vld [vmem:[#allocation10 + $0x70] sm:$0xff]
        %v3121 = vld [vmem:[#allocation10 + $0x78] sm:$0xff]
        %v3122 = vld [vmem:[#allocation10 + $0x80] sm:$0xff]
        %v3123 = vld [vmem:[#allocation10 + $0x88] sm:$0xff]
        %v3124 = vld [vmem:[#allocation10 + $0x90] sm:$0xff]
        %v3125 = vld [vmem:[#allocation10 + $0x98] sm:$0xff]
        %v3126 = vld [vmem:[#allocation10 + $0xa0] sm:$0xff]
        %v3127 = vld [vmem:[#allocation10 + $0xa8] sm:$0xff]
        %v3128 = vld [vmem:[#allocation10 + $0xb0] sm:$0xff]
        %v3129 = vld [vmem:[#allocation10 + $0xb8] sm:$0xff]
        %v3130 = vld [vmem:[#allocation10 + $0xc0] sm:$0xff]
        %v3131 = vld [vmem:[#allocation10 + $0xc8] sm:$0xff]
        %v3132 = vld [vmem:[#allocation10 + $0xd0] sm:$0xff]
        %v3133 = vld [vmem:[#allocation10 + $0xd8] sm:$0xff]
        %v3134 = vld [vmem:[#allocation10 + $0xe0] sm:$0xff]
        %v3135 = vld [vmem:[#allocation10 + $0xe8] sm:$0xff]
        %v3136 = vld [vmem:[#allocation10 + $0xf0] sm:$0xff]
        %v3137 = vld [vmem:[#allocation10 + $0xf8] sm:$0xff]
        %v3138 = vld [vmem:[#allocation10 + $0x100] sm:$0xff]
        %v3139 = vld [vmem:[#allocation10 + $0x108] sm:$0xff]
        %v3140 = vld [vmem:[#allocation10 + $0x110] sm:$0xff]
        %v3141 = vld [vmem:[#allocation10 + $0x118] sm:$0xff]
        %v3142 = vld [vmem:[#allocation10 + $0x120] sm:$0xff]
        %v3143 = vld [vmem:[#allocation10 + $0x128] sm:$0xff]
        %v3144 = vld [vmem:[#allocation10 + $0x130] sm:$0xff]
        %v3145 = vld [vmem:[#allocation10 + $0x138] sm:$0xff]
        %v3146 = vld [vmem:[#allocation10 + $0x140] sm:$0xff]
        %v3147 = vld [vmem:[#allocation10 + $0x148] sm:$0xff]
        %v3148 = vld [vmem:[#allocation10 + $0x150] sm:$0xff]
        %v3149 = vld [vmem:[#allocation10 + $0x158] sm:$0xff]
        %v3150 = vld [vmem:[#allocation10 + $0x160] sm:$0xff]
        %v3151 = vld [vmem:[#allocation10 + $0x168] sm:$0xff]
        %v3152 = vld [vmem:[#allocation10 + $0x170] sm:$0xff]
        %v3153 = vld [vmem:[#allocation10 + $0x178] sm:$0xff]
        %v3154 = vld [vmem:[#allocation10 + $0x180] sm:$0xff]
        %v3155 = vld [vmem:[#allocation10 + $0x188] sm:$0xff]
        %v3156 = vld [vmem:[#allocation10 + $0x190] sm:$0xff]
        %v3157 = vld [vmem:[#allocation10 + $0x198] sm:$0xff]
        %v3158 = vld [vmem:[#allocation10 + $0x1a0] sm:$0xff]
        %v3159 = vld [vmem:[#allocation10 + $0x1a8] sm:$0xff]
        %v3160 = vld [vmem:[#allocation10 + $0x1b0] sm:$0xff]
        %v3161 = vld [vmem:[#allocation10 + $0x1b8] sm:$0xff]
        %v3162 = vld [vmem:[#allocation10 + $0x1c0] sm:$0xff]
        %v3163 = vld [vmem:[#allocation10 + $0x1c8] sm:$0xff]
        %v3164 = vld [vmem:[#allocation10 + $0x1d0] sm:$0xff]
        %v3165 = vld [vmem:[#allocation10 + $0x1d8] sm:$0xff]
        %v3166 = vld [vmem:[#allocation10 + $0x1e0] sm:$0xff]
        %v3167 = vld [vmem:[#allocation10 + $0x1e8] sm:$0xff]
        %v3168 = vld [vmem:[#allocation10 + $0x1f0] sm:$0xff]
        %v3169 = vld [vmem:[#allocation10 + $0x1f8] sm:$0xff]
        %v3170 = vld [vmem:[#allocation5] sm:$0xfe]
        %v3171 = vld [vmem:[#allocation5 + $0x8] sm:$0xfe]
        %v3172 = vld [vmem:[#allocation5 + $0x100] sm:$0x1]
        %v3173 = vld [vmem:[#allocation5 + $0x108] sm:$0x1]
        %v3174 = vpack.c.bf16 %v3060, %v3170
        %v3175 = vpack.c.bf16 %v3061, %v3171
        %v3176 = vpack.c.bf16 %v3172, %v3172
        %v3177 = vpack.c.bf16 %v3173, %v3173
        %s3178 = scalar_lea.vmem [#allocation10], 512
        %v3179 = vld [vmem:[%s3178] sm:$0xff]
        %v3180 = vld [vmem:[%s3178 + $0x8] sm:$0xff]
        %v3181 = vld [vmem:[%s3178 + $0x10] sm:$0xff]
        %v3182 = vld [vmem:[%s3178 + $0x18] sm:$0xff]
        %v3183 = vld [vmem:[%s3178 + $0x20] sm:$0xff]
        %v3184 = vld [vmem:[%s3178 + $0x28] sm:$0xff]
        %v3185 = vld [vmem:[%s3178 + $0x30] sm:$0xff]
        %v3186 = vld [vmem:[%s3178 + $0x38] sm:$0xff]
        %v3187 = vld [vmem:[%s3178 + $0x40] sm:$0xff]
        %v3188 = vld [vmem:[%s3178 + $0x48] sm:$0xff]
        %v3189 = vld [vmem:[%s3178 + $0x50] sm:$0xff]
        %v3190 = vld [vmem:[%s3178 + $0x58] sm:$0xff]
        %v3191 = vld [vmem:[%s3178 + $0x60] sm:$0xff]
        %v3192 = vld [vmem:[%s3178 + $0x68] sm:$0xff]
        %v3193 = vld [vmem:[%s3178 + $0x70] sm:$0xff]
        %v3194 = vld [vmem:[%s3178 + $0x78] sm:$0xff]
        %v3195 = vld [vmem:[%s3178 + $0x80] sm:$0xff]
        %v3196 = vld [vmem:[%s3178 + $0x88] sm:$0xff]
        %v3197 = vld [vmem:[%s3178 + $0x90] sm:$0xff]
        %v3198 = vld [vmem:[%s3178 + $0x98] sm:$0xff]
        %v3199 = vld [vmem:[%s3178 + $0xa0] sm:$0xff]
        %v3200 = vld [vmem:[%s3178 + $0xa8] sm:$0xff]
        %v3201 = vld [vmem:[%s3178 + $0xb0] sm:$0xff]
        %v3202 = vld [vmem:[%s3178 + $0xb8] sm:$0xff]
        %v3203 = vld [vmem:[%s3178 + $0xc0] sm:$0xff]
        %v3204 = vld [vmem:[%s3178 + $0xc8] sm:$0xff]
        %v3205 = vld [vmem:[%s3178 + $0xd0] sm:$0xff]
        %v3206 = vld [vmem:[%s3178 + $0xd8] sm:$0xff]
        %v3207 = vld [vmem:[%s3178 + $0xe0] sm:$0xff]
        %v3208 = vld [vmem:[%s3178 + $0xe8] sm:$0xff]
        %v3209 = vld [vmem:[%s3178 + $0xf0] sm:$0xff]
        %v3210 = vld [vmem:[%s3178 + $0xf8] sm:$0xff]
        %v3211 = vld [vmem:[%s3178 + $0x100] sm:$0xff]
        %v3212 = vld [vmem:[%s3178 + $0x108] sm:$0xff]
        %v3213 = vld [vmem:[%s3178 + $0x110] sm:$0xff]
        %v3214 = vld [vmem:[%s3178 + $0x118] sm:$0xff]
        %v3215 = vld [vmem:[%s3178 + $0x120] sm:$0xff]
        %v3216 = vld [vmem:[%s3178 + $0x128] sm:$0xff]
        %v3217 = vld [vmem:[%s3178 + $0x130] sm:$0xff]
        %v3218 = vld [vmem:[%s3178 + $0x138] sm:$0xff]
        %v3219 = vld [vmem:[%s3178 + $0x140] sm:$0xff]
        %v3220 = vld [vmem:[%s3178 + $0x148] sm:$0xff]
        %v3221 = vld [vmem:[%s3178 + $0x150] sm:$0xff]
        %v3222 = vld [vmem:[%s3178 + $0x158] sm:$0xff]
        %v3223 = vld [vmem:[%s3178 + $0x160] sm:$0xff]
        %v3224 = vld [vmem:[%s3178 + $0x168] sm:$0xff]
        %v3225 = vld [vmem:[%s3178 + $0x170] sm:$0xff]
        %v3226 = vld [vmem:[%s3178 + $0x178] sm:$0xff]
        %v3227 = vld [vmem:[%s3178 + $0x180] sm:$0xff]
        %v3228 = vld [vmem:[%s3178 + $0x188] sm:$0xff]
        %v3229 = vld [vmem:[%s3178 + $0x190] sm:$0xff]
        %v3230 = vld [vmem:[%s3178 + $0x198] sm:$0xff]
        %v3231 = vld [vmem:[%s3178 + $0x1a0] sm:$0xff]
        %v3232 = vld [vmem:[%s3178 + $0x1a8] sm:$0xff]
        %v3233 = vld [vmem:[%s3178 + $0x1b0] sm:$0xff]
        %v3234 = vld [vmem:[%s3178 + $0x1b8] sm:$0xff]
        %v3235 = vld [vmem:[%s3178 + $0x1c0] sm:$0xff]
        %v3236 = vld [vmem:[%s3178 + $0x1c8] sm:$0xff]
        %v3237 = vld [vmem:[%s3178 + $0x1d0] sm:$0xff]
        %v3238 = vld [vmem:[%s3178 + $0x1d8] sm:$0xff]
        %v3239 = vld [vmem:[%s3178 + $0x1e0] sm:$0xff]
        %v3240 = vld [vmem:[%s3178 + $0x1e8] sm:$0xff]
        %v3241 = vld [vmem:[%s3178 + $0x1f0] sm:$0xff]
        %v3242 = vld [vmem:[%s3178 + $0x1f8] sm:$0xff]
        %v3244 = vshrl.u32 %v3174, 16
        %v3246 = vshll.u32 %v3174, 16
        %v3248 = vrot.slane %v3246, 1
        %v3249 = vor.u32 %v3244, %v3248
        %v3251 = vshll.u32 %v3092, 16
        %v3253 = vrot.slane %v3251, 1
        %v3254 = vsel %vm1771, %v3249, %v3253
        %v3256 = vshrl.u32 %v3175, 16
        %v3258 = vshll.u32 %v3175, 16
        %v3260 = vrot.slane %v3258, 1
        %v3261 = vor.u32 %v3256, %v3260
        %v3263 = vshll.u32 %v3093, 16
        %v3265 = vrot.slane %v3263, 1
        %v3266 = vsel %vm1771, %v3261, %v3265
        %v3267 = vshrl.u32 %v3092, 16
        %v3269 = vor.u32 %v3267, %v3253
        %v3271 = vshll.u32 %v3094, 16
        %v3273 = vrot.slane %v3271, 1
        %v3274 = vsel %vm1771, %v3269, %v3273
        %v3275 = vshrl.u32 %v3093, 16
        %v3277 = vor.u32 %v3275, %v3265
        %v3279 = vshll.u32 %v3095, 16
        %v3281 = vrot.slane %v3279, 1
        %v3282 = vsel %vm1771, %v3277, %v3281
        %v3283 = vshrl.u32 %v3094, 16
        %v3285 = vor.u32 %v3283, %v3273
        %v3287 = vshll.u32 %v3096, 16
        %v3289 = vrot.slane %v3287, 1
        %v3290 = vsel %vm1771, %v3285, %v3289
        %v3291 = vshrl.u32 %v3095, 16
        %v3293 = vor.u32 %v3291, %v3281
        %v3295 = vshll.u32 %v3097, 16
        %v3297 = vrot.slane %v3295, 1
        %v3298 = vsel %vm1771, %v3293, %v3297
        %v3299 = vshrl.u32 %v3096, 16
        %v3301 = vor.u32 %v3299, %v3289
        %v3303 = vshll.u32 %v3098, 16
        %v3305 = vrot.slane %v3303, 1
        %v3306 = vsel %vm1771, %v3301, %v3305
        %v3307 = vshrl.u32 %v3097, 16
        %v3309 = vor.u32 %v3307, %v3297
        %v3311 = vshll.u32 %v3099, 16
        %v3313 = vrot.slane %v3311, 1
        %v3314 = vsel %vm1771, %v3309, %v3313
        %v3315 = vshrl.u32 %v3098, 16
        %v3317 = vor.u32 %v3315, %v3305
        %v3319 = vshll.u32 %v3100, 16
        %v3321 = vrot.slane %v3319, 1
        %v3322 = vsel %vm1771, %v3317, %v3321
        %v3323 = vshrl.u32 %v3099, 16
        %v3325 = vor.u32 %v3323, %v3313
        %v3327 = vshll.u32 %v3101, 16
        %v3329 = vrot.slane %v3327, 1
        %v3330 = vsel %vm1771, %v3325, %v3329
        %v3331 = vshrl.u32 %v3100, 16
        %v3333 = vor.u32 %v3331, %v3321
        %v3335 = vshll.u32 %v3102, 16
        %v3337 = vrot.slane %v3335, 1
        %v3338 = vsel %vm1771, %v3333, %v3337
        %v3339 = vshrl.u32 %v3101, 16
        %v3341 = vor.u32 %v3339, %v3329
        %v3343 = vshll.u32 %v3103, 16
        %v3345 = vrot.slane %v3343, 1
        %v3346 = vsel %vm1771, %v3341, %v3345
        %v3347 = vshrl.u32 %v3102, 16
        %v3349 = vor.u32 %v3347, %v3337
        %v3351 = vshll.u32 %v3104, 16
        %v3353 = vrot.slane %v3351, 1
        %v3354 = vsel %vm1771, %v3349, %v3353
        %v3355 = vshrl.u32 %v3103, 16
        %v3357 = vor.u32 %v3355, %v3345
        %v3359 = vshll.u32 %v3105, 16
        %v3361 = vrot.slane %v3359, 1
        %v3362 = vsel %vm1771, %v3357, %v3361
        %v3363 = vshrl.u32 %v3104, 16
        %v3365 = vor.u32 %v3363, %v3353
        %v3367 = vshll.u32 %v3176, 16
        %v3369 = vrot.slane %v3367, 1
        %v3370 = vsel %vm1771, %v3365, %v3369
        %v3371 = vshrl.u32 %v3105, 16
        %v3373 = vor.u32 %v3371, %v3361
        %v3375 = vshll.u32 %v3177, 16
        %v3377 = vrot.slane %v3375, 1
        %v3378 = vsel %vm1771, %v3373, %v3377
        %v3459 = vunpack.c.l.b16 %v3179
        %v3460 = vunpack.c.h.b16 %v3179
        %v3461 = vunpack.c.l.b16 %v3180
        %v3462 = vunpack.c.h.b16 %v3180
        %v3463 = vunpack.c.l.b16 %v3181
        %v3464 = vunpack.c.h.b16 %v3181
        %v3465 = vunpack.c.l.b16 %v3182
        %v3466 = vunpack.c.h.b16 %v3182
        %v3467 = vunpack.c.l.b16 %v3183
        %v3468 = vunpack.c.h.b16 %v3183
        %v3469 = vunpack.c.l.b16 %v3184
        %v3470 = vunpack.c.h.b16 %v3184
        %v3471 = vunpack.c.l.b16 %v3185
        %v3472 = vunpack.c.h.b16 %v3185
        %v3473 = vunpack.c.l.b16 %v3186
        %v3474 = vunpack.c.h.b16 %v3186
        %v3475 = vunpack.c.l.b16 %v3187
        %v3476 = vunpack.c.h.b16 %v3187
        %v3477 = vunpack.c.l.b16 %v3188
        %v3478 = vunpack.c.h.b16 %v3188
        %v3479 = vunpack.c.l.b16 %v3189
        %v3480 = vunpack.c.h.b16 %v3189
        %v3481 = vunpack.c.l.b16 %v3190
        %v3482 = vunpack.c.h.b16 %v3190
        %v3483 = vunpack.c.l.b16 %v3191
        %v3484 = vunpack.c.h.b16 %v3191
        %v3485 = vunpack.c.l.b16 %v3192
        %v3486 = vunpack.c.h.b16 %v3192
        %v3487 = vunpack.c.l.b16 %v3193
        %v3488 = vunpack.c.h.b16 %v3193
        %v3489 = vunpack.c.l.b16 %v3194
        %v3490 = vunpack.c.h.b16 %v3194
        %v3491 = vunpack.c.l.b16 %v3195
        %v3492 = vunpack.c.h.b16 %v3195
        %v3493 = vunpack.c.l.b16 %v3196
        %v3494 = vunpack.c.h.b16 %v3196
        %v3495 = vunpack.c.l.b16 %v3197
        %v3496 = vunpack.c.h.b16 %v3197
        %v3497 = vunpack.c.l.b16 %v3198
        %v3498 = vunpack.c.h.b16 %v3198
        %v3499 = vunpack.c.l.b16 %v3199
        %v3500 = vunpack.c.h.b16 %v3199
        %v3501 = vunpack.c.l.b16 %v3200
        %v3502 = vunpack.c.h.b16 %v3200
        %v3503 = vunpack.c.l.b16 %v3201
        %v3504 = vunpack.c.h.b16 %v3201
        %v3505 = vunpack.c.l.b16 %v3202
        %v3506 = vunpack.c.h.b16 %v3202
        %v3507 = vunpack.c.l.b16 %v3203
        %v3508 = vunpack.c.h.b16 %v3203
        %v3509 = vunpack.c.l.b16 %v3204
        %v3510 = vunpack.c.h.b16 %v3204
        %v3511 = vunpack.c.l.b16 %v3205
        %v3512 = vunpack.c.h.b16 %v3205
        %v3513 = vunpack.c.l.b16 %v3206
        %v3514 = vunpack.c.h.b16 %v3206
        %v3515 = vunpack.c.l.b16 %v3207
        %v3516 = vunpack.c.h.b16 %v3207
        %v3517 = vunpack.c.l.b16 %v3208
        %v3518 = vunpack.c.h.b16 %v3208
        %v3519 = vunpack.c.l.b16 %v3209
        %v3520 = vunpack.c.h.b16 %v3209
        %v3521 = vunpack.c.l.b16 %v3210
        %v3522 = vunpack.c.h.b16 %v3210
        %v3523 = vunpack.c.l.b16 %v3211
        %v3524 = vunpack.c.h.b16 %v3211
        %v3525 = vunpack.c.l.b16 %v3212
        %v3526 = vunpack.c.h.b16 %v3212
        %v3527 = vunpack.c.l.b16 %v3213
        %v3528 = vunpack.c.h.b16 %v3213
        %v3529 = vunpack.c.l.b16 %v3214
        %v3530 = vunpack.c.h.b16 %v3214
        %v3531 = vunpack.c.l.b16 %v3215
        %v3532 = vunpack.c.h.b16 %v3215
        %v3533 = vunpack.c.l.b16 %v3216
        %v3534 = vunpack.c.h.b16 %v3216
        %v3535 = vunpack.c.l.b16 %v3217
        %v3536 = vunpack.c.h.b16 %v3217
        %v3537 = vunpack.c.l.b16 %v3218
        %v3538 = vunpack.c.h.b16 %v3218
        %v3539 = vunpack.c.l.b16 %v3219
        %v3540 = vunpack.c.h.b16 %v3219
        %v3541 = vunpack.c.l.b16 %v3220
        %v3542 = vunpack.c.h.b16 %v3220
        %v3543 = vunpack.c.l.b16 %v3221
        %v3544 = vunpack.c.h.b16 %v3221
        %v3545 = vunpack.c.l.b16 %v3222
        %v3546 = vunpack.c.h.b16 %v3222
        %v3547 = vunpack.c.l.b16 %v3223
        %v3548 = vunpack.c.h.b16 %v3223
        %v3549 = vunpack.c.l.b16 %v3224
        %v3550 = vunpack.c.h.b16 %v3224
        %v3551 = vunpack.c.l.b16 %v3225
        %v3552 = vunpack.c.h.b16 %v3225
        %v3553 = vunpack.c.l.b16 %v3226
        %v3554 = vunpack.c.h.b16 %v3226
        %v3555 = vunpack.c.l.b16 %v3227
        %v3556 = vunpack.c.h.b16 %v3227
        %v3557 = vunpack.c.l.b16 %v3228
        %v3558 = vunpack.c.h.b16 %v3228
        %v3559 = vunpack.c.l.b16 %v3229
        %v3560 = vunpack.c.h.b16 %v3229
        %v3561 = vunpack.c.l.b16 %v3230
        %v3562 = vunpack.c.h.b16 %v3230
        %v3563 = vunpack.c.l.b16 %v3231
        %v3564 = vunpack.c.h.b16 %v3231
        %v3565 = vunpack.c.l.b16 %v3232
        %v3566 = vunpack.c.h.b16 %v3232
        %v3567 = vunpack.c.l.b16 %v3233
        %v3568 = vunpack.c.h.b16 %v3233
        %v3569 = vunpack.c.l.b16 %v3234
        %v3570 = vunpack.c.h.b16 %v3234
        %v3571 = vunpack.c.l.b16 %v3235
        %v3572 = vunpack.c.h.b16 %v3235
        %v3573 = vunpack.c.l.b16 %v3236
        %v3574 = vunpack.c.h.b16 %v3236
        %v3575 = vunpack.c.l.b16 %v3237
        %v3576 = vunpack.c.h.b16 %v3237
        %v3577 = vunpack.c.l.b16 %v3238
        %v3578 = vunpack.c.h.b16 %v3238
        %v3579 = vunpack.c.l.b16 %v3239
        %v3580 = vunpack.c.h.b16 %v3239
        %v3581 = vunpack.c.l.b16 %v3240
        %v3582 = vunpack.c.h.b16 %v3240
        %v3583 = vunpack.c.l.b16 %v3241
        %v3584 = vunpack.c.h.b16 %v3241
        %v3585 = vunpack.c.l.b16 %v3242
        %v3586 = vunpack.c.h.b16 %v3242
        %v3587 = vpack.c.b16 %v3463, %v3459
        %v3588 = vpack.c.b16 %v3464, %v3460
        %v3589 = vpack.c.b16 %v3465, %v3461
        %v3590 = vpack.c.b16 %v3466, %v3462
        %v3591 = vpack.c.b16 %v3471, %v3467
        %v3592 = vpack.c.b16 %v3472, %v3468
        %v3593 = vpack.c.b16 %v3473, %v3469
        %v3594 = vpack.c.b16 %v3474, %v3470
        %v3595 = vpack.c.b16 %v3479, %v3475
        %v3596 = vpack.c.b16 %v3480, %v3476
        %v3597 = vpack.c.b16 %v3481, %v3477
        %v3598 = vpack.c.b16 %v3482, %v3478
        %v3599 = vpack.c.b16 %v3487, %v3483
        %v3600 = vpack.c.b16 %v3488, %v3484
        %v3601 = vpack.c.b16 %v3489, %v3485
        %v3602 = vpack.c.b16 %v3490, %v3486
        %v3603 = vpack.c.b16 %v3495, %v3491
        %v3604 = vpack.c.b16 %v3496, %v3492
        %v3605 = vpack.c.b16 %v3497, %v3493
        %v3606 = vpack.c.b16 %v3498, %v3494
        %v3607 = vpack.c.b16 %v3503, %v3499
        %v3608 = vpack.c.b16 %v3504, %v3500
        %v3609 = vpack.c.b16 %v3505, %v3501
        %v3610 = vpack.c.b16 %v3506, %v3502
        %v3611 = vpack.c.b16 %v3511, %v3507
        %v3612 = vpack.c.b16 %v3512, %v3508
        %v3613 = vpack.c.b16 %v3513, %v3509
        %v3614 = vpack.c.b16 %v3514, %v3510
        %v3615 = vpack.c.b16 %v3519, %v3515
        %v3616 = vpack.c.b16 %v3520, %v3516
        %v3617 = vpack.c.b16 %v3521, %v3517
        %v3618 = vpack.c.b16 %v3522, %v3518
        %v3619 = vpack.c.b16 %v3527, %v3523
        %v3620 = vpack.c.b16 %v3528, %v3524
        %v3621 = vpack.c.b16 %v3529, %v3525
        %v3622 = vpack.c.b16 %v3530, %v3526
        %v3623 = vpack.c.b16 %v3535, %v3531
        %v3624 = vpack.c.b16 %v3536, %v3532
        %v3625 = vpack.c.b16 %v3537, %v3533
        %v3626 = vpack.c.b16 %v3538, %v3534
        %v3627 = vpack.c.b16 %v3543, %v3539
        %v3628 = vpack.c.b16 %v3544, %v3540
        %v3629 = vpack.c.b16 %v3545, %v3541
        %v3630 = vpack.c.b16 %v3546, %v3542
        %v3631 = vpack.c.b16 %v3551, %v3547
        %v3632 = vpack.c.b16 %v3552, %v3548
        %v3633 = vpack.c.b16 %v3553, %v3549
        %v3634 = vpack.c.b16 %v3554, %v3550
        %v3635 = vpack.c.b16 %v3559, %v3555
        %v3636 = vpack.c.b16 %v3560, %v3556
        %v3637 = vpack.c.b16 %v3561, %v3557
        %v3638 = vpack.c.b16 %v3562, %v3558
        %v3639 = vpack.c.b16 %v3567, %v3563
        %v3640 = vpack.c.b16 %v3568, %v3564
        %v3641 = vpack.c.b16 %v3569, %v3565
        %v3642 = vpack.c.b16 %v3570, %v3566
        %v3643 = vpack.c.b16 %v3575, %v3571
        %v3644 = vpack.c.b16 %v3576, %v3572
        %v3645 = vpack.c.b16 %v3577, %v3573
        %v3646 = vpack.c.b16 %v3578, %v3574
        %v3647 = vpack.c.b16 %v3583, %v3579
        %v3648 = vpack.c.b16 %v3584, %v3580
        %v3649 = vpack.c.b16 %v3585, %v3581
        %v3650 = vpack.c.b16 %v3586, %v3582
        %3715 = vmatprep.subr.bf16.mxu0 %v3588
        %3716 = vmatpush1.bf16.msra.mxu0 %v3587
        %3717 = vmatprep.subr.bf16.mxu0 %v3592
        %3718 = vmatpush1.bf16.msra.mxu0 %v3591
        %3719 = vmatprep.subr.bf16.mxu0 %v3596
        %3720 = vmatpush1.bf16.msra.mxu0 %v3595
        %3721 = vmatprep.subr.bf16.mxu0 %v3600
        %3722 = vmatpush1.bf16.msra.mxu0 %v3599
        %3723 = vmatprep.subr.bf16.mxu0 %v3604
        %3724 = vmatpush1.bf16.msra.mxu0 %v3603
        %3725 = vmatprep.subr.bf16.mxu0 %v3608
        %3726 = vmatpush1.bf16.msra.mxu0 %v3607
        %3727 = vmatprep.subr.bf16.mxu0 %v3612
        %3728 = vmatpush1.bf16.msra.mxu0 %v3611
        %3729 = vmatprep.subr.bf16.mxu0 %v3616
        %3730 = vmatpush1.bf16.msra.mxu0 %v3615
        %3731 = vmatprep.subr.bf16.mxu0 %v3620
        %3732 = vmatpush1.bf16.msra.mxu0 %v3619
        %3733 = vmatprep.subr.bf16.mxu0 %v3624
        %3734 = vmatpush1.bf16.msra.mxu0 %v3623
        %3735 = vmatprep.subr.bf16.mxu0 %v3628
        %3736 = vmatpush1.bf16.msra.mxu0 %v3627
        %3737 = vmatprep.subr.bf16.mxu0 %v3632
        %3738 = vmatpush1.bf16.msra.mxu0 %v3631
        %3739 = vmatprep.subr.bf16.mxu0 %v3636
        %3740 = vmatpush1.bf16.msra.mxu0 %v3635
        %3741 = vmatprep.subr.bf16.mxu0 %v3640
        %3742 = vmatpush1.bf16.msra.mxu0 %v3639
        %3743 = vmatprep.subr.bf16.mxu0 %v3644
        %3744 = vmatpush1.bf16.msra.mxu0 %v3643
        %3745 = vmatprep.subr.bf16.mxu0 %v3648
        %3746 = vmatpush1.bf16.msra.mxu0 %v3647
        %3747 = vmatprep.mubr.bf16.mxu0 %v3266
        %3748 = vmatmul.mubr.bf16.gmra.mrb[0].mxu0 %v3254
        %v3749 = vpop.f32.mrb[0].mxu0
        %v3750 = vadd.f32 0.0, %v3749
        %v3751 = vpop.f32.mrb[0].mxu0
        %v3752 = vadd.f32 0.0, %v3751
        %v3753 = vpop.f32.mrb[0].mxu0
        %v3754 = vadd.f32 0.0, %v3753
        %v3755 = vpop.f32.mrb[0].mxu0
        %v3756 = vadd.f32 0.0, %v3755
        %3757 = vmatprep.mubr.bf16.mxu0 %v3282
        %3758 = vmatmul.mubr.bf16.gmra.mrb[0].mxu0 %v3274
        %v3759 = vpop.f32.mrb[0].mxu0
        %v3760 = vadd.f32 0.0, %v3759
        %v3761 = vpop.f32.mrb[0].mxu0
        %v3762 = vadd.f32 0.0, %v3761
        %v3763 = vpop.f32.mrb[0].mxu0
        %v3764 = vadd.f32 0.0, %v3763
        %v3765 = vpop.f32.mrb[0].mxu0
        %v3766 = vadd.f32 0.0, %v3765
        %3767 = vmatprep.mubr.bf16.mxu0 %v3298
        %3768 = vmatmul.mubr.bf16.gmra.mrb[0].mxu0 %v3290
        %v3769 = vpop.f32.mrb[0].mxu0
        %v3770 = vadd.f32 0.0, %v3769
        %v3771 = vpop.f32.mrb[0].mxu0
        %v3772 = vadd.f32 0.0, %v3771
        %v3773 = vpop.f32.mrb[0].mxu0
        %v3774 = vadd.f32 0.0, %v3773
        %v3775 = vpop.f32.mrb[0].mxu0
        %v3776 = vadd.f32 0.0, %v3775
        %3777 = vmatprep.mubr.bf16.mxu0 %v3314
        %3778 = vmatmul.mubr.bf16.gmra.mrb[0].mxu0 %v3306
        %v3779 = vpop.f32.mrb[0].mxu0
        %v3780 = vadd.f32 0.0, %v3779
        %v3781 = vpop.f32.mrb[0].mxu0
        %v3782 = vadd.f32 0.0, %v3781
        %v3783 = vpop.f32.mrb[0].mxu0
        %v3784 = vadd.f32 0.0, %v3783
        %v3785 = vpop.f32.mrb[0].mxu0
        %v3786 = vadd.f32 0.0, %v3785
        %3787 = vmatprep.mubr.bf16.mxu0 %v3330
        %3788 = vmatmul.mubr.bf16.gmra.mrb[0].mxu0 %v3322
        %v3789 = vpop.f32.mrb[0].mxu0
        %v3790 = vadd.f32 0.0, %v3789
        %v3791 = vpop.f32.mrb[0].mxu0
        %v3792 = vadd.f32 0.0, %v3791
        %v3793 = vpop.f32.mrb[0].mxu0
        %v3794 = vadd.f32 0.0, %v3793
        %v3795 = vpop.f32.mrb[0].mxu0
        %v3796 = vadd.f32 0.0, %v3795
        %3797 = vmatprep.mubr.bf16.mxu0 %v3346
        %3798 = vmatmul.mubr.bf16.gmra.mrb[0].mxu0 %v3338
        %v3799 = vpop.f32.mrb[0].mxu0
        %v3800 = vadd.f32 0.0, %v3799
        %v3801 = vpop.f32.mrb[0].mxu0
        %v3802 = vadd.f32 0.0, %v3801
        %v3803 = vpop.f32.mrb[0].mxu0
        %v3804 = vadd.f32 0.0, %v3803
        %v3805 = vpop.f32.mrb[0].mxu0
        %v3806 = vadd.f32 0.0, %v3805
        %3807 = vmatprep.mubr.bf16.mxu0 %v3362
        %3808 = vmatmul.mubr.bf16.gmra.mrb[0].mxu0 %v3354
        %v3809 = vpop.f32.mrb[0].mxu0
        %v3810 = vadd.f32 0.0, %v3809
        %v3811 = vpop.f32.mrb[0].mxu0
        %v3812 = vadd.f32 0.0, %v3811
        %v3813 = vpop.f32.mrb[0].mxu0
        %v3814 = vadd.f32 0.0, %v3813
        %v3815 = vpop.f32.mrb[0].mxu0
        %v3816 = vadd.f32 0.0, %v3815
        %3817 = vmatprep.mubr.bf16.mxu0 %v3378
        %3818 = vmatmul.mubr.bf16.gmra.mrb[0].mxu0 %v3370
        %v3819 = vpop.f32.mrb[0].mxu0
        %v3820 = vadd.f32 0.0, %v3819
        %v3821 = vpop.f32.mrb[0].mxu0
        %v3822 = vadd.f32 0.0, %v3821
        %v3823 = vpop.f32.mrb[0].mxu0
        %v3824 = vadd.f32 0.0, %v3823
        %v3825 = vpop.f32.mrb[0].mxu0
        %v3826 = vadd.f32 0.0, %v3825
        %3827 = vdwg.mxu0
        %3828 = vmatprep.subr.bf16.mxu0 %v3590
        %3829 = vmatpush1.bf16.msra.mxu0 %v3589
        %3830 = vmatprep.subr.bf16.mxu0 %v3594
        %3831 = vmatpush1.bf16.msra.mxu0 %v3593
        %3832 = vmatprep.subr.bf16.mxu0 %v3598
        %3833 = vmatpush1.bf16.msra.mxu0 %v3597
        %3834 = vmatprep.subr.bf16.mxu0 %v3602
        %3835 = vmatpush1.bf16.msra.mxu0 %v3601
        %3836 = vmatprep.subr.bf16.mxu0 %v3606
        %3837 = vmatpush1.bf16.msra.mxu0 %v3605
        %3838 = vmatprep.subr.bf16.mxu0 %v3610
        %3839 = vmatpush1.bf16.msra.mxu0 %v3609
        %3840 = vmatprep.subr.bf16.mxu0 %v3614
        %3841 = vmatpush1.bf16.msra.mxu0 %v3613
        %3842 = vmatprep.subr.bf16.mxu0 %v3618
        %3843 = vmatpush1.bf16.msra.mxu0 %v3617
        %3844 = vmatprep.subr.bf16.mxu0 %v3622
        %3845 = vmatpush1.bf16.msra.mxu0 %v3621
        %3846 = vmatprep.subr.bf16.mxu0 %v3626
        %3847 = vmatpush1.bf16.msra.mxu0 %v3625
        %3848 = vmatprep.subr.bf16.mxu0 %v3630
        %3849 = vmatpush1.bf16.msra.mxu0 %v3629
        %3850 = vmatprep.subr.bf16.mxu0 %v3634
        %3851 = vmatpush1.bf16.msra.mxu0 %v3633
        %3852 = vmatprep.subr.bf16.mxu0 %v3638
        %3853 = vmatpush1.bf16.msra.mxu0 %v3637
        %3854 = vmatprep.subr.bf16.mxu0 %v3642
        %3855 = vmatpush1.bf16.msra.mxu0 %v3641
        %3856 = vmatprep.subr.bf16.mxu0 %v3646
        %3857 = vmatpush1.bf16.msra.mxu0 %v3645
        %3858 = vmatprep.subr.bf16.mxu0 %v3650
        %3859 = vmatpush1.bf16.msra.mxu0 %v3649
        %3860 = vmatprep.mubr.bf16.mxu0 %v3266
        %3861 = vmatmul.mubr.bf16.gmra.mrb[0].mxu0 %v3254
        %v3862 = vpop.f32.mrb[0].mxu0
        %v3863 = vadd.f32 0.0, %v3862
        %v3864 = vpop.f32.mrb[0].mxu0
        %v3865 = vadd.f32 0.0, %v3864
        %v3866 = vpop.f32.mrb[0].mxu0
        %v3867 = vadd.f32 0.0, %v3866
        %v3868 = vpop.f32.mrb[0].mxu0
        %v3869 = vadd.f32 0.0, %v3868
        %3870 = vmatprep.mubr.bf16.mxu0 %v3282
        %3871 = vmatmul.mubr.bf16.gmra.mrb[0].mxu0 %v3274
        %v3872 = vpop.f32.mrb[0].mxu0
        %v3873 = vadd.f32 0.0, %v3872
        %v3874 = vpop.f32.mrb[0].mxu0
        %v3875 = vadd.f32 0.0, %v3874
        %v3876 = vpop.f32.mrb[0].mxu0
        %v3877 = vadd.f32 0.0, %v3876
        %v3878 = vpop.f32.mrb[0].mxu0
        %v3879 = vadd.f32 0.0, %v3878
        %3880 = vmatprep.mubr.bf16.mxu0 %v3298
        %3881 = vmatmul.mubr.bf16.gmra.mrb[0].mxu0 %v3290
        %v3882 = vpop.f32.mrb[0].mxu0
        %v3883 = vadd.f32 0.0, %v3882
        %v3884 = vpop.f32.mrb[0].mxu0
        %v3885 = vadd.f32 0.0, %v3884
        %v3886 = vpop.f32.mrb[0].mxu0
        %v3887 = vadd.f32 0.0, %v3886
        %v3888 = vpop.f32.mrb[0].mxu0
        %v3889 = vadd.f32 0.0, %v3888
        %3890 = vmatprep.mubr.bf16.mxu0 %v3314
        %3891 = vmatmul.mubr.bf16.gmra.mrb[0].mxu0 %v3306
        %v3892 = vpop.f32.mrb[0].mxu0
        %v3893 = vadd.f32 0.0, %v3892
        %v3894 = vpop.f32.mrb[0].mxu0
        %v3895 = vadd.f32 0.0, %v3894
        %v3896 = vpop.f32.mrb[0].mxu0
        %v3897 = vadd.f32 0.0, %v3896
        %v3898 = vpop.f32.mrb[0].mxu0
        %v3899 = vadd.f32 0.0, %v3898
        %3900 = vmatprep.mubr.bf16.mxu0 %v3330
        %3901 = vmatmul.mubr.bf16.gmra.mrb[0].mxu0 %v3322
        %v3902 = vpop.f32.mrb[0].mxu0
        %v3903 = vadd.f32 0.0, %v3902
        %v3904 = vpop.f32.mrb[0].mxu0
        %v3905 = vadd.f32 0.0, %v3904
        %v3906 = vpop.f32.mrb[0].mxu0
        %v3907 = vadd.f32 0.0, %v3906
        %v3908 = vpop.f32.mrb[0].mxu0
        %v3909 = vadd.f32 0.0, %v3908
        %3910 = vmatprep.mubr.bf16.mxu0 %v3346
        %3911 = vmatmul.mubr.bf16.gmra.mrb[0].mxu0 %v3338
        %v3912 = vpop.f32.mrb[0].mxu0
        %v3913 = vadd.f32 0.0, %v3912
        %v3914 = vpop.f32.mrb[0].mxu0
        %v3915 = vadd.f32 0.0, %v3914
        %v3916 = vpop.f32.mrb[0].mxu0
        %v3917 = vadd.f32 0.0, %v3916
        %v3918 = vpop.f32.mrb[0].mxu0
        %v3919 = vadd.f32 0.0, %v3918
        %3920 = vmatprep.mubr.bf16.mxu0 %v3362
        %3921 = vmatmul.mubr.bf16.gmra.mrb[0].mxu0 %v3354
        %v3922 = vpop.f32.mrb[0].mxu0
        %v3923 = vadd.f32 0.0, %v3922
        %v3924 = vpop.f32.mrb[0].mxu0
        %v3925 = vadd.f32 0.0, %v3924
        %v3926 = vpop.f32.mrb[0].mxu0
        %v3927 = vadd.f32 0.0, %v3926
        %v3928 = vpop.f32.mrb[0].mxu0
        %v3929 = vadd.f32 0.0, %v3928
        %3930 = vmatprep.mubr.bf16.mxu0 %v3378
        %3931 = vmatmul.mubr.bf16.gmra.mrb[0].mxu0 %v3370
        %v3932 = vpop.f32.mrb[0].mxu0
        %v3933 = vadd.f32 0.0, %v3932
        %v3934 = vpop.f32.mrb[0].mxu0
        %v3935 = vadd.f32 0.0, %v3934
        %v3936 = vpop.f32.mrb[0].mxu0
        %v3937 = vadd.f32 0.0, %v3936
        %v3938 = vpop.f32.mrb[0].mxu0
        %v3939 = vadd.f32 0.0, %v3938
        %3940 = vdwg.mxu0
        %v4005 = vunpack.c.l.b16 %v3106
        %v4006 = vunpack.c.h.b16 %v3106
        %v4007 = vunpack.c.l.b16 %v3107
        %v4008 = vunpack.c.h.b16 %v3107
        %v4009 = vunpack.c.l.b16 %v3108
        %v4010 = vunpack.c.h.b16 %v3108
        %v4011 = vunpack.c.l.b16 %v3109
        %v4012 = vunpack.c.h.b16 %v3109
        %v4013 = vunpack.c.l.b16 %v3110
        %v4014 = vunpack.c.h.b16 %v3110
        %v4015 = vunpack.c.l.b16 %v3111
        %v4016 = vunpack.c.h.b16 %v3111
        %v4017 = vunpack.c.l.b16 %v3112
        %v4018 = vunpack.c.h.b16 %v3112
        %v4019 = vunpack.c.l.b16 %v3113
        %v4020 = vunpack.c.h.b16 %v3113
        %v4021 = vunpack.c.l.b16 %v3114
        %v4022 = vunpack.c.h.b16 %v3114
        %v4023 = vunpack.c.l.b16 %v3115
        %v4024 = vunpack.c.h.b16 %v3115
        %v4025 = vunpack.c.l.b16 %v3116
        %v4026 = vunpack.c.h.b16 %v3116
        %v4027 = vunpack.c.l.b16 %v3117
        %v4028 = vunpack.c.h.b16 %v3117
        %v4029 = vunpack.c.l.b16 %v3118
        %v4030 = vunpack.c.h.b16 %v3118
        %v4031 = vunpack.c.l.b16 %v3119
        %v4032 = vunpack.c.h.b16 %v3119
        %v4033 = vunpack.c.l.b16 %v3120
        %v4034 = vunpack.c.h.b16 %v3120
        %v4035 = vunpack.c.l.b16 %v3121
        %v4036 = vunpack.c.h.b16 %v3121
        %v4037 = vunpack.c.l.b16 %v3122
        %v4038 = vunpack.c.h.b16 %v3122
        %v4039 = vunpack.c.l.b16 %v3123
        %v4040 = vunpack.c.h.b16 %v3123
        %v4041 = vunpack.c.l.b16 %v3124
        %v4042 = vunpack.c.h.b16 %v3124
        %v4043 = vunpack.c.l.b16 %v3125
        %v4044 = vunpack.c.h.b16 %v3125
        %v4045 = vunpack.c.l.b16 %v3126
        %v4046 = vunpack.c.h.b16 %v3126
        %v4047 = vunpack.c.l.b16 %v3127
        %v4048 = vunpack.c.h.b16 %v3127
        %v4049 = vunpack.c.l.b16 %v3128
        %v4050 = vunpack.c.h.b16 %v3128
        %v4051 = vunpack.c.l.b16 %v3129
        %v4052 = vunpack.c.h.b16 %v3129
        %v4053 = vunpack.c.l.b16 %v3130
        %v4054 = vunpack.c.h.b16 %v3130
        %v4055 = vunpack.c.l.b16 %v3131
        %v4056 = vunpack.c.h.b16 %v3131
        %v4057 = vunpack.c.l.b16 %v3132
        %v4058 = vunpack.c.h.b16 %v3132
        %v4059 = vunpack.c.l.b16 %v3133
        %v4060 = vunpack.c.h.b16 %v3133
        %v4061 = vunpack.c.l.b16 %v3134
        %v4062 = vunpack.c.h.b16 %v3134
        %v4063 = vunpack.c.l.b16 %v3135
        %v4064 = vunpack.c.h.b16 %v3135
        %v4065 = vunpack.c.l.b16 %v3136
        %v4066 = vunpack.c.h.b16 %v3136
        %v4067 = vunpack.c.l.b16 %v3137
        %v4068 = vunpack.c.h.b16 %v3137
        %v4069 = vunpack.c.l.b16 %v3138
        %v4070 = vunpack.c.h.b16 %v3138
        %v4071 = vunpack.c.l.b16 %v3139
        %v4072 = vunpack.c.h.b16 %v3139
        %v4073 = vunpack.c.l.b16 %v3140
        %v4074 = vunpack.c.h.b16 %v3140
        %v4075 = vunpack.c.l.b16 %v3141
        %v4076 = vunpack.c.h.b16 %v3141
        %v4077 = vunpack.c.l.b16 %v3142
        %v4078 = vunpack.c.h.b16 %v3142
        %v4079 = vunpack.c.l.b16 %v3143
        %v4080 = vunpack.c.h.b16 %v3143
        %v4081 = vunpack.c.l.b16 %v3144
        %v4082 = vunpack.c.h.b16 %v3144
        %v4083 = vunpack.c.l.b16 %v3145
        %v4084 = vunpack.c.h.b16 %v3145
        %v4085 = vunpack.c.l.b16 %v3146
        %v4086 = vunpack.c.h.b16 %v3146
        %v4087 = vunpack.c.l.b16 %v3147
        %v4088 = vunpack.c.h.b16 %v3147
        %v4089 = vunpack.c.l.b16 %v3148
        %v4090 = vunpack.c.h.b16 %v3148
        %v4091 = vunpack.c.l.b16 %v3149
        %v4092 = vunpack.c.h.b16 %v3149
        %v4093 = vunpack.c.l.b16 %v3150
        %v4094 = vunpack.c.h.b16 %v3150
        %v4095 = vunpack.c.l.b16 %v3151
        %v4096 = vunpack.c.h.b16 %v3151
        %v4097 = vunpack.c.l.b16 %v3152
        %v4098 = vunpack.c.h.b16 %v3152
        %v4099 = vunpack.c.l.b16 %v3153
        %v4100 = vunpack.c.h.b16 %v3153
        %v4101 = vunpack.c.l.b16 %v3154
        %v4102 = vunpack.c.h.b16 %v3154
        %v4103 = vunpack.c.l.b16 %v3155
        %v4104 = vunpack.c.h.b16 %v3155
        %v4105 = vunpack.c.l.b16 %v3156
        %v4106 = vunpack.c.h.b16 %v3156
        %v4107 = vunpack.c.l.b16 %v3157
        %v4108 = vunpack.c.h.b16 %v3157
        %v4109 = vunpack.c.l.b16 %v3158
        %v4110 = vunpack.c.h.b16 %v3158
        %v4111 = vunpack.c.l.b16 %v3159
        %v4112 = vunpack.c.h.b16 %v3159
        %v4113 = vunpack.c.l.b16 %v3160
        %v4114 = vunpack.c.h.b16 %v3160
        %v4115 = vunpack.c.l.b16 %v3161
        %v4116 = vunpack.c.h.b16 %v3161
        %v4117 = vunpack.c.l.b16 %v3162
        %v4118 = vunpack.c.h.b16 %v3162
        %v4119 = vunpack.c.l.b16 %v3163
        %v4120 = vunpack.c.h.b16 %v3163
        %v4121 = vunpack.c.l.b16 %v3164
        %v4122 = vunpack.c.h.b16 %v3164
        %v4123 = vunpack.c.l.b16 %v3165
        %v4124 = vunpack.c.h.b16 %v3165
        %v4125 = vunpack.c.l.b16 %v3166
        %v4126 = vunpack.c.h.b16 %v3166
        %v4127 = vunpack.c.l.b16 %v3167
        %v4128 = vunpack.c.h.b16 %v3167
        %v4129 = vunpack.c.l.b16 %v3168
        %v4130 = vunpack.c.h.b16 %v3168
        %v4131 = vunpack.c.l.b16 %v3169
        %v4132 = vunpack.c.h.b16 %v3169
        %v4133 = vpack.c.b16 %v4009, %v4005
        %v4134 = vpack.c.b16 %v4010, %v4006
        %v4135 = vpack.c.b16 %v4011, %v4007
        %v4136 = vpack.c.b16 %v4012, %v4008
        %v4137 = vpack.c.b16 %v4017, %v4013
        %v4138 = vpack.c.b16 %v4018, %v4014
        %v4139 = vpack.c.b16 %v4019, %v4015
        %v4140 = vpack.c.b16 %v4020, %v4016
        %v4141 = vpack.c.b16 %v4025, %v4021
        %v4142 = vpack.c.b16 %v4026, %v4022
        %v4143 = vpack.c.b16 %v4027, %v4023
        %v4144 = vpack.c.b16 %v4028, %v4024
        %v4145 = vpack.c.b16 %v4033, %v4029
        %v4146 = vpack.c.b16 %v4034, %v4030
        %v4147 = vpack.c.b16 %v4035, %v4031
        %v4148 = vpack.c.b16 %v4036, %v4032
        %v4149 = vpack.c.b16 %v4041, %v4037
        %v4150 = vpack.c.b16 %v4042, %v4038
        %v4151 = vpack.c.b16 %v4043, %v4039
        %v4152 = vpack.c.b16 %v4044, %v4040
        %v4153 = vpack.c.b16 %v4049, %v4045
        %v4154 = vpack.c.b16 %v4050, %v4046
        %v4155 = vpack.c.b16 %v4051, %v4047
        %v4156 = vpack.c.b16 %v4052, %v4048
        %v4157 = vpack.c.b16 %v4057, %v4053
        %v4158 = vpack.c.b16 %v4058, %v4054
        %v4159 = vpack.c.b16 %v4059, %v4055
        %v4160 = vpack.c.b16 %v4060, %v4056
        %v4161 = vpack.c.b16 %v4065, %v4061
        %v4162 = vpack.c.b16 %v4066, %v4062
        %v4163 = vpack.c.b16 %v4067, %v4063
        %v4164 = vpack.c.b16 %v4068, %v4064
        %v4165 = vpack.c.b16 %v4073, %v4069
        %v4166 = vpack.c.b16 %v4074, %v4070
        %v4167 = vpack.c.b16 %v4075, %v4071
        %v4168 = vpack.c.b16 %v4076, %v4072
        %v4169 = vpack.c.b16 %v4081, %v4077
        %v4170 = vpack.c.b16 %v4082, %v4078
        %v4171 = vpack.c.b16 %v4083, %v4079
        %v4172 = vpack.c.b16 %v4084, %v4080
        %v4173 = vpack.c.b16 %v4089, %v4085
        %v4174 = vpack.c.b16 %v4090, %v4086
        %v4175 = vpack.c.b16 %v4091, %v4087
        %v4176 = vpack.c.b16 %v4092, %v4088
        %v4177 = vpack.c.b16 %v4097, %v4093
        %v4178 = vpack.c.b16 %v4098, %v4094
        %v4179 = vpack.c.b16 %v4099, %v4095
        %v4180 = vpack.c.b16 %v4100, %v4096
        %v4181 = vpack.c.b16 %v4105, %v4101
        %v4182 = vpack.c.b16 %v4106, %v4102
        %v4183 = vpack.c.b16 %v4107, %v4103
        %v4184 = vpack.c.b16 %v4108, %v4104
        %v4185 = vpack.c.b16 %v4113, %v4109
        %v4186 = vpack.c.b16 %v4114, %v4110
        %v4187 = vpack.c.b16 %v4115, %v4111
        %v4188 = vpack.c.b16 %v4116, %v4112
        %v4189 = vpack.c.b16 %v4121, %v4117
        %v4190 = vpack.c.b16 %v4122, %v4118
        %v4191 = vpack.c.b16 %v4123, %v4119
        %v4192 = vpack.c.b16 %v4124, %v4120
        %v4193 = vpack.c.b16 %v4129, %v4125
        %v4194 = vpack.c.b16 %v4130, %v4126
        %v4195 = vpack.c.b16 %v4131, %v4127
        %v4196 = vpack.c.b16 %v4132, %v4128
        %4261 = vmatprep.subr.bf16.mxu0 %v4134
        %4262 = vmatpush1.bf16.msra.mxu0 %v4133
        %4263 = vmatprep.subr.bf16.mxu0 %v4138
        %4264 = vmatpush1.bf16.msra.mxu0 %v4137
        %4265 = vmatprep.subr.bf16.mxu0 %v4142
        %4266 = vmatpush1.bf16.msra.mxu0 %v4141
        %4267 = vmatprep.subr.bf16.mxu0 %v4146
        %4268 = vmatpush1.bf16.msra.mxu0 %v4145
        %4269 = vmatprep.subr.bf16.mxu0 %v4150
        %4270 = vmatpush1.bf16.msra.mxu0 %v4149
        %4271 = vmatprep.subr.bf16.mxu0 %v4154
        %4272 = vmatpush1.bf16.msra.mxu0 %v4153
        %4273 = vmatprep.subr.bf16.mxu0 %v4158
        %4274 = vmatpush1.bf16.msra.mxu0 %v4157
        %4275 = vmatprep.subr.bf16.mxu0 %v4162
        %4276 = vmatpush1.bf16.msra.mxu0 %v4161
        %4277 = vmatprep.subr.bf16.mxu0 %v4166
        %4278 = vmatpush1.bf16.msra.mxu0 %v4165
        %4279 = vmatprep.subr.bf16.mxu0 %v4170
        %4280 = vmatpush1.bf16.msra.mxu0 %v4169
        %4281 = vmatprep.subr.bf16.mxu0 %v4174
        %4282 = vmatpush1.bf16.msra.mxu0 %v4173
        %4283 = vmatprep.subr.bf16.mxu0 %v4178
        %4284 = vmatpush1.bf16.msra.mxu0 %v4177
        %4285 = vmatprep.subr.bf16.mxu0 %v4182
        %4286 = vmatpush1.bf16.msra.mxu0 %v4181
        %4287 = vmatprep.subr.bf16.mxu0 %v4186
        %4288 = vmatpush1.bf16.msra.mxu0 %v4185
        %4289 = vmatprep.subr.bf16.mxu0 %v4190
        %4290 = vmatpush1.bf16.msra.mxu0 %v4189
        %4291 = vmatprep.subr.bf16.mxu0 %v4194
        %4292 = vmatpush1.bf16.msra.mxu0 %v4193
        %4293 = vmatprep.mubr.bf16.mxu0 %v3091
        %4294 = vmatmul.mubr.bf16.gmra.mrb[0].mxu0 %v3090
        %v4295 = vpop.f32.mrb[0].mxu0
        %v4296 = vadd.f32 %v3750, %v4295
        %v4297 = vpop.f32.mrb[0].mxu0
        %v4298 = vadd.f32 %v3752, %v4297
        %v4299 = vpop.f32.mrb[0].mxu0
        %v4300 = vadd.f32 %v3754, %v4299
        %v4301 = vpop.f32.mrb[0].mxu0
        %v4302 = vadd.f32 %v3756, %v4301
        %4303 = vmatprep.mubr.bf16.mxu0 %v3093
        %4304 = vmatmul.mubr.bf16.gmra.mrb[0].mxu0 %v3092
        %v4305 = vpop.f32.mrb[0].mxu0
        %v4306 = vadd.f32 %v3760, %v4305
        %v4307 = vpop.f32.mrb[0].mxu0
        %v4308 = vadd.f32 %v3762, %v4307
        %v4309 = vpop.f32.mrb[0].mxu0
        %v4310 = vadd.f32 %v3764, %v4309
        %v4311 = vpop.f32.mrb[0].mxu0
        %v4312 = vadd.f32 %v3766, %v4311
        %4313 = vmatprep.mubr.bf16.mxu0 %v3095
        %4314 = vmatmul.mubr.bf16.gmra.mrb[0].mxu0 %v3094
        %v4315 = vpop.f32.mrb[0].mxu0
        %v4316 = vadd.f32 %v3770, %v4315
        %v4317 = vpop.f32.mrb[0].mxu0
        %v4318 = vadd.f32 %v3772, %v4317
        %v4319 = vpop.f32.mrb[0].mxu0
        %v4320 = vadd.f32 %v3774, %v4319
        %v4321 = vpop.f32.mrb[0].mxu0
        %v4322 = vadd.f32 %v3776, %v4321
        %4323 = vmatprep.mubr.bf16.mxu0 %v3097
        %4324 = vmatmul.mubr.bf16.gmra.mrb[0].mxu0 %v3096
        %v4325 = vpop.f32.mrb[0].mxu0
        %v4326 = vadd.f32 %v3780, %v4325
        %v4327 = vpop.f32.mrb[0].mxu0
        %v4328 = vadd.f32 %v3782, %v4327
        %v4329 = vpop.f32.mrb[0].mxu0
        %v4330 = vadd.f32 %v3784, %v4329
        %v4331 = vpop.f32.mrb[0].mxu0
        %v4332 = vadd.f32 %v3786, %v4331
        %4333 = vmatprep.mubr.bf16.mxu0 %v3099
        %4334 = vmatmul.mubr.bf16.gmra.mrb[0].mxu0 %v3098
        %v4335 = vpop.f32.mrb[0].mxu0
        %v4336 = vadd.f32 %v3790, %v4335
        %v4337 = vpop.f32.mrb[0].mxu0
        %v4338 = vadd.f32 %v3792, %v4337
        %v4339 = vpop.f32.mrb[0].mxu0
        %v4340 = vadd.f32 %v3794, %v4339
        %v4341 = vpop.f32.mrb[0].mxu0
        %v4342 = vadd.f32 %v3796, %v4341
        %4343 = vmatprep.mubr.bf16.mxu0 %v3101
        %4344 = vmatmul.mubr.bf16.gmra.mrb[0].mxu0 %v3100
        %v4345 = vpop.f32.mrb[0].mxu0
        %v4346 = vadd.f32 %v3800, %v4345
        %v4347 = vpop.f32.mrb[0].mxu0
        %v4348 = vadd.f32 %v3802, %v4347
        %v4349 = vpop.f32.mrb[0].mxu0
        %v4350 = vadd.f32 %v3804, %v4349
        %v4351 = vpop.f32.mrb[0].mxu0
        %v4352 = vadd.f32 %v3806, %v4351
        %4353 = vmatprep.mubr.bf16.mxu0 %v3103
        %4354 = vmatmul.mubr.bf16.gmra.mrb[0].mxu0 %v3102
        %v4355 = vpop.f32.mrb[0].mxu0
        %v4356 = vadd.f32 %v3810, %v4355
        %v4357 = vpop.f32.mrb[0].mxu0
        %v4358 = vadd.f32 %v3812, %v4357
        %v4359 = vpop.f32.mrb[0].mxu0
        %v4360 = vadd.f32 %v3814, %v4359
        %v4361 = vpop.f32.mrb[0].mxu0
        %v4362 = vadd.f32 %v3816, %v4361
        %4363 = vmatprep.mubr.bf16.mxu0 %v3105
        %4364 = vmatmul.mubr.bf16.gmra.mrb[0].mxu0 %v3104
        %v4365 = vpop.f32.mrb[0].mxu0
        %v4366 = vadd.f32 %v3820, %v4365
        %v4367 = vpop.f32.mrb[0].mxu0
        %v4368 = vadd.f32 %v3822, %v4367
        %v4369 = vpop.f32.mrb[0].mxu0
        %v4370 = vadd.f32 %v3824, %v4369
        %v4371 = vpop.f32.mrb[0].mxu0
        %v4372 = vadd.f32 %v3826, %v4371
        %4373 = vdwg.mxu0
        %4374 = vmatprep.subr.bf16.mxu0 %v4136
        %4375 = vmatpush1.bf16.msra.mxu0 %v4135
        %4376 = vmatprep.subr.bf16.mxu0 %v4140
        %4377 = vmatpush1.bf16.msra.mxu0 %v4139
        %4378 = vmatprep.subr.bf16.mxu0 %v4144
        %4379 = vmatpush1.bf16.msra.mxu0 %v4143
        %4380 = vmatprep.subr.bf16.mxu0 %v4148
        %4381 = vmatpush1.bf16.msra.mxu0 %v4147
        %4382 = vmatprep.subr.bf16.mxu0 %v4152
        %4383 = vmatpush1.bf16.msra.mxu0 %v4151
        %4384 = vmatprep.subr.bf16.mxu0 %v4156
        %4385 = vmatpush1.bf16.msra.mxu0 %v4155
        %4386 = vmatprep.subr.bf16.mxu0 %v4160
        %4387 = vmatpush1.bf16.msra.mxu0 %v4159
        %4388 = vmatprep.subr.bf16.mxu0 %v4164
        %4389 = vmatpush1.bf16.msra.mxu0 %v4163
        %4390 = vmatprep.subr.bf16.mxu0 %v4168
        %4391 = vmatpush1.bf16.msra.mxu0 %v4167
        %4392 = vmatprep.subr.bf16.mxu0 %v4172
        %4393 = vmatpush1.bf16.msra.mxu0 %v4171
        %4394 = vmatprep.subr.bf16.mxu0 %v4176
        %4395 = vmatpush1.bf16.msra.mxu0 %v4175
        %4396 = vmatprep.subr.bf16.mxu0 %v4180
        %4397 = vmatpush1.bf16.msra.mxu0 %v4179
        %4398 = vmatprep.subr.bf16.mxu0 %v4184
        %4399 = vmatpush1.bf16.msra.mxu0 %v4183
        %4400 = vmatprep.subr.bf16.mxu0 %v4188
        %4401 = vmatpush1.bf16.msra.mxu0 %v4187
        %4402 = vmatprep.subr.bf16.mxu0 %v4192
        %4403 = vmatpush1.bf16.msra.mxu0 %v4191
        %4404 = vmatprep.subr.bf16.mxu0 %v4196
        %4405 = vmatpush1.bf16.msra.mxu0 %v4195
        %4406 = vmatprep.mubr.bf16.mxu0 %v3091
        %4407 = vmatmul.mubr.bf16.gmra.mrb[0].mxu0 %v3090
        %v4408 = vpop.f32.mrb[0].mxu0
        %v4409 = vadd.f32 %v3863, %v4408
        %v4410 = vpop.f32.mrb[0].mxu0
        %v4411 = vadd.f32 %v3865, %v4410
        %v4412 = vpop.f32.mrb[0].mxu0
        %v4413 = vadd.f32 %v3867, %v4412
        %v4414 = vpop.f32.mrb[0].mxu0
        %v4415 = vadd.f32 %v3869, %v4414
        %4416 = vmatprep.mubr.bf16.mxu0 %v3093
        %4417 = vmatmul.mubr.bf16.gmra.mrb[0].mxu0 %v3092
        %v4418 = vpop.f32.mrb[0].mxu0
        %v4419 = vadd.f32 %v3873, %v4418
        %v4420 = vpop.f32.mrb[0].mxu0
        %v4421 = vadd.f32 %v3875, %v4420
        %v4422 = vpop.f32.mrb[0].mxu0
        %v4423 = vadd.f32 %v3877, %v4422
        %v4424 = vpop.f32.mrb[0].mxu0
        %v4425 = vadd.f32 %v3879, %v4424
        %4426 = vmatprep.mubr.bf16.mxu0 %v3095
        %4427 = vmatmul.mubr.bf16.gmra.mrb[0].mxu0 %v3094
        %v4428 = vpop.f32.mrb[0].mxu0
        %v4429 = vadd.f32 %v3883, %v4428
        %v4430 = vpop.f32.mrb[0].mxu0
        %v4431 = vadd.f32 %v3885, %v4430
        %v4432 = vpop.f32.mrb[0].mxu0
        %v4433 = vadd.f32 %v3887, %v4432
        %v4434 = vpop.f32.mrb[0].mxu0
        %v4435 = vadd.f32 %v3889, %v4434
        %4436 = vmatprep.mubr.bf16.mxu0 %v3097
        %4437 = vmatmul.mubr.bf16.gmra.mrb[0].mxu0 %v3096
        %v4438 = vpop.f32.mrb[0].mxu0
        %v4439 = vadd.f32 %v3893, %v4438
        %v4440 = vpop.f32.mrb[0].mxu0
        %v4441 = vadd.f32 %v3895, %v4440
        %v4442 = vpop.f32.mrb[0].mxu0
        %v4443 = vadd.f32 %v3897, %v4442
        %v4444 = vpop.f32.mrb[0].mxu0
        %v4445 = vadd.f32 %v3899, %v4444
        %4446 = vmatprep.mubr.bf16.mxu0 %v3099
        %4447 = vmatmul.mubr.bf16.gmra.mrb[0].mxu0 %v3098
        %v4448 = vpop.f32.mrb[0].mxu0
        %v4449 = vadd.f32 %v3903, %v4448
        %v4450 = vpop.f32.mrb[0].mxu0
        %v4451 = vadd.f32 %v3905, %v4450
        %v4452 = vpop.f32.mrb[0].mxu0
        %v4453 = vadd.f32 %v3907, %v4452
        %v4454 = vpop.f32.mrb[0].mxu0
        %v4455 = vadd.f32 %v3909, %v4454
        %4456 = vmatprep.mubr.bf16.mxu0 %v3101
        %4457 = vmatmul.mubr.bf16.gmra.mrb[0].mxu0 %v3100
        %v4458 = vpop.f32.mrb[0].mxu0
        %v4459 = vadd.f32 %v3913, %v4458
        %v4460 = vpop.f32.mrb[0].mxu0
        %v4461 = vadd.f32 %v3915, %v4460
        %v4462 = vpop.f32.mrb[0].mxu0
        %v4463 = vadd.f32 %v3917, %v4462
        %v4464 = vpop.f32.mrb[0].mxu0
        %v4465 = vadd.f32 %v3919, %v4464
        %4466 = vmatprep.mubr.bf16.mxu0 %v3103
        %4467 = vmatmul.mubr.bf16.gmra.mrb[0].mxu0 %v3102
        %v4468 = vpop.f32.mrb[0].mxu0
        %v4469 = vadd.f32 %v3923, %v4468
        %v4470 = vpop.f32.mrb[0].mxu0
        %v4471 = vadd.f32 %v3925, %v4470
        %v4472 = vpop.f32.mrb[0].mxu0
        %v4473 = vadd.f32 %v3927, %v4472
        %v4474 = vpop.f32.mrb[0].mxu0
        %v4475 = vadd.f32 %v3929, %v4474
        %4476 = vmatprep.mubr.bf16.mxu0 %v3105
        %4477 = vmatmul.mubr.bf16.gmra.mrb[0].mxu0 %v3104
        %v4478 = vpop.f32.mrb[0].mxu0
        %v4479 = vadd.f32 %v3933, %v4478
        %v4480 = vpop.f32.mrb[0].mxu0
        %v4481 = vadd.f32 %v3935, %v4480
        %v4482 = vpop.f32.mrb[0].mxu0
        %v4483 = vadd.f32 %v3937, %v4482
        %v4484 = vpop.f32.mrb[0].mxu0
        %v4485 = vadd.f32 %v3939, %v4484
        %4486 = vdwg.mxu0
        %v4487 = vld [vmem:[#allocation5] sm:$0xfc]
        %v4488 = vld [vmem:[#allocation5 + $0x8] sm:$0xfc]
        %v4489 = vld [vmem:[#allocation5 + $0x100] sm:$0x3]
        %v4490 = vld [vmem:[#allocation5 + $0x108] sm:$0x3]
        %v4491 = vpack.c.bf16 %v3060, %v4487
        %v4492 = vpack.c.bf16 %v3061, %v4488
        %v4493 = vpack.c.bf16 %v4489, %v4489
        %v4494 = vpack.c.bf16 %v4490, %v4490
        %s4495 = scalar_lea.vmem [#allocation10], 1024
        %v4496 = vld [vmem:[%s4495] sm:$0xff]
        %v4497 = vld [vmem:[%s4495 + $0x8] sm:$0xff]
        %v4498 = vld [vmem:[%s4495 + $0x10] sm:$0xff]
        %v4499 = vld [vmem:[%s4495 + $0x18] sm:$0xff]
        %v4500 = vld [vmem:[%s4495 + $0x20] sm:$0xff]
        %v4501 = vld [vmem:[%s4495 + $0x28] sm:$0xff]
        %v4502 = vld [vmem:[%s4495 + $0x30] sm:$0xff]
        %v4503 = vld [vmem:[%s4495 + $0x38] sm:$0xff]
        %v4504 = vld [vmem:[%s4495 + $0x40] sm:$0xff]
        %v4505 = vld [vmem:[%s4495 + $0x48] sm:$0xff]
        %v4506 = vld [vmem:[%s4495 + $0x50] sm:$0xff]
        %v4507 = vld [vmem:[%s4495 + $0x58] sm:$0xff]
        %v4508 = vld [vmem:[%s4495 + $0x60] sm:$0xff]
        %v4509 = vld [vmem:[%s4495 + $0x68] sm:$0xff]
        %v4510 = vld [vmem:[%s4495 + $0x70] sm:$0xff]
        %v4511 = vld [vmem:[%s4495 + $0x78] sm:$0xff]
        %v4512 = vld [vmem:[%s4495 + $0x80] sm:$0xff]
        %v4513 = vld [vmem:[%s4495 + $0x88] sm:$0xff]
        %v4514 = vld [vmem:[%s4495 + $0x90] sm:$0xff]
        %v4515 = vld [vmem:[%s4495 + $0x98] sm:$0xff]
        %v4516 = vld [vmem:[%s4495 + $0xa0] sm:$0xff]
        %v4517 = vld [vmem:[%s4495 + $0xa8] sm:$0xff]
        %v4518 = vld [vmem:[%s4495 + $0xb0] sm:$0xff]
        %v4519 = vld [vmem:[%s4495 + $0xb8] sm:$0xff]
        %v4520 = vld [vmem:[%s4495 + $0xc0] sm:$0xff]
        %v4521 = vld [vmem:[%s4495 + $0xc8] sm:$0xff]
        %v4522 = vld [vmem:[%s4495 + $0xd0] sm:$0xff]
        %v4523 = vld [vmem:[%s4495 + $0xd8] sm:$0xff]
        %v4524 = vld [vmem:[%s4495 + $0xe0] sm:$0xff]
        %v4525 = vld [vmem:[%s4495 + $0xe8] sm:$0xff]
        %v4526 = vld [vmem:[%s4495 + $0xf0] sm:$0xff]
        %v4527 = vld [vmem:[%s4495 + $0xf8] sm:$0xff]
        %v4528 = vld [vmem:[%s4495 + $0x100] sm:$0xff]
        %v4529 = vld [vmem:[%s4495 + $0x108] sm:$0xff]
        %v4530 = vld [vmem:[%s4495 + $0x110] sm:$0xff]
        %v4531 = vld [vmem:[%s4495 + $0x118] sm:$0xff]
        %v4532 = vld [vmem:[%s4495 + $0x120] sm:$0xff]
        %v4533 = vld [vmem:[%s4495 + $0x128] sm:$0xff]
        %v4534 = vld [vmem:[%s4495 + $0x130] sm:$0xff]
        %v4535 = vld [vmem:[%s4495 + $0x138] sm:$0xff]
        %v4536 = vld [vmem:[%s4495 + $0x140] sm:$0xff]
        %v4537 = vld [vmem:[%s4495 + $0x148] sm:$0xff]
        %v4538 = vld [vmem:[%s4495 + $0x150] sm:$0xff]
        %v4539 = vld [vmem:[%s4495 + $0x158] sm:$0xff]
        %v4540 = vld [vmem:[%s4495 + $0x160] sm:$0xff]
        %v4541 = vld [vmem:[%s4495 + $0x168] sm:$0xff]
        %v4542 = vld [vmem:[%s4495 + $0x170] sm:$0xff]
        %v4543 = vld [vmem:[%s4495 + $0x178] sm:$0xff]
        %v4544 = vld [vmem:[%s4495 + $0x180] sm:$0xff]
        %v4545 = vld [vmem:[%s4495 + $0x188] sm:$0xff]
        %v4546 = vld [vmem:[%s4495 + $0x190] sm:$0xff]
        %v4547 = vld [vmem:[%s4495 + $0x198] sm:$0xff]
        %v4548 = vld [vmem:[%s4495 + $0x1a0] sm:$0xff]
        %v4549 = vld [vmem:[%s4495 + $0x1a8] sm:$0xff]
        %v4550 = vld [vmem:[%s4495 + $0x1b0] sm:$0xff]
        %v4551 = vld [vmem:[%s4495 + $0x1b8] sm:$0xff]
        %v4552 = vld [vmem:[%s4495 + $0x1c0] sm:$0xff]
        %v4553 = vld [vmem:[%s4495 + $0x1c8] sm:$0xff]
        %v4554 = vld [vmem:[%s4495 + $0x1d0] sm:$0xff]
        %v4555 = vld [vmem:[%s4495 + $0x1d8] sm:$0xff]
        %v4556 = vld [vmem:[%s4495 + $0x1e0] sm:$0xff]
        %v4557 = vld [vmem:[%s4495 + $0x1e8] sm:$0xff]
        %v4558 = vld [vmem:[%s4495 + $0x1f0] sm:$0xff]
        %v4559 = vld [vmem:[%s4495 + $0x1f8] sm:$0xff]
        %v4578 = vrot.slane %v4491, 1
        %v4579 = vrot.slane %v3092, 1
        %v4580 = vsel %vm2369, %v4578, %v4579
        %v4581 = vrot.slane %v4492, 1
        %v4582 = vrot.slane %v3093, 1
        %v4583 = vsel %vm2369, %v4581, %v4582
        %v4584 = vrot.slane %v3094, 1
        %v4585 = vsel %vm2369, %v4579, %v4584
        %v4586 = vrot.slane %v3095, 1
        %v4587 = vsel %vm2369, %v4582, %v4586
        %v4588 = vrot.slane %v3096, 1
        %v4589 = vsel %vm2369, %v4584, %v4588
        %v4590 = vrot.slane %v3097, 1
        %v4591 = vsel %vm2369, %v4586, %v4590
        %v4592 = vrot.slane %v3098, 1
        %v4593 = vsel %vm2369, %v4588, %v4592
        %v4594 = vrot.slane %v3099, 1
        %v4595 = vsel %vm2369, %v4590, %v4594
        %v4596 = vrot.slane %v3100, 1
        %v4597 = vsel %vm2369, %v4592, %v4596
        %v4598 = vrot.slane %v3101, 1
        %v4599 = vsel %vm2369, %v4594, %v4598
        %v4600 = vrot.slane %v3102, 1
        %v4601 = vsel %vm2369, %v4596, %v4600
        %v4602 = vrot.slane %v3103, 1
        %v4603 = vsel %vm2369, %v4598, %v4602
        %v4604 = vrot.slane %v3104, 1
        %v4605 = vsel %vm2369, %v4600, %v4604
        %v4606 = vrot.slane %v3105, 1
        %v4607 = vsel %vm2369, %v4602, %v4606
        %v4608 = vrot.slane %v4493, 1
        %v4609 = vsel %vm2369, %v4604, %v4608
        %v4610 = vrot.slane %v4494, 1
        %v4611 = vsel %vm2369, %v4606, %v4610
        %v4692 = vunpack.c.l.b16 %v4496
        %v4693 = vunpack.c.h.b16 %v4496
        %v4694 = vunpack.c.l.b16 %v4497
        %v4695 = vunpack.c.h.b16 %v4497
        %v4696 = vunpack.c.l.b16 %v4498
        %v4697 = vunpack.c.h.b16 %v4498
        %v4698 = vunpack.c.l.b16 %v4499
        %v4699 = vunpack.c.h.b16 %v4499
        %v4700 = vunpack.c.l.b16 %v4500
        %v4701 = vunpack.c.h.b16 %v4500
        %v4702 = vunpack.c.l.b16 %v4501
        %v4703 = vunpack.c.h.b16 %v4501
        %v4704 = vunpack.c.l.b16 %v4502
        %v4705 = vunpack.c.h.b16 %v4502
        %v4706 = vunpack.c.l.b16 %v4503
        %v4707 = vunpack.c.h.b16 %v4503
        %v4708 = vunpack.c.l.b16 %v4504
        %v4709 = vunpack.c.h.b16 %v4504
        %v4710 = vunpack.c.l.b16 %v4505
        %v4711 = vunpack.c.h.b16 %v4505
        %v4712 = vunpack.c.l.b16 %v4506
        %v4713 = vunpack.c.h.b16 %v4506
        %v4714 = vunpack.c.l.b16 %v4507
        %v4715 = vunpack.c.h.b16 %v4507
        %v4716 = vunpack.c.l.b16 %v4508
        %v4717 = vunpack.c.h.b16 %v4508
        %v4718 = vunpack.c.l.b16 %v4509
        %v4719 = vunpack.c.h.b16 %v4509
        %v4720 = vunpack.c.l.b16 %v4510
        %v4721 = vunpack.c.h.b16 %v4510
        %v4722 = vunpack.c.l.b16 %v4511
        %v4723 = vunpack.c.h.b16 %v4511
        %v4724 = vunpack.c.l.b16 %v4512
        %v4725 = vunpack.c.h.b16 %v4512
        %v4726 = vunpack.c.l.b16 %v4513
        %v4727 = vunpack.c.h.b16 %v4513
        %v4728 = vunpack.c.l.b16 %v4514
        %v4729 = vunpack.c.h.b16 %v4514
        %v4730 = vunpack.c.l.b16 %v4515
        %v4731 = vunpack.c.h.b16 %v4515
        %v4732 = vunpack.c.l.b16 %v4516
        %v4733 = vunpack.c.h.b16 %v4516
        %v4734 = vunpack.c.l.b16 %v4517
        %v4735 = vunpack.c.h.b16 %v4517
        %v4736 = vunpack.c.l.b16 %v4518
        %v4737 = vunpack.c.h.b16 %v4518
        %v4738 = vunpack.c.l.b16 %v4519
        %v4739 = vunpack.c.h.b16 %v4519
        %v4740 = vunpack.c.l.b16 %v4520
        %v4741 = vunpack.c.h.b16 %v4520
        %v4742 = vunpack.c.l.b16 %v4521
        %v4743 = vunpack.c.h.b16 %v4521
        %v4744 = vunpack.c.l.b16 %v4522
        %v4745 = vunpack.c.h.b16 %v4522
        %v4746 = vunpack.c.l.b16 %v4523
        %v4747 = vunpack.c.h.b16 %v4523
        %v4748 = vunpack.c.l.b16 %v4524
        %v4749 = vunpack.c.h.b16 %v4524
        %v4750 = vunpack.c.l.b16 %v4525
        %v4751 = vunpack.c.h.b16 %v4525
        %v4752 = vunpack.c.l.b16 %v4526
        %v4753 = vunpack.c.h.b16 %v4526
        %v4754 = vunpack.c.l.b16 %v4527
        %v4755 = vunpack.c.h.b16 %v4527
        %v4756 = vunpack.c.l.b16 %v4528
        %v4757 = vunpack.c.h.b16 %v4528
        %v4758 = vunpack.c.l.b16 %v4529
        %v4759 = vunpack.c.h.b16 %v4529
        %v4760 = vunpack.c.l.b16 %v4530
        %v4761 = vunpack.c.h.b16 %v4530
        %v4762 = vunpack.c.l.b16 %v4531
        %v4763 = vunpack.c.h.b16 %v4531
        %v4764 = vunpack.c.l.b16 %v4532
        %v4765 = vunpack.c.h.b16 %v4532
        %v4766 = vunpack.c.l.b16 %v4533
        %v4767 = vunpack.c.h.b16 %v4533
        %v4768 = vunpack.c.l.b16 %v4534
        %v4769 = vunpack.c.h.b16 %v4534
        %v4770 = vunpack.c.l.b16 %v4535
        %v4771 = vunpack.c.h.b16 %v4535
        %v4772 = vunpack.c.l.b16 %v4536
        %v4773 = vunpack.c.h.b16 %v4536
        %v4774 = vunpack.c.l.b16 %v4537
        %v4775 = vunpack.c.h.b16 %v4537
        %v4776 = vunpack.c.l.b16 %v4538
        %v4777 = vunpack.c.h.b16 %v4538
        %v4778 = vunpack.c.l.b16 %v4539
        %v4779 = vunpack.c.h.b16 %v4539
        %v4780 = vunpack.c.l.b16 %v4540
        %v4781 = vunpack.c.h.b16 %v4540
        %v4782 = vunpack.c.l.b16 %v4541
        %v4783 = vunpack.c.h.b16 %v4541
        %v4784 = vunpack.c.l.b16 %v4542
        %v4785 = vunpack.c.h.b16 %v4542
        %v4786 = vunpack.c.l.b16 %v4543
        %v4787 = vunpack.c.h.b16 %v4543
        %v4788 = vunpack.c.l.b16 %v4544
        %v4789 = vunpack.c.h.b16 %v4544
        %v4790 = vunpack.c.l.b16 %v4545
        %v4791 = vunpack.c.h.b16 %v4545
        %v4792 = vunpack.c.l.b16 %v4546
        %v4793 = vunpack.c.h.b16 %v4546
        %v4794 = vunpack.c.l.b16 %v4547
        %v4795 = vunpack.c.h.b16 %v4547
        %v4796 = vunpack.c.l.b16 %v4548
        %v4797 = vunpack.c.h.b16 %v4548
        %v4798 = vunpack.c.l.b16 %v4549
        %v4799 = vunpack.c.h.b16 %v4549
        %v4800 = vunpack.c.l.b16 %v4550
        %v4801 = vunpack.c.h.b16 %v4550
        %v4802 = vunpack.c.l.b16 %v4551
        %v4803 = vunpack.c.h.b16 %v4551
        %v4804 = vunpack.c.l.b16 %v4552
        %v4805 = vunpack.c.h.b16 %v4552
        %v4806 = vunpack.c.l.b16 %v4553
        %v4807 = vunpack.c.h.b16 %v4553
        %v4808 = vunpack.c.l.b16 %v4554
        %v4809 = vunpack.c.h.b16 %v4554
        %v4810 = vunpack.c.l.b16 %v4555
        %v4811 = vunpack.c.h.b16 %v4555
        %v4812 = vunpack.c.l.b16 %v4556
        %v4813 = vunpack.c.h.b16 %v4556
        %v4814 = vunpack.c.l.b16 %v4557
        %v4815 = vunpack.c.h.b16 %v4557
        %v4816 = vunpack.c.l.b16 %v4558
        %v4817 = vunpack.c.h.b16 %v4558
        %v4818 = vunpack.c.l.b16 %v4559
        %v4819 = vunpack.c.h.b16 %v4559
        %v4820 = vpack.c.b16 %v4696, %v4692
        %v4821 = vpack.c.b16 %v4697, %v4693
        %v4822 = vpack.c.b16 %v4698, %v4694
        %v4823 = vpack.c.b16 %v4699, %v4695
        %v4824 = vpack.c.b16 %v4704, %v4700
        %v4825 = vpack.c.b16 %v4705, %v4701
        %v4826 = vpack.c.b16 %v4706, %v4702
        %v4827 = vpack.c.b16 %v4707, %v4703
        %v4828 = vpack.c.b16 %v4712, %v4708
        %v4829 = vpack.c.b16 %v4713, %v4709
        %v4830 = vpack.c.b16 %v4714, %v4710
        %v4831 = vpack.c.b16 %v4715, %v4711
        %v4832 = vpack.c.b16 %v4720, %v4716
        %v4833 = vpack.c.b16 %v4721, %v4717
        %v4834 = vpack.c.b16 %v4722, %v4718
        %v4835 = vpack.c.b16 %v4723, %v4719
        %v4836 = vpack.c.b16 %v4728, %v4724
        %v4837 = vpack.c.b16 %v4729, %v4725
        %v4838 = vpack.c.b16 %v4730, %v4726
        %v4839 = vpack.c.b16 %v4731, %v4727
        %v4840 = vpack.c.b16 %v4736, %v4732
        %v4841 = vpack.c.b16 %v4737, %v4733
        %v4842 = vpack.c.b16 %v4738, %v4734
        %v4843 = vpack.c.b16 %v4739, %v4735
        %v4844 = vpack.c.b16 %v4744, %v4740
        %v4845 = vpack.c.b16 %v4745, %v4741
        %v4846 = vpack.c.b16 %v4746, %v4742
        %v4847 = vpack.c.b16 %v4747, %v4743
        %v4848 = vpack.c.b16 %v4752, %v4748
        %v4849 = vpack.c.b16 %v4753, %v4749
        %v4850 = vpack.c.b16 %v4754, %v4750
        %v4851 = vpack.c.b16 %v4755, %v4751
        %v4852 = vpack.c.b16 %v4760, %v4756
        %v4853 = vpack.c.b16 %v4761, %v4757
        %v4854 = vpack.c.b16 %v4762, %v4758
        %v4855 = vpack.c.b16 %v4763, %v4759
        %v4856 = vpack.c.b16 %v4768, %v4764
        %v4857 = vpack.c.b16 %v4769, %v4765
        %v4858 = vpack.c.b16 %v4770, %v4766
        %v4859 = vpack.c.b16 %v4771, %v4767
        %v4860 = vpack.c.b16 %v4776, %v4772
        %v4861 = vpack.c.b16 %v4777, %v4773
        %v4862 = vpack.c.b16 %v4778, %v4774
        %v4863 = vpack.c.b16 %v4779, %v4775
        %v4864 = vpack.c.b16 %v4784, %v4780
        %v4865 = vpack.c.b16 %v4785, %v4781
        %v4866 = vpack.c.b16 %v4786, %v4782
        %v4867 = vpack.c.b16 %v4787, %v4783
        %v4868 = vpack.c.b16 %v4792, %v4788
        %v4869 = vpack.c.b16 %v4793, %v4789
        %v4870 = vpack.c.b16 %v4794, %v4790
        %v4871 = vpack.c.b16 %v4795, %v4791
        %v4872 = vpack.c.b16 %v4800, %v4796
        %v4873 = vpack.c.b16 %v4801, %v4797
        %v4874 = vpack.c.b16 %v4802, %v4798
        %v4875 = vpack.c.b16 %v4803, %v4799
        %v4876 = vpack.c.b16 %v4808, %v4804
        %v4877 = vpack.c.b16 %v4809, %v4805
        %v4878 = vpack.c.b16 %v4810, %v4806
        %v4879 = vpack.c.b16 %v4811, %v4807
        %v4880 = vpack.c.b16 %v4816, %v4812
        %v4881 = vpack.c.b16 %v4817, %v4813
        %v4882 = vpack.c.b16 %v4818, %v4814
        %v4883 = vpack.c.b16 %v4819, %v4815
        %4948 = vmatprep.subr.bf16.mxu0 %v4821
        %4949 = vmatpush1.bf16.msra.mxu0 %v4820
        %4950 = vmatprep.subr.bf16.mxu0 %v4825
        %4951 = vmatpush1.bf16.msra.mxu0 %v4824
        %4952 = vmatprep.subr.bf16.mxu0 %v4829
        %4953 = vmatpush1.bf16.msra.mxu0 %v4828
        %4954 = vmatprep.subr.bf16.mxu0 %v4833
        %4955 = vmatpush1.bf16.msra.mxu0 %v4832
        %4956 = vmatprep.subr.bf16.mxu0 %v4837
        %4957 = vmatpush1.bf16.msra.mxu0 %v4836
        %4958 = vmatprep.subr.bf16.mxu0 %v4841
        %4959 = vmatpush1.bf16.msra.mxu0 %v4840
        %4960 = vmatprep.subr.bf16.mxu0 %v4845
        %4961 = vmatpush1.bf16.msra.mxu0 %v4844
        %4962 = vmatprep.subr.bf16.mxu0 %v4849
        %4963 = vmatpush1.bf16.msra.mxu0 %v4848
        %4964 = vmatprep.subr.bf16.mxu0 %v4853
        %4965 = vmatpush1.bf16.msra.mxu0 %v4852
        %4966 = vmatprep.subr.bf16.mxu0 %v4857
        %4967 = vmatpush1.bf16.msra.mxu0 %v4856
        %4968 = vmatprep.subr.bf16.mxu0 %v4861
        %4969 = vmatpush1.bf16.msra.mxu0 %v4860
        %4970 = vmatprep.subr.bf16.mxu0 %v4865
        %4971 = vmatpush1.bf16.msra.mxu0 %v4864
        %4972 = vmatprep.subr.bf16.mxu0 %v4869
        %4973 = vmatpush1.bf16.msra.mxu0 %v4868
        %4974 = vmatprep.subr.bf16.mxu0 %v4873
        %4975 = vmatpush1.bf16.msra.mxu0 %v4872
        %4976 = vmatprep.subr.bf16.mxu0 %v4877
        %4977 = vmatpush1.bf16.msra.mxu0 %v4876
        %4978 = vmatprep.subr.bf16.mxu0 %v4881
        %4979 = vmatpush1.bf16.msra.mxu0 %v4880
        %4980 = vmatprep.mubr.bf16.mxu0 %v4583
        %4981 = vmatmul.mubr.bf16.gmra.mrb[0].mxu0 %v4580
        %v4982 = vpop.f32.mrb[0].mxu0
        %v4983 = vadd.f32 0.0, %v4982
        %v4984 = vpop.f32.mrb[0].mxu0
        %v4985 = vadd.f32 0.0, %v4984
        %v4986 = vpop.f32.mrb[0].mxu0
        %v4987 = vadd.f32 0.0, %v4986
        %v4988 = vpop.f32.mrb[0].mxu0
        %v4989 = vadd.f32 0.0, %v4988
        %4990 = vmatprep.mubr.bf16.mxu0 %v4587
        %4991 = vmatmul.mubr.bf16.gmra.mrb[0].mxu0 %v4585
        %v4992 = vpop.f32.mrb[0].mxu0
        %v4993 = vadd.f32 0.0, %v4992
        %v4994 = vpop.f32.mrb[0].mxu0
        %v4995 = vadd.f32 0.0, %v4994
        %v4996 = vpop.f32.mrb[0].mxu0
        %v4997 = vadd.f32 0.0, %v4996
        %v4998 = vpop.f32.mrb[0].mxu0
        %v4999 = vadd.f32 0.0, %v4998
        %5000 = vmatprep.mubr.bf16.mxu0 %v4591
        %5001 = vmatmul.mubr.bf16.gmra.mrb[0].mxu0 %v4589
        %v5002 = vpop.f32.mrb[0].mxu0
        %v5003 = vadd.f32 0.0, %v5002
        %v5004 = vpop.f32.mrb[0].mxu0
        %v5005 = vadd.f32 0.0, %v5004
        %v5006 = vpop.f32.mrb[0].mxu0
        %v5007 = vadd.f32 0.0, %v5006
        %v5008 = vpop.f32.mrb[0].mxu0
        %v5009 = vadd.f32 0.0, %v5008
        %5010 = vmatprep.mubr.bf16.mxu0 %v4595
        %5011 = vmatmul.mubr.bf16.gmra.mrb[0].mxu0 %v4593
        %v5012 = vpop.f32.mrb[0].mxu0
        %v5013 = vadd.f32 0.0, %v5012
        %v5014 = vpop.f32.mrb[0].mxu0
        %v5015 = vadd.f32 0.0, %v5014
        %v5016 = vpop.f32.mrb[0].mxu0
        %v5017 = vadd.f32 0.0, %v5016
        %v5018 = vpop.f32.mrb[0].mxu0
        %v5019 = vadd.f32 0.0, %v5018
        %5020 = vmatprep.mubr.bf16.mxu0 %v4599
        %5021 = vmatmul.mubr.bf16.gmra.mrb[0].mxu0 %v4597
        %v5022 = vpop.f32.mrb[0].mxu0
        %v5023 = vadd.f32 0.0, %v5022
        %v5024 = vpop.f32.mrb[0].mxu0
        %v5025 = vadd.f32 0.0, %v5024
        %v5026 = vpop.f32.mrb[0].mxu0
        %v5027 = vadd.f32 0.0, %v5026
        %v5028 = vpop.f32.mrb[0].mxu0
        %v5029 = vadd.f32 0.0, %v5028
        %5030 = vmatprep.mubr.bf16.mxu0 %v4603
        %5031 = vmatmul.mubr.bf16.gmra.mrb[0].mxu0 %v4601
        %v5032 = vpop.f32.mrb[0].mxu0
        %v5033 = vadd.f32 0.0, %v5032
        %v5034 = vpop.f32.mrb[0].mxu0
        %v5035 = vadd.f32 0.0, %v5034
        %v5036 = vpop.f32.mrb[0].mxu0
        %v5037 = vadd.f32 0.0, %v5036
        %v5038 = vpop.f32.mrb[0].mxu0
        %v5039 = vadd.f32 0.0, %v5038
        %5040 = vmatprep.mubr.bf16.mxu0 %v4607
        %5041 = vmatmul.mubr.bf16.gmra.mrb[0].mxu0 %v4605
        %v5042 = vpop.f32.mrb[0].mxu0
        %v5043 = vadd.f32 0.0, %v5042
        %v5044 = vpop.f32.mrb[0].mxu0
        %v5045 = vadd.f32 0.0, %v5044
        %v5046 = vpop.f32.mrb[0].mxu0
        %v5047 = vadd.f32 0.0, %v5046
        %v5048 = vpop.f32.mrb[0].mxu0
        %v5049 = vadd.f32 0.0, %v5048
        %5050 = vmatprep.mubr.bf16.mxu0 %v4611
        %5051 = vmatmul.mubr.bf16.gmra.mrb[0].mxu0 %v4609
        %v5052 = vpop.f32.mrb[0].mxu0
        %v5053 = vadd.f32 0.0, %v5052
        %v5054 = vpop.f32.mrb[0].mxu0
        %v5055 = vadd.f32 0.0, %v5054
        %v5056 = vpop.f32.mrb[0].mxu0
        %v5057 = vadd.f32 0.0, %v5056
        %v5058 = vpop.f32.mrb[0].mxu0
        %v5059 = vadd.f32 0.0, %v5058
        %5060 = vdwg.mxu0
        %5061 = vmatprep.subr.bf16.mxu0 %v4823
        %5062 = vmatpush1.bf16.msra.mxu0 %v4822
        %5063 = vmatprep.subr.bf16.mxu0 %v4827
        %5064 = vmatpush1.bf16.msra.mxu0 %v4826
        %5065 = vmatprep.subr.bf16.mxu0 %v4831
        %5066 = vmatpush1.bf16.msra.mxu0 %v4830
        %5067 = vmatprep.subr.bf16.mxu0 %v4835
        %5068 = vmatpush1.bf16.msra.mxu0 %v4834
        %5069 = vmatprep.subr.bf16.mxu0 %v4839
        %5070 = vmatpush1.bf16.msra.mxu0 %v4838
        %5071 = vmatprep.subr.bf16.mxu0 %v4843
        %5072 = vmatpush1.bf16.msra.mxu0 %v4842
        %5073 = vmatprep.subr.bf16.mxu0 %v4847
        %5074 = vmatpush1.bf16.msra.mxu0 %v4846
        %5075 = vmatprep.subr.bf16.mxu0 %v4851
        %5076 = vmatpush1.bf16.msra.mxu0 %v4850
        %5077 = vmatprep.subr.bf16.mxu0 %v4855
        %5078 = vmatpush1.bf16.msra.mxu0 %v4854
        %5079 = vmatprep.subr.bf16.mxu0 %v4859
        %5080 = vmatpush1.bf16.msra.mxu0 %v4858
        %5081 = vmatprep.subr.bf16.mxu0 %v4863
        %5082 = vmatpush1.bf16.msra.mxu0 %v4862
        %5083 = vmatprep.subr.bf16.mxu0 %v4867
        %5084 = vmatpush1.bf16.msra.mxu0 %v4866
        %5085 = vmatprep.subr.bf16.mxu0 %v4871
        %5086 = vmatpush1.bf16.msra.mxu0 %v4870
        %5087 = vmatprep.subr.bf16.mxu0 %v4875
        %5088 = vmatpush1.bf16.msra.mxu0 %v4874
        %5089 = vmatprep.subr.bf16.mxu0 %v4879
        %5090 = vmatpush1.bf16.msra.mxu0 %v4878
        %5091 = vmatprep.subr.bf16.mxu0 %v4883
        %5092 = vmatpush1.bf16.msra.mxu0 %v4882
        %5093 = vmatprep.mubr.bf16.mxu0 %v4583
        %5094 = vmatmul.mubr.bf16.gmra.mrb[0].mxu0 %v4580
        %v5095 = vpop.f32.mrb[0].mxu0
        %v5096 = vadd.f32 0.0, %v5095
        %v5097 = vpop.f32.mrb[0].mxu0
        %v5098 = vadd.f32 0.0, %v5097
        %v5099 = vpop.f32.mrb[0].mxu0
        %v5100 = vadd.f32 0.0, %v5099
        %v5101 = vpop.f32.mrb[0].mxu0
        %v5102 = vadd.f32 0.0, %v5101
        %5103 = vmatprep.mubr.bf16.mxu0 %v4587
        %5104 = vmatmul.mubr.bf16.gmra.mrb[0].mxu0 %v4585
        %v5105 = vpop.f32.mrb[0].mxu0
        %v5106 = vadd.f32 0.0, %v5105
        %v5107 = vpop.f32.mrb[0].mxu0
        %v5108 = vadd.f32 0.0, %v5107
        %v5109 = vpop.f32.mrb[0].mxu0
        %v5110 = vadd.f32 0.0, %v5109
        %v5111 = vpop.f32.mrb[0].mxu0
        %v5112 = vadd.f32 0.0, %v5111
        %5113 = vmatprep.mubr.bf16.mxu0 %v4591
        %5114 = vmatmul.mubr.bf16.gmra.mrb[0].mxu0 %v4589
        %v5115 = vpop.f32.mrb[0].mxu0
        %v5116 = vadd.f32 0.0, %v5115
        %v5117 = vpop.f32.mrb[0].mxu0
        %v5118 = vadd.f32 0.0, %v5117
        %v5119 = vpop.f32.mrb[0].mxu0
        %v5120 = vadd.f32 0.0, %v5119
        %v5121 = vpop.f32.mrb[0].mxu0
        %v5122 = vadd.f32 0.0, %v5121
        %5123 = vmatprep.mubr.bf16.mxu0 %v4595
        %5124 = vmatmul.mubr.bf16.gmra.mrb[0].mxu0 %v4593
        %v5125 = vpop.f32.mrb[0].mxu0
        %v5126 = vadd.f32 0.0, %v5125
        %v5127 = vpop.f32.mrb[0].mxu0
        %v5128 = vadd.f32 0.0, %v5127
        %v5129 = vpop.f32.mrb[0].mxu0
        %v5130 = vadd.f32 0.0, %v5129
        %v5131 = vpop.f32.mrb[0].mxu0
        %v5132 = vadd.f32 0.0, %v5131
        %5133 = vmatprep.mubr.bf16.mxu0 %v4599
        %5134 = vmatmul.mubr.bf16.gmra.mrb[0].mxu0 %v4597
        %v5135 = vpop.f32.mrb[0].mxu0
        %v5136 = vadd.f32 0.0, %v5135
        %v5137 = vpop.f32.mrb[0].mxu0
        %v5138 = vadd.f32 0.0, %v5137
        %v5139 = vpop.f32.mrb[0].mxu0
        %v5140 = vadd.f32 0.0, %v5139
        %v5141 = vpop.f32.mrb[0].mxu0
        %v5142 = vadd.f32 0.0, %v5141
        %5143 = vmatprep.mubr.bf16.mxu0 %v4603
        %5144 = vmatmul.mubr.bf16.gmra.mrb[0].mxu0 %v4601
        %v5145 = vpop.f32.mrb[0].mxu0
        %v5146 = vadd.f32 0.0, %v5145
        %v5147 = vpop.f32.mrb[0].mxu0
        %v5148 = vadd.f32 0.0, %v5147
        %v5149 = vpop.f32.mrb[0].mxu0
        %v5150 = vadd.f32 0.0, %v5149
        %v5151 = vpop.f32.mrb[0].mxu0
        %v5152 = vadd.f32 0.0, %v5151
        %5153 = vmatprep.mubr.bf16.mxu0 %v4607
        %5154 = vmatmul.mubr.bf16.gmra.mrb[0].mxu0 %v4605
        %v5155 = vpop.f32.mrb[0].mxu0
        %v5156 = vadd.f32 0.0, %v5155
        %v5157 = vpop.f32.mrb[0].mxu0
        %v5158 = vadd.f32 0.0, %v5157
        %v5159 = vpop.f32.mrb[0].mxu0
        %v5160 = vadd.f32 0.0, %v5159
        %v5161 = vpop.f32.mrb[0].mxu0
        %v5162 = vadd.f32 0.0, %v5161
        %5163 = vmatprep.mubr.bf16.mxu0 %v4611
        %5164 = vmatmul.mubr.bf16.gmra.mrb[0].mxu0 %v4609
        %v5165 = vpop.f32.mrb[0].mxu0
        %v5166 = vadd.f32 0.0, %v5165
        %v5167 = vpop.f32.mrb[0].mxu0
        %v5168 = vadd.f32 0.0, %v5167
        %v5169 = vpop.f32.mrb[0].mxu0
        %v5170 = vadd.f32 0.0, %v5169
        %v5171 = vpop.f32.mrb[0].mxu0
        %v5172 = vadd.f32 0.0, %v5171
        %5173 = vdwg.mxu0
        %v5174 = vadd.f32 %v4296, %v4983
        %v5175 = vadd.f32 %v4298, %v4985
        %v5176 = vadd.f32 %v4409, %v5096
        %v5177 = vadd.f32 %v4411, %v5098
        %v5178 = vadd.f32 %v4300, %v4987
        %v5179 = vadd.f32 %v4302, %v4989
        %v5180 = vadd.f32 %v4413, %v5100
        %v5181 = vadd.f32 %v4415, %v5102
        %v5182 = vadd.f32 %v4306, %v4993
        %v5183 = vadd.f32 %v4308, %v4995
        %v5184 = vadd.f32 %v4419, %v5106
        %v5185 = vadd.f32 %v4421, %v5108
        %v5186 = vadd.f32 %v4310, %v4997
        %v5187 = vadd.f32 %v4312, %v4999
        %v5188 = vadd.f32 %v4423, %v5110
        %v5189 = vadd.f32 %v4425, %v5112
        %v5190 = vadd.f32 %v4316, %v5003
        %v5191 = vadd.f32 %v4318, %v5005
        %v5192 = vadd.f32 %v4429, %v5116
        %v5193 = vadd.f32 %v4431, %v5118
        %v5194 = vadd.f32 %v4320, %v5007
        %v5195 = vadd.f32 %v4322, %v5009
        %v5196 = vadd.f32 %v4433, %v5120
        %v5197 = vadd.f32 %v4435, %v5122
        %v5198 = vadd.f32 %v4326, %v5013
        %v5199 = vadd.f32 %v4328, %v5015
        %v5200 = vadd.f32 %v4439, %v5126
        %v5201 = vadd.f32 %v4441, %v5128
        %v5202 = vadd.f32 %v4330, %v5017
        %v5203 = vadd.f32 %v4332, %v5019
        %v5204 = vadd.f32 %v4443, %v5130
        %v5205 = vadd.f32 %v4445, %v5132
        %v5206 = vadd.f32 %v4336, %v5023
        %v5207 = vadd.f32 %v4338, %v5025
        %v5208 = vadd.f32 %v4449, %v5136
        %v5209 = vadd.f32 %v4451, %v5138
        %v5210 = vadd.f32 %v4340, %v5027
        %v5211 = vadd.f32 %v4342, %v5029
        %v5212 = vadd.f32 %v4453, %v5140
        %v5213 = vadd.f32 %v4455, %v5142
        %v5214 = vadd.f32 %v4346, %v5033
        %v5215 = vadd.f32 %v4348, %v5035
        %v5216 = vadd.f32 %v4459, %v5146
        %v5217 = vadd.f32 %v4461, %v5148
        %v5218 = vadd.f32 %v4350, %v5037
        %v5219 = vadd.f32 %v4352, %v5039
        %v5220 = vadd.f32 %v4463, %v5150
        %v5221 = vadd.f32 %v4465, %v5152
        %v5222 = vadd.f32 %v4356, %v5043
        %v5223 = vadd.f32 %v4358, %v5045
        %v5224 = vadd.f32 %v4469, %v5156
        %v5225 = vadd.f32 %v4471, %v5158
        %v5226 = vadd.f32 %v4360, %v5047
        %v5227 = vadd.f32 %v4362, %v5049
        %v5228 = vadd.f32 %v4473, %v5160
        %v5229 = vadd.f32 %v4475, %v5162
        %v5230 = vadd.f32 %v4366, %v5053
        %v5231 = vadd.f32 %v4368, %v5055
        %v5232 = vadd.f32 %v4479, %v5166
        %v5233 = vadd.f32 %v4481, %v5168
        %v5234 = vadd.f32 %v4370, %v5057
        %v5235 = vadd.f32 %v4372, %v5059
        %v5236 = vadd.f32 %v4483, %v5170
        %v5237 = vadd.f32 %v4485, %v5172
        %v5238 = vld [vmem:[%s12] sm:$0xf]
        %v5240 = vlaneseq
        %v5241 = vshrl.u32 %v5240, 7
        %v5242 = vsub.s32 0, %v5241
        %v5243 = vrot.slane %v5238, %v5242
        %v5244 = vlaneseq
        %v5245 = vshrl.u32 %v5244, 7
        %v5246 = vsub.s32 1, %v5245
        %v5247 = vrot.slane %v5238, %v5246
        %v5248 = vlaneseq
        %v5249 = vshrl.u32 %v5248, 7
        %v5250 = vsub.s32 2, %v5249
        %v5251 = vrot.slane %v5238, %v5250
        %v5252 = vlaneseq
        %v5253 = vshrl.u32 %v5252, 7
        %v5254 = vsub.s32 3, %v5253
        %v5255 = vrot.slane %v5238, %v5254
        %v5260 = vadd.f32 %v5174, %v5243
        %v5261 = vadd.f32 %v5175, %v5247
        %v5262 = vadd.f32 %v5176, %v5251
        %v5263 = vadd.f32 %v5177, %v5255
        %v5264 = vadd.f32 %v5178, %v5243
        %v5265 = vadd.f32 %v5179, %v5247
        %v5266 = vadd.f32 %v5180, %v5251
        %v5267 = vadd.f32 %v5181, %v5255
        %v5268 = vadd.f32 %v5182, %v5243
        %v5269 = vadd.f32 %v5183, %v5247
        %v5270 = vadd.f32 %v5184, %v5251
        %v5271 = vadd.f32 %v5185, %v5255
        %v5272 = vadd.f32 %v5186, %v5243
        %v5273 = vadd.f32 %v5187, %v5247
        %v5274 = vadd.f32 %v5188, %v5251
        %v5275 = vadd.f32 %v5189, %v5255
        %v5276 = vadd.f32 %v5190, %v5243
        %v5277 = vadd.f32 %v5191, %v5247
        %v5278 = vadd.f32 %v5192, %v5251
        %v5279 = vadd.f32 %v5193, %v5255
        %v5280 = vadd.f32 %v5194, %v5243
        %v5281 = vadd.f32 %v5195, %v5247
        %v5282 = vadd.f32 %v5196, %v5251
        %v5283 = vadd.f32 %v5197, %v5255
        %v5284 = vadd.f32 %v5198, %v5243
        %v5285 = vadd.f32 %v5199, %v5247
        %v5286 = vadd.f32 %v5200, %v5251
        %v5287 = vadd.f32 %v5201, %v5255
        %v5288 = vadd.f32 %v5202, %v5243
        %v5289 = vadd.f32 %v5203, %v5247
        %v5290 = vadd.f32 %v5204, %v5251
        %v5291 = vadd.f32 %v5205, %v5255
        %v5292 = vadd.f32 %v5206, %v5243
        %v5293 = vadd.f32 %v5207, %v5247
        %v5294 = vadd.f32 %v5208, %v5251
        %v5295 = vadd.f32 %v5209, %v5255
        %v5296 = vadd.f32 %v5210, %v5243
        %v5297 = vadd.f32 %v5211, %v5247
        %v5298 = vadd.f32 %v5212, %v5251
        %v5299 = vadd.f32 %v5213, %v5255
        %v5300 = vadd.f32 %v5214, %v5243
        %v5301 = vadd.f32 %v5215, %v5247
        %v5302 = vadd.f32 %v5216, %v5251
        %v5303 = vadd.f32 %v5217, %v5255
        %v5304 = vadd.f32 %v5218, %v5243
        %v5305 = vadd.f32 %v5219, %v5247
        %v5306 = vadd.f32 %v5220, %v5251
        %v5307 = vadd.f32 %v5221, %v5255
        %v5308 = vadd.f32 %v5222, %v5243
        %v5309 = vadd.f32 %v5223, %v5247
        %v5310 = vadd.f32 %v5224, %v5251
        %v5311 = vadd.f32 %v5225, %v5255
        %v5312 = vadd.f32 %v5226, %v5243
        %v5313 = vadd.f32 %v5227, %v5247
        %v5314 = vadd.f32 %v5228, %v5251
        %v5315 = vadd.f32 %v5229, %v5255
        %v5316 = vadd.f32 %v5230, %v5243
        %v5317 = vadd.f32 %v5231, %v5247
        %v5318 = vadd.f32 %v5232, %v5251
        %v5319 = vadd.f32 %v5233, %v5255
        %v5320 = vadd.f32 %v5234, %v5243
        %v5321 = vadd.f32 %v5235, %v5247
        %v5322 = vadd.f32 %v5236, %v5251
        %v5323 = vadd.f32 %v5237, %v5255
        %v5324 = vmax.f32 %v5260, 0.0
        %v5325 = vmax.f32 %v5261, 0.0
        %v5326 = vmax.f32 %v5262, 0.0
        %v5327 = vmax.f32 %v5263, 0.0
        %v5328 = vmax.f32 %v5264, 0.0
        %v5329 = vmax.f32 %v5265, 0.0
        %v5330 = vmax.f32 %v5266, 0.0
        %v5331 = vmax.f32 %v5267, 0.0
        %v5332 = vmax.f32 %v5268, 0.0
        %v5333 = vmax.f32 %v5269, 0.0
        %v5334 = vmax.f32 %v5270, 0.0
        %v5335 = vmax.f32 %v5271, 0.0
        %v5336 = vmax.f32 %v5272, 0.0
        %v5337 = vmax.f32 %v5273, 0.0
        %v5338 = vmax.f32 %v5274, 0.0
        %v5339 = vmax.f32 %v5275, 0.0
        %v5340 = vmax.f32 %v5276, 0.0
        %v5341 = vmax.f32 %v5277, 0.0
        %v5342 = vmax.f32 %v5278, 0.0
        %v5343 = vmax.f32 %v5279, 0.0
        %v5344 = vmax.f32 %v5280, 0.0
        %v5345 = vmax.f32 %v5281, 0.0
        %v5346 = vmax.f32 %v5282, 0.0
        %v5347 = vmax.f32 %v5283, 0.0
        %v5348 = vmax.f32 %v5284, 0.0
        %v5349 = vmax.f32 %v5285, 0.0
        %v5350 = vmax.f32 %v5286, 0.0
        %v5351 = vmax.f32 %v5287, 0.0
        %v5352 = vmax.f32 %v5288, 0.0
        %v5353 = vmax.f32 %v5289, 0.0
        %v5354 = vmax.f32 %v5290, 0.0
        %v5355 = vmax.f32 %v5291, 0.0
        %v5356 = vmax.f32 %v5292, 0.0
        %v5357 = vmax.f32 %v5293, 0.0
        %v5358 = vmax.f32 %v5294, 0.0
        %v5359 = vmax.f32 %v5295, 0.0
        %v5360 = vmax.f32 %v5296, 0.0
        %v5361 = vmax.f32 %v5297, 0.0
        %v5362 = vmax.f32 %v5298, 0.0
        %v5363 = vmax.f32 %v5299, 0.0
        %v5364 = vmax.f32 %v5300, 0.0
        %v5365 = vmax.f32 %v5301, 0.0
        %v5366 = vmax.f32 %v5302, 0.0
        %v5367 = vmax.f32 %v5303, 0.0
        %v5368 = vmax.f32 %v5304, 0.0
        %v5369 = vmax.f32 %v5305, 0.0
        %v5370 = vmax.f32 %v5306, 0.0
        %v5371 = vmax.f32 %v5307, 0.0
        %v5372 = vmax.f32 %v5308, 0.0
        %v5373 = vmax.f32 %v5309, 0.0
        %v5374 = vmax.f32 %v5310, 0.0
        %v5375 = vmax.f32 %v5311, 0.0
        %v5376 = vmax.f32 %v5312, 0.0
        %v5377 = vmax.f32 %v5313, 0.0
        %v5378 = vmax.f32 %v5314, 0.0
        %v5379 = vmax.f32 %v5315, 0.0
        %v5380 = vmax.f32 %v5316, 0.0
        %v5381 = vmax.f32 %v5317, 0.0
        %v5382 = vmax.f32 %v5318, 0.0
        %v5383 = vmax.f32 %v5319, 0.0
        %v5384 = vmax.f32 %v5320, 0.0
        %v5385 = vmax.f32 %v5321, 0.0
        %v5386 = vmax.f32 %v5322, 0.0
        %v5387 = vmax.f32 %v5323, 0.0
        %5388 = vst [vmem:[%s481] sm:$0xff] %v5324
        %5389 = vst [vmem:[%s481 + $0x8] sm:$0xff] %v5325
        %5390 = vst [vmem:[%s481 + $0x10] sm:$0xff] %v5326
        %5391 = vst [vmem:[%s481 + $0x18] sm:$0xff] %v5327
        %5392 = vst [vmem:[%s481 + $0x20] sm:$0xff] %v5328
        %5393 = vst [vmem:[%s481 + $0x28] sm:$0xff] %v5329
        %5394 = vst [vmem:[%s481 + $0x30] sm:$0xff] %v5330
        %5395 = vst [vmem:[%s481 + $0x38] sm:$0xff] %v5331
        %5396 = vst [vmem:[%s481 + $0x40] sm:$0xff] %v5332
        %5397 = vst [vmem:[%s481 + $0x48] sm:$0xff] %v5333
        %5398 = vst [vmem:[%s481 + $0x50] sm:$0xff] %v5334
        %5399 = vst [vmem:[%s481 + $0x58] sm:$0xff] %v5335
        %5400 = vst [vmem:[%s481 + $0x60] sm:$0xff] %v5336
        %5401 = vst [vmem:[%s481 + $0x68] sm:$0xff] %v5337
        %5402 = vst [vmem:[%s481 + $0x70] sm:$0xff] %v5338
        %5403 = vst [vmem:[%s481 + $0x78] sm:$0xff] %v5339
        %5404 = vst [vmem:[%s481 + $0x80] sm:$0xff] %v5340
        %5405 = vst [vmem:[%s481 + $0x88] sm:$0xff] %v5341
        %5406 = vst [vmem:[%s481 + $0x90] sm:$0xff] %v5342
        %5407 = vst [vmem:[%s481 + $0x98] sm:$0xff] %v5343
        %5408 = vst [vmem:[%s481 + $0xa0] sm:$0xff] %v5344
        %5409 = vst [vmem:[%s481 + $0xa8] sm:$0xff] %v5345
        %5410 = vst [vmem:[%s481 + $0xb0] sm:$0xff] %v5346
        %5411 = vst [vmem:[%s481 + $0xb8] sm:$0xff] %v5347
        %5412 = vst [vmem:[%s481 + $0xc0] sm:$0xff] %v5348
        %5413 = vst [vmem:[%s481 + $0xc8] sm:$0xff] %v5349
        %5414 = vst [vmem:[%s481 + $0xd0] sm:$0xff] %v5350
        %5415 = vst [vmem:[%s481 + $0xd8] sm:$0xff] %v5351
        %5416 = vst [vmem:[%s481 + $0xe0] sm:$0xff] %v5352
        %5417 = vst [vmem:[%s481 + $0xe8] sm:$0xff] %v5353
        %5418 = vst [vmem:[%s481 + $0xf0] sm:$0xff] %v5354
        %5419 = vst [vmem:[%s481 + $0xf8] sm:$0xff] %v5355
        %5420 = vst [vmem:[%s481 + $0x100] sm:$0xff] %v5356
        %5421 = vst [vmem:[%s481 + $0x108] sm:$0xff] %v5357
        %5422 = vst [vmem:[%s481 + $0x110] sm:$0xff] %v5358
        %5423 = vst [vmem:[%s481 + $0x118] sm:$0xff] %v5359
        %5424 = vst [vmem:[%s481 + $0x120] sm:$0xff] %v5360
        %5425 = vst [vmem:[%s481 + $0x128] sm:$0xff] %v5361
        %5426 = vst [vmem:[%s481 + $0x130] sm:$0xff] %v5362
        %5427 = vst [vmem:[%s481 + $0x138] sm:$0xff] %v5363
        %5428 = vst [vmem:[%s481 + $0x140] sm:$0xff] %v5364
        %5429 = vst [vmem:[%s481 + $0x148] sm:$0xff] %v5365
        %5430 = vst [vmem:[%s481 + $0x150] sm:$0xff] %v5366
        %5431 = vst [vmem:[%s481 + $0x158] sm:$0xff] %v5367
        %5432 = vst [vmem:[%s481 + $0x160] sm:$0xff] %v5368
        %5433 = vst [vmem:[%s481 + $0x168] sm:$0xff] %v5369
        %5434 = vst [vmem:[%s481 + $0x170] sm:$0xff] %v5370
        %5435 = vst [vmem:[%s481 + $0x178] sm:$0xff] %v5371
        %5436 = vst [vmem:[%s481 + $0x180] sm:$0xff] %v5372
        %5437 = vst [vmem:[%s481 + $0x188] sm:$0xff] %v5373
        %5438 = vst [vmem:[%s481 + $0x190] sm:$0xff] %v5374
        %5439 = vst [vmem:[%s481 + $0x198] sm:$0xff] %v5375
        %5440 = vst [vmem:[%s481 + $0x1a0] sm:$0xff] %v5376
        %5441 = vst [vmem:[%s481 + $0x1a8] sm:$0xff] %v5377
        %5442 = vst [vmem:[%s481 + $0x1b0] sm:$0xff] %v5378
        %5443 = vst [vmem:[%s481 + $0x1b8] sm:$0xff] %v5379
        %5444 = vst [vmem:[%s481 + $0x1c0] sm:$0xff] %v5380
        %5445 = vst [vmem:[%s481 + $0x1c8] sm:$0xff] %v5381
        %5446 = vst [vmem:[%s481 + $0x1d0] sm:$0xff] %v5382
        %5447 = vst [vmem:[%s481 + $0x1d8] sm:$0xff] %v5383
        %5448 = vst [vmem:[%s481 + $0x1e0] sm:$0xff] %v5384
        %5449 = vst [vmem:[%s481 + $0x1e8] sm:$0xff] %v5385
        %5450 = vst [vmem:[%s481 + $0x1f0] sm:$0xff] %v5386
        %5451 = vst [vmem:[%s481 + $0x1f8] sm:$0xff] %v5387
        %p5452 = scmp.lt.s32.totalorder %s26, 1
        %s5453 = scalar_select %p5452, %s26, 1
        %s5454 = smul.addr %s5453, 64
        %s5455 = smul.addr %s5454, 8
        %s5456 = scalar_lea.vmem %s13, %s5455
        // Predicated region
        $region85: #{decoder_forward.1} parent=71 // pred_check
          %p5457 = pneg %p322
        $region86: #{decoder_forward.1} parent=71 // pred_check_branch
          %5459 = sbr.rel (%p5457) target = $region88
        $region87: #{decoder_forward.1} parent=71 // pred_region
          _
        $region88: #{decoder_forward.1} parent=71 // pred_fallthru
          _
      $region72: #{decoder_forward.1} parent=5 // pred_fallthru
        _
      %p5460 = scmp.le.s32.totalorder 2, %s21
      // Predicated region
      $region89: #{decoder_forward.1} parent=5 // pred_check
        %p5461 = pneg %p5460
      $region90: #{decoder_forward.1} parent=5 // pred_check_branch
        %5463 = sbr.rel (%p5461) target = $region92
      $region91: #{decoder_forward.1} parent=5 // pred_region
        %s5464 = ssub.s32 %s21, 2
        // Predicated region
        $region93: #{decoder_forward.1} parent=91 // pred_check
          %p5465 = pneg %p328
        $region94: #{decoder_forward.1} parent=91 // pred_check_branch
          %5467 = sbr.rel (%p5465) target = $region96
        $region95: #{decoder_forward.1} parent=91 // pred_region
          %p5468 = scmp.lt.s32.totalorder %s27, 1
          %s5469 = scalar_select %p5468, %s27, 1
          %s5470 = smul.addr %s5469, 64
          %s5471 = smul.addr %s5470, 8
          %s5472 = scalar_lea.vmem %s13, %s5471
        $region96: #{decoder_forward.1} parent=91 // pred_fallthru
          _
      $region92: #{decoder_forward.1} parent=5 // pred_fallthru
        _
    $region6: #{decoder_forward.1} parent=1 // loop_footer
      %s25 = sadd.s32 1, %s21
    $region7: #{decoder_forward.1} parent=1 // loop_footer_branch
      %20 = sbr.rel target = $region3
    $region8: #{decoder_forward.1} parent=1 // loop_exit
      _
    %5473 = vsyncpa [#allocation7], 1
    %s5474 = scalar_lea.sflag [#allocation7], 1
    %5475 = vsyncpa %s5474, 1
    %5476 = vsyncpa [#allocation9], 1

</llo_original>
